<compile_context>
chip_gen: v7x
topology: tpu7x:2x2x1
jax: 0.10.0
libtpu: 0.0.40
codegen_flags: <defaults>
</compile_context>

<pallas_src>
import functools

import jax
import jax.numpy as jnp
from jax import lax
from jax.experimental import pallas as pl
from jax.experimental.pallas import tpu as pltpu


# 27 taps of the 3x3x3 kernel in (kd, kh, kw) product order; tap 13 is the
# center (1,1,1).  The kernel and the wrapper's weight packing share this list.
_TAP_OFFSETS = [(kd - 1, kh - 1, kw - 1)
                for kd in range(3) for kh in range(3) for kw in range(3)]
_CENTER_TAP = 13
_OFF_CENTER_TAPS = [t for i, t in enumerate(_TAP_OFFSETS) if i != _CENTER_TAP]


def _resblock_kernel(x_ref, mask_ref, w1d_ref, b1d_ref, w2r_ref, w2c_ref,
                     b2_ref, w3_ref, b3_ref, o_ref, col_ref,
                     *, D, H, W, width, batch_block):
    """One grid step: `batch_block` batch elements folded along the lane axis."""
    DHW = D * H * W
    HW = H * W
    Lb = batch_block * DHW

    x = x_ref[...]                                        # (Cin, Lb) bf16

    # ---- conv_layer_1 (1x1x1) + downsample (1x1x1), fused into one matmul.
    # w1d rows [0, width) = conv1 (BN folded), rows [width, ...) = downsample.
    y = jnp.dot(w1d_ref[...], x,
                preferred_element_type=jnp.float32) + b1d_ref[...]
    y1 = jnp.maximum(y[:width], 0.0)                      # conv1 -> BN -> ReLU
    yd = y[width:]                                        # downsample -> BN (f32)

    # ---- conv_layer_2 (3x3x3, padding=1): bf16 im2col of the 26 off-center
    # taps (XLU roll + precomputed boundary-mask multiply), written in 16-row
    # pairs so every bf16 store is a full packed (16,128) tile.
    def masked_window(j):
        dd, dh, dw = _OFF_CENTER_TAPS[j]
        shift = dd * HW + dh * W + dw                     # flat source offset
        win = pltpu.roll(y1, (-shift) % Lb, axis=1)
        return win * mask_ref[pl.ds(j, 1), :]             # zero out-of-volume lanes

    for p in range(13):                                   # 26 taps = 13 pairs
        pair = jnp.concatenate(
            [masked_window(2 * p), masked_window(2 * p + 1)], axis=0)
        col_ref[2 * p * width:(2 * p + 2) * width, :] = pair.astype(jnp.bfloat16)

    y1_bf = y1.astype(jnp.bfloat16)
    # Every row of col_ref is rewritten above each grid step before this read.
    y2 = (jnp.dot(w2r_ref[...], col_ref[...], preferred_element_type=jnp.float32)
          + jnp.dot(w2c_ref[...], y1_bf, preferred_element_type=jnp.float32)
          + b2_ref[...])

    # ---- conv_layer_3 (1x1x1) + BN ---------------------------------------
    y3 = jnp.dot(w3_ref[...], y2.astype(jnp.bfloat16),
                 preferred_element_type=jnp.float32) + b3_ref[...]

    # ---- residual add + final ReLU; lane-dense (Cout, DHW) stores ---------
    res = jnp.maximum(y3 + yd, 0.0)                       # (Cout, Lb) f32
    for n in range(batch_block):
        o_ref[n] = res[:, n * DHW:(n + 1) * DHW]


def _build_boundary_mask(D, H, W, batch_block, dtype=jnp.float32):
    """(26, batch_block*DHW) 0/1 mask, one row per off-center 3x3x3 tap."""
    DHW = D * H * W
    p = jnp.arange(DHW)
    d = p // (H * W)
    h = (p // W) % H
    w = p % W
    rows = []
    for dd, dh, dw in _OFF_CENTER_TAPS:
        ok = ((d + dd >= 0) & (d + dd < D)
              & (h + dh >= 0) & (h + dh < H)
              & (w + dw >= 0) & (w + dw < W))
        rows.append(ok)
    m = jnp.stack(rows).astype(dtype)                     # (26, DHW)
    return jnp.tile(m, (1, batch_block))                  # periodic per batch elem


def resblock_pallas(x_cm, w1d, b1d, w2r, w2c, b2, w3, b3, *, N, D, H, W,
                    batch_block=None):
    """x_cm: (Cin, N*D*H*W) bf16, channel-major with batch folded along lanes.

    Returns (N, Cout, D*H*W) f32.  `batch_block` = batch elements per grid
    step; default folds the whole batch into one step (best on single-TC
    v5e/v6e).  On v7x set batch_block = N // 2 to give each TensorCore a slab.
    """
    Cin, Ltot = x_cm.shape
    DHW = D * H * W
    assert Ltot == N * DHW
    width = w2c.shape[0]
    Cout = w3.shape[0]
    n_mixed = w1d.shape[0]                                # width + Cout
    assert width % 8 == 0, "aligned tap stores need width to be a multiple of 8"
    if batch_block is None:
        batch_block = N
    assert N % batch_block == 0
    Lb = batch_block * DHW
    assert Lb % 128 == 0, "lane block must be a multiple of 128"

    mask = _build_boundary_mask(D, H, W, batch_block)     # (26, Lb) f32, resident

    kernel = functools.partial(_resblock_kernel, D=D, H=H, W=W, width=width,
                               batch_block=batch_block)

    flops = 2 * Ltot * (n_mixed * Cin + width * 27 * width + Cout * width)
    weight_bytes = sum(int(a.size) * a.dtype.itemsize
                       for a in (w1d, b1d, w2r, w2c, b2, w3, b3))
    bytes_accessed = (int(x_cm.size) * x_cm.dtype.itemsize
                      + N * Cout * DHW * 4
                      + int(mask.size) * 4
                      + weight_bytes)

    # Explicit VMEM budget: x block (double-buffered, bf16) + mask + bf16
    # im2col scratch + output block (double-buffered) + weights, with headroom.
    vmem_need = (2 * Cin * Lb * 2 + 26 * Lb * 4 + 26 * width * Lb * 2
                 + 2 * batch_block * Cout * DHW * 4 + 2 * weight_bytes)
    vmem_limit = int(min(max(4 * vmem_need, 32 << 20), 96 << 20))

    grid_spec = pltpu.PrefetchScalarGridSpec(
        num_scalar_prefetch=0,
        grid=(N // batch_block,),
        in_specs=[
            pl.BlockSpec((Cin, Lb), lambda i: (0, i)),
            pl.BlockSpec((26, Lb), lambda i: (0, 0)),
            pl.BlockSpec((n_mixed, Cin), lambda i: (0, 0)),
            pl.BlockSpec((n_mixed, 1), lambda i: (0, 0)),
            pl.BlockSpec((width, 26 * width), lambda i: (0, 0)),
            pl.BlockSpec((width, width), lambda i: (0, 0)),
            pl.BlockSpec((width, 1), lambda i: (0, 0)),
            pl.BlockSpec((Cout, width), lambda i: (0, 0)),
            pl.BlockSpec((Cout, 1), lambda i: (0, 0)),
        ],
        out_specs=pl.BlockSpec((batch_block, Cout, DHW), lambda i: (i, 0, 0)),
        scratch_shapes=[pltpu.VMEM((26 * width, Lb), jnp.bfloat16)],
    )
    return pl.pallas_call(
        kernel,
        out_shape=jax.ShapeDtypeStruct((N, Cout, DHW), jnp.float32),
        grid_spec=grid_spec,
        compiler_params=pltpu.CompilerParams(
            dimension_semantics=("parallel",),
            vmem_limit_bytes=vmem_limit),
        cost_estimate=pl.CostEstimate(
            flops=flops, transcendentals=0, bytes_accessed=bytes_accessed),
    )(x_cm, mask, w1d, b1d, w2r, w2c, b2, w3, b3)


# ----------------------------- parameter setup -------------------------------

def _fuse_conv_bn(w, b, gamma, beta, mean, var, eps=1e-5):
    """Fold eval-mode BatchNorm into conv weight/bias. w: (out, in, kd, kh, kw)."""
    scale = gamma / jnp.sqrt(var + eps)
    w_f = w * scale[:, None, None, None, None]
    b_f = (b - mean) * scale + beta
    return w_f, b_f


def _conv3d_ref(x, w, b, stride, pad):
    y = lax.conv_general_dilated(
        x, w, window_strides=(stride,) * 3, padding=[(pad, pad)] * 3,
        dimension_numbers=("NCDHW", "OIDHW", "NCDHW"))
    return y + b[None, :, None, None, None]


def _bn_ref(x, gamma, beta, mean, var, eps=1e-5):
    inv = gamma / jnp.sqrt(var + eps)
    return (x - mean[None, :, None, None, None]) * inv[None, :, None, None, None] \
        + beta[None, :, None, None, None]


if __name__ == "__main__":
    # ResBlock(in_c=4, out_c=8, ks=3, stride=1, bottleneck=True) => width = 8
    N, Cin, Cout, D, H, W = 2, 4, 8, 8, 8, 8
    width = Cout
    DHW = D * H * W

    key = jax.random.PRNGKey(0)
    ks = jax.random.split(key, 25)
    kit = iter(range(25))

    def nrm(shape, scale=0.1):
        return scale * jax.random.normal(ks[next(kit)], shape, jnp.float32)

    def bn_params(c):
        gamma = 1.0 + 0.1 * jax.random.normal(ks[next(kit)], (c,), jnp.float32)
        beta = 0.1 * jax.random.normal(ks[next(kit)], (c,), jnp.float32)
        mean = 0.1 * jax.random.normal(ks[next(kit)], (c,), jnp.float32)
        var = 0.5 + jax.random.uniform(ks[next(kit)], (c,), jnp.float32)
        return gamma, beta, mean, var

    x = jax.random.normal(ks[next(kit)], (N, Cin, D, H, W), jnp.float32)

    # Conv weights in PyTorch layout (out, in, kd, kh, kw) + biases.
    w1, b1 = nrm((width, Cin, 1, 1, 1)), nrm((width,))
    w2, b2 = nrm((width, width, 3, 3, 3)), nrm((width,))
    w3, b3 = nrm((Cout, width, 1, 1, 1)), nrm((Cout,))
    wd, bd = nrm((Cout, Cin, 1, 1, 1)), nrm((Cout,))
    bn1, bn2, bn3, bnd = bn_params(width), bn_params(width), bn_params(Cout), bn_params(Cout)

    # ---- pure-JAX reference (eval-mode BN), NCDHW ---------------------------
    y = jax.nn.relu(_bn_ref(_conv3d_ref(x, w1, b1, 1, 0), *bn1))
    y = _bn_ref(_conv3d_ref(y, w2, b2, 1, 1), *bn2)
    y = _bn_ref(_conv3d_ref(y, w3, b3, 1, 0), *bn3)
    d = _bn_ref(_conv3d_ref(x, wd, bd, 1, 0), *bnd)
    ref = jax.nn.relu(y + d)

    # ---- fold BN into conv params and pack for the kernel -------------------
    w1f, b1f = _fuse_conv_bn(w1, b1, *bn1)
    w2f, b2f = _fuse_conv_bn(w2, b2, *bn2)
    w3f, b3f = _fuse_conv_bn(w3, b3, *bn3)
    wdf, bdf = _fuse_conv_bn(wd, bd, *bnd)

    # conv1 + downsample fused along the output-channel axis (bf16 MXU operands).
    w1d_mat = jnp.concatenate([w1f[:, :, 0, 0, 0], wdf[:, :, 0, 0, 0]],
                              axis=0).astype(jnp.bfloat16)          # (width+Cout, Cin)
    b1d_vec = jnp.concatenate([b1f, bdf], axis=0)[:, None]           # (width+Cout, 1)
    # 3x3x3 weights: (o, tap, i) with tap = kd*9 + kh*3 + kw; split out the
    # center tap (fed straight from vregs) from the 26 off-center taps (im2col).
    w2_all = jnp.transpose(w2f, (0, 2, 3, 4, 1)).reshape(width, 27, width)
    w2c_mat = w2_all[:, _CENTER_TAP, :].astype(jnp.bfloat16)         # (width, width)
    w2r_mat = jnp.concatenate(
        [w2_all[:, :_CENTER_TAP, :].reshape(width, _CENTER_TAP * width),
         w2_all[:, _CENTER_TAP + 1:, :].reshape(width, (26 - _CENTER_TAP) * width)],
        axis=1).astype(jnp.bfloat16)                                 # (width, 26*width)
    b2_vec = b2f[:, None]
    w3_mat = w3f[:, :, 0, 0, 0].astype(jnp.bfloat16)                 # (Cout, width)
    b3_vec = b3f[:, None]

    # ---- run Pallas kernel (channel-major, batch folded along lanes, bf16) --
    x_cm = jnp.transpose(x.reshape(N, Cin, DHW), (1, 0, 2)) \
              .reshape(Cin, N * DHW).astype(jnp.bfloat16)
    out_flat = resblock_pallas(x_cm, w1d_mat, b1d_vec, w2r_mat, w2c_mat,
                               b2_vec, w3_mat, b3_vec, N=N, D=D, H=H, W=W)
    out = out_flat.reshape(N, Cout, D, H, W)
    out = jax.block_until_ready(out)

    assert out.shape == (N, Cout, D, H, W)
    # bf16 MXU operands (f32 accumulation) on all matmuls and bf16 input DMA
    # -> tolerance loosened vs. the pure-f32 reference.
    if not jnp.allclose(out, ref, atol=2e-2, rtol=2e-2):
        raise AssertionError("Pallas ResBlock does not match JAX reference")
    print("KERNEL_OK")
</pallas_src>

<mosaic_0001>
module attributes {stable_mosaic.version = 11 : i64} {
  func.func @_resblock_kernel(%arg0: i32, %arg1: memref<4x1024xbf16, #tpu.memory_space<vmem>>, %arg2: memref<26x1024xf32, #tpu.memory_space<vmem>>, %arg3: memref<16x4xbf16, #tpu.memory_space<vmem>>, %arg4: memref<16x1xf32, #tpu.memory_space<vmem>>, %arg5: memref<8x208xbf16, #tpu.memory_space<vmem>>, %arg6: memref<8x8xbf16, #tpu.memory_space<vmem>>, %arg7: memref<8x1xf32, #tpu.memory_space<vmem>>, %arg8: memref<8x8xbf16, #tpu.memory_space<vmem>>, %arg9: memref<8x1xf32, #tpu.memory_space<vmem>>, %arg10: memref<2x8x512xf32, #tpu.memory_space<vmem>>, %arg11: memref<208x1024xbf16, #tpu.memory_space<vmem>>) attributes {dimension_semantics = [#tpu.dimension_semantics<parallel>], iteration_bounds = array<i64: 1>, scalar_prefetch = 0 : i64, scratch_operands = 1 : i64, tpu.core_type = #tpu.core_type<tc>, window_params = [{transform_indices = @transform_0, window_bounds = array<i64: 4, 1024>}, {pipeline_mode = #tpu.pipeline_mode<synchronous>, transform_indices = @transform_1, window_bounds = array<i64: 26, 1024>}, {pipeline_mode = #tpu.pipeline_mode<synchronous>, transform_indices = @transform_2, window_bounds = array<i64: 16, 4>}, {pipeline_mode = #tpu.pipeline_mode<synchronous>, transform_indices = @transform_3, window_bounds = array<i64: 16, 1>}, {pipeline_mode = #tpu.pipeline_mode<synchronous>, transform_indices = @transform_4, window_bounds = array<i64: 8, 208>}, {pipeline_mode = #tpu.pipeline_mode<synchronous>, transform_indices = @transform_5, window_bounds = array<i64: 8, 8>}, {pipeline_mode = #tpu.pipeline_mode<synchronous>, transform_indices = @transform_6, window_bounds = array<i64: 8, 1>}, {pipeline_mode = #tpu.pipeline_mode<synchronous>, transform_indices = @transform_7, window_bounds = array<i64: 8, 8>}, {pipeline_mode = #tpu.pipeline_mode<synchronous>, transform_indices = @transform_8, window_bounds = array<i64: 8, 1>}, {transform_indices = @transform_9, window_bounds = array<i64: 2, 8, 512>}]} {
    %c0 = arith.constant 0 : index
    %c0_0 = arith.constant 0 : index
    %0 = vector.load %arg1[%c0, %c0_0] : memref<4x1024xbf16, #tpu.memory_space<vmem>>, vector<4x1024xbf16>
    %c0_1 = arith.constant 0 : index
    %c0_2 = arith.constant 0 : index
    %1 = vector.load %arg3[%c0_1, %c0_2] : memref<16x4xbf16, #tpu.memory_space<vmem>>, vector<16x4xbf16>
    %cst = arith.constant dense<0.000000e+00> : vector<16x1024xf32>
    %2 = tpu.matmul %1, %0, %cst {dimension_numbers = #tpu.dot_dimension_numbers<[1], [0], [0], [1], [0, 0, 1, 1], [], []>} : vector<16x4xbf16>, vector<4x1024xbf16>, vector<16x1024xf32> -> vector<16x1024xf32>
    %c0_3 = arith.constant 0 : index
    %c0_4 = arith.constant 0 : index
    %3 = vector.load %arg4[%c0_3, %c0_4] : memref<16x1xf32, #tpu.memory_space<vmem>>, vector<16x1xf32>
    %4 = vector.broadcast %3 : vector<16x1xf32> to vector<16x1024xf32>
    %5 = arith.addf %2, %4 : vector<16x1024xf32>
    %6 = vector.extract_strided_slice %5 {offsets = [0, 0], sizes = [8, 1024], strides = [1, 1]} : vector<16x1024xf32> to vector<8x1024xf32>
    %cst_5 = arith.constant 0.000000e+00 : f32
    %7 = vector.broadcast %cst_5 : f32 to vector<8x1024xf32>
    %8 = arith.maximumf %6, %7 : vector<8x1024xf32>
    %9 = vector.extract_strided_slice %5 {offsets = [8, 0], sizes = [8, 1024], strides = [1, 1]} : vector<16x1024xf32> to vector<8x1024xf32>
    %c73_i32 = arith.constant 73 : i32
    %10 = tpu.dynamic_rotate %8 by %c73_i32 dim 1 : vector<8x1024xf32>, i32 -> vector<8x1024xf32>
    %c0_6 = arith.constant 0 : index
    %c0_7 = arith.constant 0 : index
    %11 = vector.load %arg2[%c0_6, %c0_7] : memref<26x1024xf32, #tpu.memory_space<vmem>>, vector<1x1024xf32>
    %12 = vector.broadcast %11 : vector<1x1024xf32> to vector<8x1024xf32>
    %13 = arith.mulf %10, %12 : vector<8x1024xf32>
    %c72_i32 = arith.constant 72 : i32
    %14 = tpu.dynamic_rotate %8 by %c72_i32 dim 1 : vector<8x1024xf32>, i32 -> vector<8x1024xf32>
    %c1 = arith.constant 1 : index
    %c0_8 = arith.constant 0 : index
    %15 = vector.load %arg2[%c1, %c0_8] : memref<26x1024xf32, #tpu.memory_space<vmem>>, vector<1x1024xf32>
    %16 = vector.broadcast %15 : vector<1x1024xf32> to vector<8x1024xf32>
    %17 = arith.mulf %14, %16 : vector<8x1024xf32>
    %18 = tpu.concatenate %13, %17 in 0 : vector<8x1024xf32>, vector<8x1024xf32> -> vector<16x1024xf32>
    %19 = arith.truncf %18 : vector<16x1024xf32> to vector<16x1024xbf16>
    %c0_9 = arith.constant 0 : index
    %c0_10 = arith.constant 0 : index
    %20 = vector.load %arg11[%c0_9, %c0_10] : memref<208x1024xbf16, #tpu.memory_space<vmem>>, vector<16x1024xbf16>
    tpu.vector_store %arg11[%c0_9, %c0_10], %19 {strides = array<i32>} : memref<208x1024xbf16, #tpu.memory_space<vmem>>, vector<16x1024xbf16>,
    %c71_i32 = arith.constant 71 : i32
    %21 = tpu.dynamic_rotate %8 by %c71_i32 dim 1 : vector<8x1024xf32>, i32 -> vector<8x1024xf32>
    %c2 = arith.constant 2 : index
    %c0_11 = arith.constant 0 : index
    %22 = vector.load %arg2[%c2, %c0_11] : memref<26x1024xf32, #tpu.memory_space<vmem>>, vector<1x1024xf32>
    %23 = vector.broadcast %22 : vector<1x1024xf32> to vector<8x1024xf32>
    %24 = arith.mulf %21, %23 : vector<8x1024xf32>
    %c65_i32 = arith.constant 65 : i32
    %25 = tpu.dynamic_rotate %8 by %c65_i32 dim 1 : vector<8x1024xf32>, i32 -> vector<8x1024xf32>
    %c3 = arith.constant 3 : index
    %c0_12 = arith.constant 0 : index
    %26 = vector.load %arg2[%c3, %c0_12] : memref<26x1024xf32, #tpu.memory_space<vmem>>, vector<1x1024xf32>
    %27 = vector.broadcast %26 : vector<1x1024xf32> to vector<8x1024xf32>
    %28 = arith.mulf %25, %27 : vector<8x1024xf32>
    %29 = tpu.concatenate %24, %28 in 0 : vector<8x1024xf32>, vector<8x1024xf32> -> vector<16x1024xf32>
    %30 = arith.truncf %29 : vector<16x1024xf32> to vector<16x1024xbf16>
    %c16 = arith.constant 16 : index
    %c0_13 = arith.constant 0 : index
    %31 = vector.load %arg11[%c16, %c0_13] : memref<208x1024xbf16, #tpu.memory_space<vmem>>, vector<16x1024xbf16>
    tpu.vector_store %arg11[%c16, %c0_13], %30 {strides = array<i32>} : memref<208x1024xbf16, #tpu.memory_space<vmem>>, vector<16x1024xbf16>,
    %c64_i32 = arith.constant 64 : i32
    %32 = tpu.dynamic_rotate %8 by %c64_i32 dim 1 : vector<8x1024xf32>, i32 -> vector<8x1024xf32>
    %c4 = arith.constant 4 : index
    %c0_14 = arith.constant 0 : index
    %33 = vector.load %arg2[%c4, %c0_14] : memref<26x1024xf32, #tpu.memory_space<vmem>>, vector<1x1024xf32>
    %34 = vector.broadcast %33 : vector<1x1024xf32> to vector<8x1024xf32>
    %35 = arith.mulf %32, %34 : vector<8x1024xf32>
    %c63_i32 = arith.constant 63 : i32
    %36 = tpu.dynamic_rotate %8 by %c63_i32 dim 1 : vector<8x1024xf32>, i32 -> vector<8x1024xf32>
    %c5 = arith.constant 5 : index
    %c0_15 = arith.constant 0 : index
    %37 = vector.load %arg2[%c5, %c0_15] : memref<26x1024xf32, #tpu.memory_space<vmem>>, vector<1x1024xf32>
    %38 = vector.broadcast %37 : vector<1x1024xf32> to vector<8x1024xf32>
    %39 = arith.mulf %36, %38 : vector<8x1024xf32>
    %40 = tpu.concatenate %35, %39 in 0 : vector<8x1024xf32>, vector<8x1024xf32> -> vector<16x1024xf32>
    %41 = arith.truncf %40 : vector<16x1024xf32> to vector<16x1024xbf16>
    %c32 = arith.constant 32 : index
    %c0_16 = arith.constant 0 : index
    %42 = vector.load %arg11[%c32, %c0_16] : memref<208x1024xbf16, #tpu.memory_space<vmem>>, vector<16x1024xbf16>
    tpu.vector_store %arg11[%c32, %c0_16], %41 {strides = array<i32>} : memref<208x1024xbf16, #tpu.memory_space<vmem>>, vector<16x1024xbf16>,
    %c57_i32 = arith.constant 57 : i32
    %43 = tpu.dynamic_rotate %8 by %c57_i32 dim 1 : vector<8x1024xf32>, i32 -> vector<8x1024xf32>
    %c6 = arith.constant 6 : index
    %c0_17 = arith.constant 0 : index
    %44 = vector.load %arg2[%c6, %c0_17] : memref<26x1024xf32, #tpu.memory_space<vmem>>, vector<1x1024xf32>
    %45 = vector.broadcast %44 : vector<1x1024xf32> to vector<8x1024xf32>
    %46 = arith.mulf %43, %45 : vector<8x1024xf32>
    %c56_i32 = arith.constant 56 : i32
    %47 = tpu.dynamic_rotate %8 by %c56_i32 dim 1 : vector<8x1024xf32>, i32 -> vector<8x1024xf32>
    %c7 = arith.constant 7 : index
    %c0_18 = arith.constant 0 : index
    %48 = vector.load %arg2[%c7, %c0_18] : memref<26x1024xf32, #tpu.memory_space<vmem>>, vector<1x1024xf32>
    %49 = vector.broadcast %48 : vector<1x1024xf32> to vector<8x1024xf32>
    %50 = arith.mulf %47, %49 : vector<8x1024xf32>
    %51 = tpu.concatenate %46, %50 in 0 : vector<8x1024xf32>, vector<8x1024xf32> -> vector<16x1024xf32>
    %52 = arith.truncf %51 : vector<16x1024xf32> to vector<16x1024xbf16>
    %c48 = arith.constant 48 : index
    %c0_19 = arith.constant 0 : index
    %53 = vector.load %arg11[%c48, %c0_19] : memref<208x1024xbf16, #tpu.memory_space<vmem>>, vector<16x1024xbf16>
    tpu.vector_store %arg11[%c48, %c0_19], %52 {strides = array<i32>} : memref<208x1024xbf16, #tpu.memory_space<vmem>>, vector<16x1024xbf16>,
    %c55_i32 = arith.constant 55 : i32
    %54 = tpu.dynamic_rotate %8 by %c55_i32 dim 1 : vector<8x1024xf32>, i32 -> vector<8x1024xf32>
    %c8 = arith.constant 8 : index
    %c0_20 = arith.constant 0 : index
    %55 = vector.load %arg2[%c8, %c0_20] : memref<26x1024xf32, #tpu.memory_space<vmem>>, vector<1x1024xf32>
    %56 = vector.broadcast %55 : vector<1x1024xf32> to vector<8x1024xf32>
    %57 = arith.mulf %54, %56 : vector<8x1024xf32>
    %c9_i32 = arith.constant 9 : i32
    %58 = tpu.dynamic_rotate %8 by %c9_i32 dim 1 : vector<8x1024xf32>, i32 -> vector<8x1024xf32>
    %c9 = arith.constant 9 : index
    %c0_21 = arith.constant 0 : index
    %59 = vector.load %arg2[%c9, %c0_21] : memref<26x1024xf32, #tpu.memory_space<vmem>>, vector<1x1024xf32>
    %60 = vector.broadcast %59 : vector<1x1024xf32> to vector<8x1024xf32>
    %61 = arith.mulf %58, %60 : vector<8x1024xf32>
    %62 = tpu.concatenate %57, %61 in 0 : vector<8x1024xf32>, vector<8x1024xf32> -> vector<16x1024xf32>
    %63 = arith.truncf %62 : vector<16x1024xf32> to vector<16x1024xbf16>
    %c64 = arith.constant 64 : index
    %c0_22 = arith.constant 0 : index
    %64 = vector.load %arg11[%c64, %c0_22] : memref<208x1024xbf16, #tpu.memory_space<vmem>>, vector<16x1024xbf16>
    tpu.vector_store %arg11[%c64, %c0_22], %63 {strides = array<i32>} : memref<208x1024xbf16, #tpu.memory_space<vmem>>, vector<16x1024xbf16>,
    %c8_i32 = arith.constant 8 : i32
    %65 = tpu.dynamic_rotate %8 by %c8_i32 dim 1 : vector<8x1024xf32>, i32 -> vector<8x1024xf32>
    %c10 = arith.constant 10 : index
    %c0_23 = arith.constant 0 : index
    %66 = vector.load %arg2[%c10, %c0_23] : memref<26x1024xf32, #tpu.memory_space<vmem>>, vector<1x1024xf32>
    %67 = vector.broadcast %66 : vector<1x1024xf32> to vector<8x1024xf32>
    %68 = arith.mulf %65, %67 : vector<8x1024xf32>
    %c7_i32 = arith.constant 7 : i32
    %69 = tpu.dynamic_rotate %8 by %c7_i32 dim 1 : vector<8x1024xf32>, i32 -> vector<8x1024xf32>
    %c11 = arith.constant 11 : index
    %c0_24 = arith.constant 0 : index
    %70 = vector.load %arg2[%c11, %c0_24] : memref<26x1024xf32, #tpu.memory_space<vmem>>, vector<1x1024xf32>
    %71 = vector.broadcast %70 : vector<1x1024xf32> to vector<8x1024xf32>
    %72 = arith.mulf %69, %71 : vector<8x1024xf32>
    %73 = tpu.concatenate %68, %72 in 0 : vector<8x1024xf32>, vector<8x1024xf32> -> vector<16x1024xf32>
    %74 = arith.truncf %73 : vector<16x1024xf32> to vector<16x1024xbf16>
    %c80 = arith.constant 80 : index
    %c0_25 = arith.constant 0 : index
    %75 = vector.load %arg11[%c80, %c0_25] : memref<208x1024xbf16, #tpu.memory_space<vmem>>, vector<16x1024xbf16>
    tpu.vector_store %arg11[%c80, %c0_25], %74 {strides = array<i32>} : memref<208x1024xbf16, #tpu.memory_space<vmem>>, vector<16x1024xbf16>,
    %c1_i32 = arith.constant 1 : i32
    %76 = tpu.dynamic_rotate %8 by %c1_i32 dim 1 : vector<8x1024xf32>, i32 -> vector<8x1024xf32>
    %c12 = arith.constant 12 : index
    %c0_26 = arith.constant 0 : index
    %77 = vector.load %arg2[%c12, %c0_26] : memref<26x1024xf32, #tpu.memory_space<vmem>>, vector<1x1024xf32>
    %78 = vector.broadcast %77 : vector<1x1024xf32> to vector<8x1024xf32>
    %79 = arith.mulf %76, %78 : vector<8x1024xf32>
    %c1023_i32 = arith.constant 1023 : i32
    %80 = tpu.dynamic_rotate %8 by %c1023_i32 dim 1 : vector<8x1024xf32>, i32 -> vector<8x1024xf32>
    %c13 = arith.constant 13 : index
    %c0_27 = arith.constant 0 : index
    %81 = vector.load %arg2[%c13, %c0_27] : memref<26x1024xf32, #tpu.memory_space<vmem>>, vector<1x1024xf32>
    %82 = vector.broadcast %81 : vector<1x1024xf32> to vector<8x1024xf32>
    %83 = arith.mulf %80, %82 : vector<8x1024xf32>
    %84 = tpu.concatenate %79, %83 in 0 : vector<8x1024xf32>, vector<8x1024xf32> -> vector<16x1024xf32>
    %85 = arith.truncf %84 : vector<16x1024xf32> to vector<16x1024xbf16>
    %c96 = arith.constant 96 : index
    %c0_28 = arith.constant 0 : index
    %86 = vector.load %arg11[%c96, %c0_28] : memref<208x1024xbf16, #tpu.memory_space<vmem>>, vector<16x1024xbf16>
    tpu.vector_store %arg11[%c96, %c0_28], %85 {strides = array<i32>} : memref<208x1024xbf16, #tpu.memory_space<vmem>>, vector<16x1024xbf16>,
    %c1017_i32 = arith.constant 1017 : i32
    %87 = tpu.dynamic_rotate %8 by %c1017_i32 dim 1 : vector<8x1024xf32>, i32 -> vector<8x1024xf32>
    %c14 = arith.constant 14 : index
    %c0_29 = arith.constant 0 : index
    %88 = vector.load %arg2[%c14, %c0_29] : memref<26x1024xf32, #tpu.memory_space<vmem>>, vector<1x1024xf32>
    %89 = vector.broadcast %88 : vector<1x1024xf32> to vector<8x1024xf32>
    %90 = arith.mulf %87, %89 : vector<8x1024xf32>
    %c1016_i32 = arith.constant 1016 : i32
    %91 = tpu.dynamic_rotate %8 by %c1016_i32 dim 1 : vector<8x1024xf32>, i32 -> vector<8x1024xf32>
    %c15 = arith.constant 15 : index
    %c0_30 = arith.constant 0 : index
    %92 = vector.load %arg2[%c15, %c0_30] : memref<26x1024xf32, #tpu.memory_space<vmem>>, vector<1x1024xf32>
    %93 = vector.broadcast %92 : vector<1x1024xf32> to vector<8x1024xf32>
    %94 = arith.mulf %91, %93 : vector<8x1024xf32>
    %95 = tpu.concatenate %90, %94 in 0 : vector<8x1024xf32>, vector<8x1024xf32> -> vector<16x1024xf32>
    %96 = arith.truncf %95 : vector<16x1024xf32> to vector<16x1024xbf16>
    %c112 = arith.constant 112 : index
    %c0_31 = arith.constant 0 : index
    %97 = vector.load %arg11[%c112, %c0_31] : memref<208x1024xbf16, #tpu.memory_space<vmem>>, vector<16x1024xbf16>
    tpu.vector_store %arg11[%c112, %c0_31], %96 {strides = array<i32>} : memref<208x1024xbf16, #tpu.memory_space<vmem>>, vector<16x1024xbf16>,
    %c1015_i32 = arith.constant 1015 : i32
    %98 = tpu.dynamic_rotate %8 by %c1015_i32 dim 1 : vector<8x1024xf32>, i32 -> vector<8x1024xf32>
    %c16_32 = arith.constant 16 : index
    %c0_33 = arith.constant 0 : index
    %99 = vector.load %arg2[%c16_32, %c0_33] : memref<26x1024xf32, #tpu.memory_space<vmem>>, vector<1x1024xf32>
    %100 = vector.broadcast %99 : vector<1x1024xf32> to vector<8x1024xf32>
    %101 = arith.mulf %98, %100 : vector<8x1024xf32>
    %c969_i32 = arith.constant 969 : i32
    %102 = tpu.dynamic_rotate %8 by %c969_i32 dim 1 : vector<8x1024xf32>, i32 -> vector<8x1024xf32>
    %c17 = arith.constant 17 : index
    %c0_34 = arith.constant 0 : index
    %103 = vector.load %arg2[%c17, %c0_34] : memref<26x1024xf32, #tpu.memory_space<vmem>>, vector<1x1024xf32>
    %104 = vector.broadcast %103 : vector<1x1024xf32> to vector<8x1024xf32>
    %105 = arith.mulf %102, %104 : vector<8x1024xf32>
    %106 = tpu.concatenate %101, %105 in 0 : vector<8x1024xf32>, vector<8x1024xf32> -> vector<16x1024xf32>
    %107 = arith.truncf %106 : vector<16x1024xf32> to vector<16x1024xbf16>
    %c128 = arith.constant 128 : index
    %c0_35 = arith.constant 0 : index
    %108 = vector.load %arg11[%c128, %c0_35] : memref<208x1024xbf16, #tpu.memory_space<vmem>>, vector<16x1024xbf16>
    tpu.vector_store %arg11[%c128, %c0_35], %107 {strides = array<i32>} : memref<208x1024xbf16, #tpu.memory_space<vmem>>, vector<16x1024xbf16>,
    %c968_i32 = arith.constant 968 : i32
    %109 = tpu.dynamic_rotate %8 by %c968_i32 dim 1 : vector<8x1024xf32>, i32 -> vector<8x1024xf32>
    %c18 = arith.constant 18 : index
    %c0_36 = arith.constant 0 : index
    %110 = vector.load %arg2[%c18, %c0_36] : memref<26x1024xf32, #tpu.memory_space<vmem>>, vector<1x1024xf32>
    %111 = vector.broadcast %110 : vector<1x1024xf32> to vector<8x1024xf32>
    %112 = arith.mulf %109, %111 : vector<8x1024xf32>
    %c967_i32 = arith.constant 967 : i32
    %113 = tpu.dynamic_rotate %8 by %c967_i32 dim 1 : vector<8x1024xf32>, i32 -> vector<8x1024xf32>
    %c19 = arith.constant 19 : index
    %c0_37 = arith.constant 0 : index
    %114 = vector.load %arg2[%c19, %c0_37] : memref<26x1024xf32, #tpu.memory_space<vmem>>, vector<1x1024xf32>
    %115 = vector.broadcast %114 : vector<1x1024xf32> to vector<8x1024xf32>
    %116 = arith.mulf %113, %115 : vector<8x1024xf32>
    %117 = tpu.concatenate %112, %116 in 0 : vector<8x1024xf32>, vector<8x1024xf32> -> vector<16x1024xf32>
    %118 = arith.truncf %117 : vector<16x1024xf32> to vector<16x1024xbf16>
    %c144 = arith.constant 144 : index
    %c0_38 = arith.constant 0 : index
    %119 = vector.load %arg11[%c144, %c0_38] : memref<208x1024xbf16, #tpu.memory_space<vmem>>, vector<16x1024xbf16>
    tpu.vector_store %arg11[%c144, %c0_38], %118 {strides = array<i32>} : memref<208x1024xbf16, #tpu.memory_space<vmem>>, vector<16x1024xbf16>,
    %c961_i32 = arith.constant 961 : i32
    %120 = tpu.dynamic_rotate %8 by %c961_i32 dim 1 : vector<8x1024xf32>, i32 -> vector<8x1024xf32>
    %c20 = arith.constant 20 : index
    %c0_39 = arith.constant 0 : index
    %121 = vector.load %arg2[%c20, %c0_39] : memref<26x1024xf32, #tpu.memory_space<vmem>>, vector<1x1024xf32>
    %122 = vector.broadcast %121 : vector<1x1024xf32> to vector<8x1024xf32>
    %123 = arith.mulf %120, %122 : vector<8x1024xf32>
    %c960_i32 = arith.constant 960 : i32
    %124 = tpu.dynamic_rotate %8 by %c960_i32 dim 1 : vector<8x1024xf32>, i32 -> vector<8x1024xf32>
    %c21 = arith.constant 21 : index
    %c0_40 = arith.constant 0 : index
    %125 = vector.load %arg2[%c21, %c0_40] : memref<26x1024xf32, #tpu.memory_space<vmem>>, vector<1x1024xf32>
    %126 = vector.broadcast %125 : vector<1x1024xf32> to vector<8x1024xf32>
    %127 = arith.mulf %124, %126 : vector<8x1024xf32>
    %128 = tpu.concatenate %123, %127 in 0 : vector<8x1024xf32>, vector<8x1024xf32> -> vector<16x1024xf32>
    %129 = arith.truncf %128 : vector<16x1024xf32> to vector<16x1024xbf16>
    %c160 = arith.constant 160 : index
    %c0_41 = arith.constant 0 : index
    %130 = vector.load %arg11[%c160, %c0_41] : memref<208x1024xbf16, #tpu.memory_space<vmem>>, vector<16x1024xbf16>
    tpu.vector_store %arg11[%c160, %c0_41], %129 {strides = array<i32>} : memref<208x1024xbf16, #tpu.memory_space<vmem>>, vector<16x1024xbf16>,
    %c959_i32 = arith.constant 959 : i32
    %131 = tpu.dynamic_rotate %8 by %c959_i32 dim 1 : vector<8x1024xf32>, i32 -> vector<8x1024xf32>
    %c22 = arith.constant 22 : index
    %c0_42 = arith.constant 0 : index
    %132 = vector.load %arg2[%c22, %c0_42] : memref<26x1024xf32, #tpu.memory_space<vmem>>, vector<1x1024xf32>
    %133 = vector.broadcast %132 : vector<1x1024xf32> to vector<8x1024xf32>
    %134 = arith.mulf %131, %133 : vector<8x1024xf32>
    %c953_i32 = arith.constant 953 : i32
    %135 = tpu.dynamic_rotate %8 by %c953_i32 dim 1 : vector<8x1024xf32>, i32 -> vector<8x1024xf32>
    %c23 = arith.constant 23 : index
    %c0_43 = arith.constant 0 : index
    %136 = vector.load %arg2[%c23, %c0_43] : memref<26x1024xf32, #tpu.memory_space<vmem>>, vector<1x1024xf32>
    %137 = vector.broadcast %136 : vector<1x1024xf32> to vector<8x1024xf32>
    %138 = arith.mulf %135, %137 : vector<8x1024xf32>
    %139 = tpu.concatenate %134, %138 in 0 : vector<8x1024xf32>, vector<8x1024xf32> -> vector<16x1024xf32>
    %140 = arith.truncf %139 : vector<16x1024xf32> to vector<16x1024xbf16>
    %c176 = arith.constant 176 : index
    %c0_44 = arith.constant 0 : index
    %141 = vector.load %arg11[%c176, %c0_44] : memref<208x1024xbf16, #tpu.memory_space<vmem>>, vector<16x1024xbf16>
    tpu.vector_store %arg11[%c176, %c0_44], %140 {strides = array<i32>} : memref<208x1024xbf16, #tpu.memory_space<vmem>>, vector<16x1024xbf16>,
    %c952_i32 = arith.constant 952 : i32
    %142 = tpu.dynamic_rotate %8 by %c952_i32 dim 1 : vector<8x1024xf32>, i32 -> vector<8x1024xf32>
    %c24 = arith.constant 24 : index
    %c0_45 = arith.constant 0 : index
    %143 = vector.load %arg2[%c24, %c0_45] : memref<26x1024xf32, #tpu.memory_space<vmem>>, vector<1x1024xf32>
    %144 = vector.broadcast %143 : vector<1x1024xf32> to vector<8x1024xf32>
    %145 = arith.mulf %142, %144 : vector<8x1024xf32>
    %c951_i32 = arith.constant 951 : i32
    %146 = tpu.dynamic_rotate %8 by %c951_i32 dim 1 : vector<8x1024xf32>, i32 -> vector<8x1024xf32>
    %c25 = arith.constant 25 : index
    %c0_46 = arith.constant 0 : index
    %147 = vector.load %arg2[%c25, %c0_46] : memref<26x1024xf32, #tpu.memory_space<vmem>>, vector<1x1024xf32>
    %148 = vector.broadcast %147 : vector<1x1024xf32> to vector<8x1024xf32>
    %149 = arith.mulf %146, %148 : vector<8x1024xf32>
    %150 = tpu.concatenate %145, %149 in 0 : vector<8x1024xf32>, vector<8x1024xf32> -> vector<16x1024xf32>
    %151 = arith.truncf %150 : vector<16x1024xf32> to vector<16x1024xbf16>
    %c192 = arith.constant 192 : index
    %c0_47 = arith.constant 0 : index
    %152 = vector.load %arg11[%c192, %c0_47] : memref<208x1024xbf16, #tpu.memory_space<vmem>>, vector<16x1024xbf16>
    tpu.vector_store %arg11[%c192, %c0_47], %151 {strides = array<i32>} : memref<208x1024xbf16, #tpu.memory_space<vmem>>, vector<16x1024xbf16>,
    %153 = arith.truncf %8 : vector<8x1024xf32> to vector<8x1024xbf16>
    %c0_48 = arith.constant 0 : index
    %c0_49 = arith.constant 0 : index
    %154 = vector.load %arg5[%c0_48, %c0_49] : memref<8x208xbf16, #tpu.memory_space<vmem>>, vector<8x208xbf16>
    %c0_50 = arith.constant 0 : index
    %c0_51 = arith.constant 0 : index
    %155 = vector.load %arg11[%c0_50, %c0_51] : memref<208x1024xbf16, #tpu.memory_space<vmem>>, vector<208x1024xbf16>
    %cst_52 = arith.constant dense<0.000000e+00> : vector<8x1024xf32>
    %156 = tpu.matmul %154, %155, %cst_52 {dimension_numbers = #tpu.dot_dimension_numbers<[1], [0], [0], [1], [0, 0, 1, 1], [], []>} : vector<8x208xbf16>, vector<208x1024xbf16>, vector<8x1024xf32> -> vector<8x1024xf32>
    %c0_53 = arith.constant 0 : index
    %c0_54 = arith.constant 0 : index
    %157 = vector.load %arg6[%c0_53, %c0_54] : memref<8x8xbf16, #tpu.memory_space<vmem>>, vector<8x8xbf16>
    %cst_55 = arith.constant dense<0.000000e+00> : vector<8x1024xf32>
    %158 = tpu.matmul %157, %153, %cst_55 {dimension_numbers = #tpu.dot_dimension_numbers<[1], [0], [0], [1], [0, 0, 1, 1], [], []>} : vector<8x8xbf16>, vector<8x1024xbf16>, vector<8x1024xf32> -> vector<8x1024xf32>
    %159 = arith.addf %156, %158 : vector<8x1024xf32>
    %c0_56 = arith.constant 0 : index
    %c0_57 = arith.constant 0 : index
    %160 = vector.load %arg7[%c0_56, %c0_57] : memref<8x1xf32, #tpu.memory_space<vmem>>, vector<8x1xf32>
    %161 = vector.broadcast %160 : vector<8x1xf32> to vector<8x1024xf32>
    %162 = arith.addf %159, %161 : vector<8x1024xf32>
    %c0_58 = arith.constant 0 : index
    %c0_59 = arith.constant 0 : index
    %163 = vector.load %arg8[%c0_58, %c0_59] : memref<8x8xbf16, #tpu.memory_space<vmem>>, vector<8x8xbf16>
    %164 = arith.truncf %162 : vector<8x1024xf32> to vector<8x1024xbf16>
    %cst_60 = arith.constant dense<0.000000e+00> : vector<8x1024xf32>
    %165 = tpu.matmul %163, %164, %cst_60 {dimension_numbers = #tpu.dot_dimension_numbers<[1], [0], [0], [1], [0, 0, 1, 1], [], []>} : vector<8x8xbf16>, vector<8x1024xbf16>, vector<8x1024xf32> -> vector<8x1024xf32>
    %c0_61 = arith.constant 0 : index
    %c0_62 = arith.constant 0 : index
    %166 = vector.load %arg9[%c0_61, %c0_62] : memref<8x1xf32, #tpu.memory_space<vmem>>, vector<8x1xf32>
    %167 = vector.broadcast %166 : vector<8x1xf32> to vector<8x1024xf32>
    %168 = arith.addf %165, %167 : vector<8x1024xf32>
    %169 = arith.addf %168, %9 : vector<8x1024xf32>
    %cst_63 = arith.constant 0.000000e+00 : f32
    %170 = vector.broadcast %cst_63 : f32 to vector<8x1024xf32>
    %171 = arith.maximumf %169, %170 : vector<8x1024xf32>
    %172 = vector.extract_strided_slice %171 {offsets = [0, 0], sizes = [8, 512], strides = [1, 1]} : vector<8x1024xf32> to vector<8x512xf32>
    %c0_64 = arith.constant 0 : index
    %c0_65 = arith.constant 0 : index
    %c0_66 = arith.constant 0 : index
    %173 = vector.load %arg10[%c0_64, %c0_65, %c0_66] : memref<2x8x512xf32, #tpu.memory_space<vmem>>, vector<1x8x512xf32>
    %174 = vector.shape_cast %173 : vector<1x8x512xf32> to vector<8x512xf32>
    %175 = vector.shape_cast %172 : vector<8x512xf32> to vector<1x8x512xf32>
    tpu.vector_store %arg10[%c0_64, %c0_65, %c0_66], %175 {strides = array<i32>} : memref<2x8x512xf32, #tpu.memory_space<vmem>>, vector<1x8x512xf32>,
    %176 = vector.extract_strided_slice %171 {offsets = [0, 512], sizes = [8, 512], strides = [1, 1]} : vector<8x1024xf32> to vector<8x512xf32>
    %c1_67 = arith.constant 1 : index
    %c0_68 = arith.constant 0 : index
    %c0_69 = arith.constant 0 : index
    %177 = vector.load %arg10[%c1_67, %c0_68, %c0_69] : memref<2x8x512xf32, #tpu.memory_space<vmem>>, vector<1x8x512xf32>
    %178 = vector.shape_cast %177 : vector<1x8x512xf32> to vector<8x512xf32>
    %179 = vector.shape_cast %176 : vector<8x512xf32> to vector<1x8x512xf32>
    tpu.vector_store %arg10[%c1_67, %c0_68, %c0_69], %179 {strides = array<i32>} : memref<2x8x512xf32, #tpu.memory_space<vmem>>, vector<1x8x512xf32>,
    return
  }
  func.func @transform_0(%arg0: i32) -> (i32, i32) {
    %c0_i32 = arith.constant 0 : i32
    %c0_i32_0 = arith.constant 0 : i32
    return %c0_i32, %arg0 : i32, i32
  }
  func.func @transform_1(%arg0: i32) -> (i32, i32) {
    %c0_i32 = arith.constant 0 : i32
    %c0_i32_0 = arith.constant 0 : i32
    %c0_i32_1 = arith.constant 0 : i32
    return %c0_i32, %c0_i32_0 : i32, i32
  }
  func.func @transform_2(%arg0: i32) -> (i32, i32) {
    %c0_i32 = arith.constant 0 : i32
    %c0_i32_0 = arith.constant 0 : i32
    %c0_i32_1 = arith.constant 0 : i32
    return %c0_i32, %c0_i32_0 : i32, i32
  }
  func.func @transform_3(%arg0: i32) -> (i32, i32) {
    %c0_i32 = arith.constant 0 : i32
    %c0_i32_0 = arith.constant 0 : i32
    %c0_i32_1 = arith.constant 0 : i32
    return %c0_i32, %c0_i32_0 : i32, i32
  }
  func.func @transform_4(%arg0: i32) -> (i32, i32) {
    %c0_i32 = arith.constant 0 : i32
    %c0_i32_0 = arith.constant 0 : i32
    %c0_i32_1 = arith.constant 0 : i32
    return %c0_i32, %c0_i32_0 : i32, i32
  }
  func.func @transform_5(%arg0: i32) -> (i32, i32) {
    %c0_i32 = arith.constant 0 : i32
    %c0_i32_0 = arith.constant 0 : i32
    %c0_i32_1 = arith.constant 0 : i32
    return %c0_i32, %c0_i32_0 : i32, i32
  }
  func.func @transform_6(%arg0: i32) -> (i32, i32) {
    %c0_i32 = arith.constant 0 : i32
    %c0_i32_0 = arith.constant 0 : i32
    %c0_i32_1 = arith.constant 0 : i32
    return %c0_i32, %c0_i32_0 : i32, i32
  }
  func.func @transform_7(%arg0: i32) -> (i32, i32) {
    %c0_i32 = arith.constant 0 : i32
    %c0_i32_0 = arith.constant 0 : i32
    %c0_i32_1 = arith.constant 0 : i32
    return %c0_i32, %c0_i32_0 : i32, i32
  }
  func.func @transform_8(%arg0: i32) -> (i32, i32) {
    %c0_i32 = arith.constant 0 : i32
    %c0_i32_0 = arith.constant 0 : i32
    %c0_i32_1 = arith.constant 0 : i32
    return %c0_i32, %c0_i32_0 : i32, i32
  }
  func.func @transform_9(%arg0: i32) -> (i32, i32, i32) {
    %c0_i32 = arith.constant 0 : i32
    %c0_i32_0 = arith.constant 0 : i32
    %c0_i32_1 = arith.constant 0 : i32
    return %arg0, %c0_i32, %c0_i32_0 : i32, i32, i32
  }
}

</mosaic_0001>

<llo_original>
// kernel: tpu_custom_call.1
$region0: #{tpu_custom_call.1}
  #allocation0 [shape = 'u32[]', space=smem, size = 0x4, offset = 0x4, fixed_abs, tag = 'smem constant byte address 0x4 - core index']
  #allocation1 [shape = 'u32[144,128]{1,0:T(1,128)}', space=vmem, size = 0x12000, scoped, tag = 'internal scratch']
  #allocation2 [shape = 'bf16[208,1024]{1,0:T(16,128)(2,1)}', space=vmem, size = 0x68000, scoped, tag = 'scratch operand']
  %s0 = inlined_call_operand.vmem [shape: bf16[4,1024], index: 0, kind: input, shape index: {}]
  %s1 = inlined_call_operand.hbm [shape: f32[26,1024], index: 1, kind: input, shape index: {}]
  %s2 = inlined_call_operand.vmem [shape: bf16[16,4], index: 2, kind: input, shape index: {}]
  %s3 = inlined_call_operand.vmem [shape: f32[16,1], index: 3, kind: input, shape index: {}]
  %s4 = inlined_call_operand.vmem [shape: bf16[8,208], index: 4, kind: input, shape index: {}]
  %s5 = inlined_call_operand.vmem [shape: bf16[8,8], index: 5, kind: input, shape index: {}]
  %s6 = inlined_call_operand.vmem [shape: f32[8,1], index: 6, kind: input, shape index: {}]
  %s7 = inlined_call_operand.vmem [shape: bf16[8,8], index: 7, kind: input, shape index: {}]
  %s8 = inlined_call_operand.vmem [shape: f32[8,1], index: 8, kind: input, shape index: {}]
  %s9 = inlined_call_operand.hbm [shape: f32[2,8,512], index: 9, kind: output, shape index: {}]
  %s10 = sld [smem:[#allocation0]]
  $region50: #{tpu_custom_call.1} parent=0
    _
  %s12 = ssub.s32 1, %s10
  %s13 = scalar_select 0, %s12, %s10
  $region1: #{tpu_custom_call.1} parent=0
    #allocation3 [shape = 'u8[131072]{0}', space=vmem, size = 0x20000, scoped, tag = 'input window, operand 1, single buffered']
    #allocation4 [shape = 's32[1]{0}', space=sflag, size = 0x4, scoped, tag = 'scoped memory for tpu_custom_call.1']
    #allocation5 [shape = 's32[1]{0}', space=sflag, size = 0x4, scoped, tag = 'scoped memory for tpu_custom_call.1']
    #allocation6 [shape = 'u8[32768]{0}', space=vmem, size = 0x8000, scoped, tag = 'output window, operand 0, single buffered']
    %14 = vsyncpa [#allocation4], 0
    %15 = vsyncpa [#allocation5], 0
    // Predicated region
    $region2: #{tpu_custom_call.1} parent=1 // pred_check
      _
    $region3: #{tpu_custom_call.1} parent=1 // pred_check_branch
      %17 = sbr.rel (0) target = $region5
    $region4: #{tpu_custom_call.1} parent=1 // pred_region
      _
    $region5: #{tpu_custom_call.1} parent=1 // pred_fallthru
      _
    // Predicated region
    $region6: #{tpu_custom_call.1} parent=1 // pred_check
      _
    $region7: #{tpu_custom_call.1} parent=1 // pred_check_branch
      %19 = sbr.rel (0) target = $region9
    $region8: #{tpu_custom_call.1} parent=1 // pred_region
      %s21 = ssub.s32 4096, 4096
      %22 = vsyncadd [#allocation4], %s21
      %s23 = sshll.u32 [#allocation3], 4
      %s24 = int_to_ptr.vmem [resolvable:$true] %s23
      %29 = dma.hbm_to_vmem [thread:$0]  %s1, 4096, %s24, [#allocation4], 1024, 1024, 64
    $region9: #{tpu_custom_call.1} parent=1 // pred_fallthru
      _
    // Predicated region
    $region10: #{tpu_custom_call.1} parent=1 // pred_check
      _
    $region11: #{tpu_custom_call.1} parent=1 // pred_check_branch
      %31 = sbr.rel (0) target = $region13
    $region12: #{tpu_custom_call.1} parent=1 // pred_region
      _
    $region13: #{tpu_custom_call.1} parent=1 // pred_fallthru
      _
    // Predicated region
    $region14: #{tpu_custom_call.1} parent=1 // pred_check
      _
    $region15: #{tpu_custom_call.1} parent=1 // pred_check_branch
      %33 = sbr.rel (0) target = $region17
    $region16: #{tpu_custom_call.1} parent=1 // pred_region
      _
    $region17: #{tpu_custom_call.1} parent=1 // pred_fallthru
      _
    // Predicated region
    $region18: #{tpu_custom_call.1} parent=1 // pred_check
      _
    $region19: #{tpu_custom_call.1} parent=1 // pred_check_branch
      %35 = sbr.rel (0) target = $region21
    $region20: #{tpu_custom_call.1} parent=1 // pred_region
      _
    $region21: #{tpu_custom_call.1} parent=1 // pred_fallthru
      _
    // Predicated region
    $region22: #{tpu_custom_call.1} parent=1 // pred_check
      _
    $region23: #{tpu_custom_call.1} parent=1 // pred_check_branch
      %37 = sbr.rel (0) target = $region25
    $region24: #{tpu_custom_call.1} parent=1 // pred_region
      _
    $region25: #{tpu_custom_call.1} parent=1 // pred_fallthru
      _
    // Predicated region
    $region26: #{tpu_custom_call.1} parent=1 // pred_check
      _
    $region27: #{tpu_custom_call.1} parent=1 // pred_check_branch
      %39 = sbr.rel (0) target = $region29
    $region28: #{tpu_custom_call.1} parent=1 // pred_region
      _
    $region29: #{tpu_custom_call.1} parent=1 // pred_fallthru
      _
    // Predicated region
    $region30: #{tpu_custom_call.1} parent=1 // pred_check
      _
    $region31: #{tpu_custom_call.1} parent=1 // pred_check_branch
      %41 = sbr.rel (0) target = $region33
    $region32: #{tpu_custom_call.1} parent=1 // pred_region
      _
    $region33: #{tpu_custom_call.1} parent=1 // pred_fallthru
      _
    // Predicated region
    $region34: #{tpu_custom_call.1} parent=1 // pred_check
      _
    $region35: #{tpu_custom_call.1} parent=1 // pred_check_branch
      %43 = sbr.rel (0) target = $region37
    $region36: #{tpu_custom_call.1} parent=1 // pred_region
      _
    $region37: #{tpu_custom_call.1} parent=1 // pred_fallthru
      _
    // Predicated region
    $region38: #{tpu_custom_call.1} parent=1 // pred_check
      _
    $region39: #{tpu_custom_call.1} parent=1 // pred_check_branch
      %45 = sbr.rel (0) target = $region41
    $region40: #{tpu_custom_call.1} parent=1 // pred_region
      %46 = dma.done [#allocation4], 4096
    $region41: #{tpu_custom_call.1} parent=1 // pred_fallthru
      _
    %v48 = vld [vmem:[%s0] sm:$0xff]
    %v49 = vld [vmem:[%s0 + $0x8] sm:$0xff]
    %v50 = vld [vmem:[%s2] sm:$0xf]
    %v51 = vld [vmem:[%s2 + $0x4] sm:$0xf]
    %v52 = vld [vmem:[%s3] sm:$0xff]
    %v53 = vld [vmem:[%s3 + $0x8] sm:$0xff]
    %55 = vset.pattern.permute.xlu0 0
    %56 = vperm.xlu0 %55, %v52
    %v57 = vpop.permute.xlu0 %56
    %60 = vset.pattern.permute.xlu0 0
    %61 = vperm.xlu0 %60, %v53
    %v62 = vpop.permute.xlu0 %61
    %v66 = vunpack.c.l.b16 %v50
    %v67 = vunpack.c.l.b16 %v51
    %v68 = vpack.c.b16 %v67, %v66
    %v71 = vcombine.high %v48, %v48
    %v73 = vunpack.c.l.s4 1983009808
    %v74 = vunpack.c.0.s8 %v73
    %v75 = vlaneseq
    %v76 = vshrl.u32 %v75, 7
    %v77 = vsub.s32 %v74, %v76
    %v78 = vrot.slane %v48, %v77
    %v80 = vunpack.c.l.s4 1983009808
    %v81 = vunpack.c.0.s8 %v80
    %v82 = vlaneseq
    %v83 = vshrl.u32 %v82, 7
    %v84 = vsub.s32 %v81, %v83
    %v85 = vrot.slane %v71, %v84
    %v86 = vcombine.high %v78, %v78
    %v87 = vcombine.high %v85, %v85
    %v88 = vcombine.high %v49, %v49
    %v90 = vunpack.c.l.s4 1983009808
    %v91 = vunpack.c.0.s8 %v90
    %v92 = vlaneseq
    %v93 = vshrl.u32 %v92, 7
    %v94 = vsub.s32 %v91, %v93
    %v95 = vrot.slane %v49, %v94
    %v97 = vunpack.c.l.s4 1983009808
    %v98 = vunpack.c.0.s8 %v97
    %v99 = vlaneseq
    %v100 = vshrl.u32 %v99, 7
    %v101 = vsub.s32 %v98, %v100
    %v102 = vrot.slane %v88, %v101
    %v103 = vcombine.high %v95, %v95
    %v104 = vcombine.high %v102, %v102
    %vm105 = vcmask 31744
    %v107 = vsel %vm105, %v68, 0
    %vm109 = vcmask 1041408
    %v111 = vsel %vm109, %v78, 0
    %v114 = vsel %vm109, %v86, 0
    %v117 = vsel %vm109, %v85, 0
    %v120 = vsel %vm109, %v87, 0
    %v123 = vsel %vm109, %v95, 0
    %v126 = vsel %vm109, %v103, 0
    %v129 = vsel %vm109, %v102, 0
    %v132 = vsel %vm109, %v104, 0
    %134 = vmatprep.subr.bf16.mxu0 %v114
    %135 = vmatpush1.bf16.msra.mxu0 %v111
    %136 = vmatprep.subr.bf16.mxu0 0
    %137 = vmatpush1.bf16.msra.mxu0 0
    %138 = vmatprep.subr.bf16.mxu0 0
    %139 = vmatpush1.bf16.msra.mxu0 0
    %140 = vmatprep.subr.bf16.mxu0 0
    %141 = vmatpush1.bf16.msra.mxu0 0
    %142 = vmatprep.subr.bf16.mxu0 0
    %143 = vmatpush1.bf16.msra.mxu0 0
    %144 = vmatprep.subr.bf16.mxu0 0
    %145 = vmatpush1.bf16.msra.mxu0 0
    %146 = vmatprep.subr.bf16.mxu0 0
    %147 = vmatpush1.bf16.msra.mxu0 0
    %148 = vmatprep.subr.bf16.mxu0 0
    %149 = vmatpush1.bf16.msra.mxu0 0
    %150 = vmatprep.subr.bf16.mxu0 0
    %151 = vmatpush1.bf16.msra.mxu0 0
    %152 = vmatprep.subr.bf16.mxu0 0
    %153 = vmatpush1.bf16.msra.mxu0 0
    %154 = vmatprep.subr.bf16.mxu0 0
    %155 = vmatpush1.bf16.msra.mxu0 0
    %156 = vmatprep.subr.bf16.mxu0 0
    %157 = vmatpush1.bf16.msra.mxu0 0
    %158 = vmatprep.subr.bf16.mxu0 0
    %159 = vmatpush1.bf16.msra.mxu0 0
    %160 = vmatprep.subr.bf16.mxu0 0
    %161 = vmatpush1.bf16.msra.mxu0 0
    %162 = vmatprep.subr.bf16.mxu0 0
    %163 = vmatpush1.bf16.msra.mxu0 0
    %164 = vmatprep.subr.bf16.mxu0 0
    %165 = vmatpush1.bf16.msra.mxu0 0
    %166 = vmatprep.mubr.bf16.mxu0 0
    %167 = vmatmul.mubr.bf16.gmra.mrb[0].mxu0 %v107
    %v168 = vpop.f32.mrb[0].mxu0
    %v169 = vadd.f32 %v57, %v168
    %v170 = vpop.f32.mrb[0].mxu0
    %v171 = vadd.f32 %v57, %v170
    %v172 = vpop.f32.mrb[0].mxu0
    %v173 = vadd.f32 %v62, %v172
    %v174 = vpop.f32.mrb[0].mxu0
    %v175 = vadd.f32 %v62, %v174
    %176 = vdwg.mxu0
    %177 = vmatprep.subr.bf16.mxu0 %v120
    %178 = vmatpush1.bf16.msra.mxu0 %v117
    %179 = vmatprep.subr.bf16.mxu0 0
    %180 = vmatpush1.bf16.msra.mxu0 0
    %181 = vmatprep.subr.bf16.mxu0 0
    %182 = vmatpush1.bf16.msra.mxu0 0
    %183 = vmatprep.subr.bf16.mxu0 0
    %184 = vmatpush1.bf16.msra.mxu0 0
    %185 = vmatprep.subr.bf16.mxu0 0
    %186 = vmatpush1.bf16.msra.mxu0 0
    %187 = vmatprep.subr.bf16.mxu0 0
    %188 = vmatpush1.bf16.msra.mxu0 0
    %189 = vmatprep.subr.bf16.mxu0 0
    %190 = vmatpush1.bf16.msra.mxu0 0
    %191 = vmatprep.subr.bf16.mxu0 0
    %192 = vmatpush1.bf16.msra.mxu0 0
    %193 = vmatprep.subr.bf16.mxu0 0
    %194 = vmatpush1.bf16.msra.mxu0 0
    %195 = vmatprep.subr.bf16.mxu0 0
    %196 = vmatpush1.bf16.msra.mxu0 0
    %197 = vmatprep.subr.bf16.mxu0 0
    %198 = vmatpush1.bf16.msra.mxu0 0
    %199 = vmatprep.subr.bf16.mxu0 0
    %200 = vmatpush1.bf16.msra.mxu0 0
    %201 = vmatprep.subr.bf16.mxu0 0
    %202 = vmatpush1.bf16.msra.mxu0 0
    %203 = vmatprep.subr.bf16.mxu0 0
    %204 = vmatpush1.bf16.msra.mxu0 0
    %205 = vmatprep.subr.bf16.mxu0 0
    %206 = vmatpush1.bf16.msra.mxu0 0
    %207 = vmatprep.subr.bf16.mxu0 0
    %208 = vmatpush1.bf16.msra.mxu0 0
    %209 = vmatprep.mubr.bf16.mxu0 0
    %210 = vmatmul.mubr.bf16.gmra.mrb[0].mxu0 %v107
    %v211 = vpop.f32.mrb[0].mxu0
    %v212 = vadd.f32 %v57, %v211
    %v213 = vpop.f32.mrb[0].mxu0
    %v214 = vadd.f32 %v57, %v213
    %v215 = vpop.f32.mrb[0].mxu0
    %v216 = vadd.f32 %v62, %v215
    %v217 = vpop.f32.mrb[0].mxu0
    %v218 = vadd.f32 %v62, %v217
    %219 = vdwg.mxu0
    %220 = vmatprep.subr.bf16.mxu0 %v126
    %221 = vmatpush1.bf16.msra.mxu0 %v123
    %222 = vmatprep.subr.bf16.mxu0 0
    %223 = vmatpush1.bf16.msra.mxu0 0
    %224 = vmatprep.subr.bf16.mxu0 0
    %225 = vmatpush1.bf16.msra.mxu0 0
    %226 = vmatprep.subr.bf16.mxu0 0
    %227 = vmatpush1.bf16.msra.mxu0 0
    %228 = vmatprep.subr.bf16.mxu0 0
    %229 = vmatpush1.bf16.msra.mxu0 0
    %230 = vmatprep.subr.bf16.mxu0 0
    %231 = vmatpush1.bf16.msra.mxu0 0
    %232 = vmatprep.subr.bf16.mxu0 0
    %233 = vmatpush1.bf16.msra.mxu0 0
    %234 = vmatprep.subr.bf16.mxu0 0
    %235 = vmatpush1.bf16.msra.mxu0 0
    %236 = vmatprep.subr.bf16.mxu0 0
    %237 = vmatpush1.bf16.msra.mxu0 0
    %238 = vmatprep.subr.bf16.mxu0 0
    %239 = vmatpush1.bf16.msra.mxu0 0
    %240 = vmatprep.subr.bf16.mxu0 0
    %241 = vmatpush1.bf16.msra.mxu0 0
    %242 = vmatprep.subr.bf16.mxu0 0
    %243 = vmatpush1.bf16.msra.mxu0 0
    %244 = vmatprep.subr.bf16.mxu0 0
    %245 = vmatpush1.bf16.msra.mxu0 0
    %246 = vmatprep.subr.bf16.mxu0 0
    %247 = vmatpush1.bf16.msra.mxu0 0
    %248 = vmatprep.subr.bf16.mxu0 0
    %249 = vmatpush1.bf16.msra.mxu0 0
    %250 = vmatprep.subr.bf16.mxu0 0
    %251 = vmatpush1.bf16.msra.mxu0 0
    %252 = vmatprep.mubr.bf16.mxu0 0
    %253 = vmatmul.mubr.bf16.gmra.mrb[0].mxu0 %v107
    %v254 = vpop.f32.mrb[0].mxu0
    %v255 = vadd.f32 %v57, %v254
    %v256 = vpop.f32.mrb[0].mxu0
    %v257 = vadd.f32 %v57, %v256
    %v258 = vpop.f32.mrb[0].mxu0
    %v259 = vadd.f32 %v62, %v258
    %v260 = vpop.f32.mrb[0].mxu0
    %v261 = vadd.f32 %v62, %v260
    %262 = vdwg.mxu0
    %263 = vmatprep.subr.bf16.mxu0 %v132
    %264 = vmatpush1.bf16.msra.mxu0 %v129
    %265 = vmatprep.subr.bf16.mxu0 0
    %266 = vmatpush1.bf16.msra.mxu0 0
    %267 = vmatprep.subr.bf16.mxu0 0
    %268 = vmatpush1.bf16.msra.mxu0 0
    %269 = vmatprep.subr.bf16.mxu0 0
    %270 = vmatpush1.bf16.msra.mxu0 0
    %271 = vmatprep.subr.bf16.mxu0 0
    %272 = vmatpush1.bf16.msra.mxu0 0
    %273 = vmatprep.subr.bf16.mxu0 0
    %274 = vmatpush1.bf16.msra.mxu0 0
    %275 = vmatprep.subr.bf16.mxu0 0
    %276 = vmatpush1.bf16.msra.mxu0 0
    %277 = vmatprep.subr.bf16.mxu0 0
    %278 = vmatpush1.bf16.msra.mxu0 0
    %279 = vmatprep.subr.bf16.mxu0 0
    %280 = vmatpush1.bf16.msra.mxu0 0
    %281 = vmatprep.subr.bf16.mxu0 0
    %282 = vmatpush1.bf16.msra.mxu0 0
    %283 = vmatprep.subr.bf16.mxu0 0
    %284 = vmatpush1.bf16.msra.mxu0 0
    %285 = vmatprep.subr.bf16.mxu0 0
    %286 = vmatpush1.bf16.msra.mxu0 0
    %287 = vmatprep.subr.bf16.mxu0 0
    %288 = vmatpush1.bf16.msra.mxu0 0
    %289 = vmatprep.subr.bf16.mxu0 0
    %290 = vmatpush1.bf16.msra.mxu0 0
    %291 = vmatprep.subr.bf16.mxu0 0
    %292 = vmatpush1.bf16.msra.mxu0 0
    %293 = vmatprep.subr.bf16.mxu0 0
    %294 = vmatpush1.bf16.msra.mxu0 0
    %295 = vmatprep.mubr.bf16.mxu0 0
    %296 = vmatmul.mubr.bf16.gmra.mrb[0].mxu0 %v107
    %v297 = vpop.f32.mrb[0].mxu0
    %v298 = vadd.f32 %v57, %v297
    %v299 = vpop.f32.mrb[0].mxu0
    %v300 = vadd.f32 %v57, %v299
    %v301 = vpop.f32.mrb[0].mxu0
    %v302 = vadd.f32 %v62, %v301
    %v303 = vpop.f32.mrb[0].mxu0
    %v304 = vadd.f32 %v62, %v303
    %305 = vdwg.mxu0
    %v306 = vmax.f32 %v169, 0.0
    %v307 = vmax.f32 %v171, 0.0
    %v308 = vmax.f32 %v212, 0.0
    %v309 = vmax.f32 %v214, 0.0
    %v310 = vmax.f32 %v255, 0.0
    %v311 = vmax.f32 %v257, 0.0
    %v312 = vmax.f32 %v298, 0.0
    %v313 = vmax.f32 %v300, 0.0
    %314 = vrot.lane.b32.xlu0 %v306, 73
    %v315 = vpop.permute.xlu0 %314
    %316 = vrot.lane.b32.xlu0 %v307, 73
    %v317 = vpop.permute.xlu0 %316
    %318 = vrot.lane.b32.xlu0 %v308, 73
    %v319 = vpop.permute.xlu0 %318
    %320 = vrot.lane.b32.xlu0 %v309, 73
    %v321 = vpop.permute.xlu0 %320
    %322 = vrot.lane.b32.xlu0 %v310, 73
    %v323 = vpop.permute.xlu0 %322
    %324 = vrot.lane.b32.xlu0 %v311, 73
    %v325 = vpop.permute.xlu0 %324
    %326 = vrot.lane.b32.xlu0 %v312, 73
    %v327 = vpop.permute.xlu0 %326
    %328 = vrot.lane.b32.xlu0 %v313, 73
    %v329 = vpop.permute.xlu0 %328
    %v330 = vlaneseq
    %v331 = vand.u32 %v330, 127
    %vm332 = vcmp.lt.s32.totalorder %v331, 73
    %v333 = vsel %vm332, %v327, %v329
    %v334 = vsel %vm332, %v325, %v327
    %v335 = vsel %vm332, %v323, %v325
    %v336 = vsel %vm332, %v321, %v323
    %v337 = vsel %vm332, %v319, %v321
    %v338 = vsel %vm332, %v317, %v319
    %v339 = vsel %vm332, %v315, %v317
    %v340 = vsel %vm332, %v329, %v315
    %v341 = vld [vmem:[#allocation3] ss:$8 sm:$0xf]
    %v342 = vld [vmem:[#allocation3] ss:$8 sm:$0xf0]
    %v343 = vor.u32 %v341, %v342
    %v345 = vlaneseq
    %v346 = vshrl.u32 %v345, 7
    %v347 = vsub.s32 0, %v346
    %v348 = vrot.slane %v343, %v347
    %v349 = vlaneseq
    %v350 = vshrl.u32 %v349, 7
    %v351 = vsub.s32 1, %v350
    %v352 = vrot.slane %v343, %v351
    %v353 = vlaneseq
    %v354 = vshrl.u32 %v353, 7
    %v355 = vsub.s32 2, %v354
    %v356 = vrot.slane %v343, %v355
    %v357 = vlaneseq
    %v358 = vshrl.u32 %v357, 7
    %v359 = vsub.s32 3, %v358
    %v360 = vrot.slane %v343, %v359
    %v361 = vlaneseq
    %v362 = vshrl.u32 %v361, 7
    %v363 = vsub.s32 4, %v362
    %v364 = vrot.slane %v343, %v363
    %v365 = vlaneseq
    %v366 = vshrl.u32 %v365, 7
    %v367 = vsub.s32 5, %v366
    %v368 = vrot.slane %v343, %v367
    %v369 = vlaneseq
    %v370 = vshrl.u32 %v369, 7
    %v371 = vsub.s32 6, %v370
    %v372 = vrot.slane %v343, %v371
    %v373 = vlaneseq
    %v374 = vshrl.u32 %v373, 7
    %v375 = vsub.s32 7, %v374
    %v376 = vrot.slane %v343, %v375
    %v385 = vmul.f32 %v340, %v348
    %v386 = vmul.f32 %v339, %v352
    %v387 = vmul.f32 %v338, %v356
    %v388 = vmul.f32 %v337, %v360
    %v389 = vmul.f32 %v336, %v364
    %v390 = vmul.f32 %v335, %v368
    %v391 = vmul.f32 %v334, %v372
    %v392 = vmul.f32 %v333, %v376
    %393 = vrot.lane.b32.xlu0 %v306, 72
    %v394 = vpop.permute.xlu0 %393
    %395 = vrot.lane.b32.xlu0 %v307, 72
    %v396 = vpop.permute.xlu0 %395
    %397 = vrot.lane.b32.xlu0 %v308, 72
    %v398 = vpop.permute.xlu0 %397
    %399 = vrot.lane.b32.xlu0 %v309, 72
    %v400 = vpop.permute.xlu0 %399
    %401 = vrot.lane.b32.xlu0 %v310, 72
    %v402 = vpop.permute.xlu0 %401
    %403 = vrot.lane.b32.xlu0 %v311, 72
    %v404 = vpop.permute.xlu0 %403
    %405 = vrot.lane.b32.xlu0 %v312, 72
    %v406 = vpop.permute.xlu0 %405
    %407 = vrot.lane.b32.xlu0 %v313, 72
    %v408 = vpop.permute.xlu0 %407
    %vm409 = vcmp.lt.s32.totalorder %v331, 72
    %v410 = vsel %vm409, %v406, %v408
    %v411 = vsel %vm409, %v404, %v406
    %v412 = vsel %vm409, %v402, %v404
    %v413 = vsel %vm409, %v400, %v402
    %v414 = vsel %vm409, %v398, %v400
    %v415 = vsel %vm409, %v396, %v398
    %v416 = vsel %vm409, %v394, %v396
    %v417 = vsel %vm409, %v408, %v394
    %s418 = scalar_lea.vmem [#allocation3], 1
    %v419 = vld [vmem:[%s418] ss:$8 sm:$0xf]
    %v420 = vld [vmem:[%s418] ss:$8 sm:$0xf0]
    %v421 = vor.u32 %v419, %v420
    %v423 = vlaneseq
    %v424 = vshrl.u32 %v423, 7
    %v425 = vsub.s32 0, %v424
    %v426 = vrot.slane %v421, %v425
    %v427 = vlaneseq
    %v428 = vshrl.u32 %v427, 7
    %v429 = vsub.s32 1, %v428
    %v430 = vrot.slane %v421, %v429
    %v431 = vlaneseq
    %v432 = vshrl.u32 %v431, 7
    %v433 = vsub.s32 2, %v432
    %v434 = vrot.slane %v421, %v433
    %v435 = vlaneseq
    %v436 = vshrl.u32 %v435, 7
    %v437 = vsub.s32 3, %v436
    %v438 = vrot.slane %v421, %v437
    %v439 = vlaneseq
    %v440 = vshrl.u32 %v439, 7
    %v441 = vsub.s32 4, %v440
    %v442 = vrot.slane %v421, %v441
    %v443 = vlaneseq
    %v444 = vshrl.u32 %v443, 7
    %v445 = vsub.s32 5, %v444
    %v446 = vrot.slane %v421, %v445
    %v447 = vlaneseq
    %v448 = vshrl.u32 %v447, 7
    %v449 = vsub.s32 6, %v448
    %v450 = vrot.slane %v421, %v449
    %v451 = vlaneseq
    %v452 = vshrl.u32 %v451, 7
    %v453 = vsub.s32 7, %v452
    %v454 = vrot.slane %v421, %v453
    %v463 = vmul.f32 %v417, %v426
    %v464 = vmul.f32 %v416, %v430
    %v465 = vmul.f32 %v415, %v434
    %v466 = vmul.f32 %v414, %v438
    %v467 = vmul.f32 %v413, %v442
    %v468 = vmul.f32 %v412, %v446
    %v469 = vmul.f32 %v411, %v450
    %v470 = vmul.f32 %v410, %v454
    %v471 = vpack.c.bf16 %v463, %v385
    %v472 = vpack.c.bf16 %v464, %v386
    %v473 = vpack.c.bf16 %v465, %v387
    %v474 = vpack.c.bf16 %v466, %v388
    %v475 = vpack.c.bf16 %v467, %v389
    %v476 = vpack.c.bf16 %v468, %v390
    %v477 = vpack.c.bf16 %v469, %v391
    %v478 = vpack.c.bf16 %v470, %v392
    %479 = vst [vmem:[#allocation2] sm:$0xff] %v471
    %480 = vst [vmem:[#allocation2 + $0x8] sm:$0xff] %v472
    %481 = vst [vmem:[#allocation2 + $0x10] sm:$0xff] %v473
    %482 = vst [vmem:[#allocation2 + $0x18] sm:$0xff] %v474
    %483 = vst [vmem:[#allocation2 + $0x20] sm:$0xff] %v475
    %484 = vst [vmem:[#allocation2 + $0x28] sm:$0xff] %v476
    %485 = vst [vmem:[#allocation2 + $0x30] sm:$0xff] %v477
    %486 = vst [vmem:[#allocation2 + $0x38] sm:$0xff] %v478
    %487 = vrot.lane.b32.xlu0 %v306, 71
    %v488 = vpop.permute.xlu0 %487
    %489 = vrot.lane.b32.xlu0 %v307, 71
    %v490 = vpop.permute.xlu0 %489
    %491 = vrot.lane.b32.xlu0 %v308, 71
    %v492 = vpop.permute.xlu0 %491
    %493 = vrot.lane.b32.xlu0 %v309, 71
    %v494 = vpop.permute.xlu0 %493
    %495 = vrot.lane.b32.xlu0 %v310, 71
    %v496 = vpop.permute.xlu0 %495
    %497 = vrot.lane.b32.xlu0 %v311, 71
    %v498 = vpop.permute.xlu0 %497
    %499 = vrot.lane.b32.xlu0 %v312, 71
    %v500 = vpop.permute.xlu0 %499
    %501 = vrot.lane.b32.xlu0 %v313, 71
    %v502 = vpop.permute.xlu0 %501
    %vm503 = vcmp.lt.s32.totalorder %v331, 71
    %v504 = vsel %vm503, %v500, %v502
    %v505 = vsel %vm503, %v498, %v500
    %v506 = vsel %vm503, %v496, %v498
    %v507 = vsel %vm503, %v494, %v496
    %v508 = vsel %vm503, %v492, %v494
    %v509 = vsel %vm503, %v490, %v492
    %v510 = vsel %vm503, %v488, %v490
    %v511 = vsel %vm503, %v502, %v488
    %s512 = scalar_lea.vmem [#allocation3], 2
    %v513 = vld [vmem:[%s512] ss:$8 sm:$0xf]
    %v514 = vld [vmem:[%s512] ss:$8 sm:$0xf0]
    %v515 = vor.u32 %v513, %v514
    %v517 = vlaneseq
    %v518 = vshrl.u32 %v517, 7
    %v519 = vsub.s32 0, %v518
    %v520 = vrot.slane %v515, %v519
    %v521 = vlaneseq
    %v522 = vshrl.u32 %v521, 7
    %v523 = vsub.s32 1, %v522
    %v524 = vrot.slane %v515, %v523
    %v525 = vlaneseq
    %v526 = vshrl.u32 %v525, 7
    %v527 = vsub.s32 2, %v526
    %v528 = vrot.slane %v515, %v527
    %v529 = vlaneseq
    %v530 = vshrl.u32 %v529, 7
    %v531 = vsub.s32 3, %v530
    %v532 = vrot.slane %v515, %v531
    %v533 = vlaneseq
    %v534 = vshrl.u32 %v533, 7
    %v535 = vsub.s32 4, %v534
    %v536 = vrot.slane %v515, %v535
    %v537 = vlaneseq
    %v538 = vshrl.u32 %v537, 7
    %v539 = vsub.s32 5, %v538
    %v540 = vrot.slane %v515, %v539
    %v541 = vlaneseq
    %v542 = vshrl.u32 %v541, 7
    %v543 = vsub.s32 6, %v542
    %v544 = vrot.slane %v515, %v543
    %v545 = vlaneseq
    %v546 = vshrl.u32 %v545, 7
    %v547 = vsub.s32 7, %v546
    %v548 = vrot.slane %v515, %v547
    %v557 = vmul.f32 %v511, %v520
    %v558 = vmul.f32 %v510, %v524
    %v559 = vmul.f32 %v509, %v528
    %v560 = vmul.f32 %v508, %v532
    %v561 = vmul.f32 %v507, %v536
    %v562 = vmul.f32 %v506, %v540
    %v563 = vmul.f32 %v505, %v544
    %v564 = vmul.f32 %v504, %v548
    %565 = vrot.lane.b32.xlu0 %v306, 65
    %v566 = vpop.permute.xlu0 %565
    %567 = vrot.lane.b32.xlu0 %v307, 65
    %v568 = vpop.permute.xlu0 %567
    %569 = vrot.lane.b32.xlu0 %v308, 65
    %v570 = vpop.permute.xlu0 %569
    %571 = vrot.lane.b32.xlu0 %v309, 65
    %v572 = vpop.permute.xlu0 %571
    %573 = vrot.lane.b32.xlu0 %v310, 65
    %v574 = vpop.permute.xlu0 %573
    %575 = vrot.lane.b32.xlu0 %v311, 65
    %v576 = vpop.permute.xlu0 %575
    %577 = vrot.lane.b32.xlu0 %v312, 65
    %v578 = vpop.permute.xlu0 %577
    %579 = vrot.lane.b32.xlu0 %v313, 65
    %v580 = vpop.permute.xlu0 %579
    %vm581 = vcmp.lt.s32.totalorder %v331, 65
    %v582 = vsel %vm581, %v578, %v580
    %v583 = vsel %vm581, %v576, %v578
    %v584 = vsel %vm581, %v574, %v576
    %v585 = vsel %vm581, %v572, %v574
    %v586 = vsel %vm581, %v570, %v572
    %v587 = vsel %vm581, %v568, %v570
    %v588 = vsel %vm581, %v566, %v568
    %v589 = vsel %vm581, %v580, %v566
    %s590 = scalar_lea.vmem [#allocation3], 3
    %v591 = vld [vmem:[%s590] ss:$8 sm:$0xf]
    %v592 = vld [vmem:[%s590] ss:$8 sm:$0xf0]
    %v593 = vor.u32 %v591, %v592
    %v595 = vlaneseq
    %v596 = vshrl.u32 %v595, 7
    %v597 = vsub.s32 0, %v596
    %v598 = vrot.slane %v593, %v597
    %v599 = vlaneseq
    %v600 = vshrl.u32 %v599, 7
    %v601 = vsub.s32 1, %v600
    %v602 = vrot.slane %v593, %v601
    %v603 = vlaneseq
    %v604 = vshrl.u32 %v603, 7
    %v605 = vsub.s32 2, %v604
    %v606 = vrot.slane %v593, %v605
    %v607 = vlaneseq
    %v608 = vshrl.u32 %v607, 7
    %v609 = vsub.s32 3, %v608
    %v610 = vrot.slane %v593, %v609
    %v611 = vlaneseq
    %v612 = vshrl.u32 %v611, 7
    %v613 = vsub.s32 4, %v612
    %v614 = vrot.slane %v593, %v613
    %v615 = vlaneseq
    %v616 = vshrl.u32 %v615, 7
    %v617 = vsub.s32 5, %v616
    %v618 = vrot.slane %v593, %v617
    %v619 = vlaneseq
    %v620 = vshrl.u32 %v619, 7
    %v621 = vsub.s32 6, %v620
    %v622 = vrot.slane %v593, %v621
    %v623 = vlaneseq
    %v624 = vshrl.u32 %v623, 7
    %v625 = vsub.s32 7, %v624
    %v626 = vrot.slane %v593, %v625
    %v635 = vmul.f32 %v589, %v598
    %v636 = vmul.f32 %v588, %v602
    %v637 = vmul.f32 %v587, %v606
    %v638 = vmul.f32 %v586, %v610
    %v639 = vmul.f32 %v585, %v614
    %v640 = vmul.f32 %v584, %v618
    %v641 = vmul.f32 %v583, %v622
    %v642 = vmul.f32 %v582, %v626
    %v643 = vpack.c.bf16 %v635, %v557
    %v644 = vpack.c.bf16 %v636, %v558
    %v645 = vpack.c.bf16 %v637, %v559
    %v646 = vpack.c.bf16 %v638, %v560
    %v647 = vpack.c.bf16 %v639, %v561
    %v648 = vpack.c.bf16 %v640, %v562
    %v649 = vpack.c.bf16 %v641, %v563
    %v650 = vpack.c.bf16 %v642, %v564
    %651 = vst [vmem:[#allocation2 + $0x40] sm:$0xff] %v643
    %652 = vst [vmem:[#allocation2 + $0x48] sm:$0xff] %v644
    %653 = vst [vmem:[#allocation2 + $0x50] sm:$0xff] %v645
    %654 = vst [vmem:[#allocation2 + $0x58] sm:$0xff] %v646
    %655 = vst [vmem:[#allocation2 + $0x60] sm:$0xff] %v647
    %656 = vst [vmem:[#allocation2 + $0x68] sm:$0xff] %v648
    %657 = vst [vmem:[#allocation2 + $0x70] sm:$0xff] %v649
    %658 = vst [vmem:[#allocation2 + $0x78] sm:$0xff] %v650
    %659 = vrot.lane.b32.xlu0 %v306, 64
    %v660 = vpop.permute.xlu0 %659
    %661 = vrot.lane.b32.xlu0 %v307, 64
    %v662 = vpop.permute.xlu0 %661
    %663 = vrot.lane.b32.xlu0 %v308, 64
    %v664 = vpop.permute.xlu0 %663
    %665 = vrot.lane.b32.xlu0 %v309, 64
    %v666 = vpop.permute.xlu0 %665
    %667 = vrot.lane.b32.xlu0 %v310, 64
    %v668 = vpop.permute.xlu0 %667
    %669 = vrot.lane.b32.xlu0 %v311, 64
    %v670 = vpop.permute.xlu0 %669
    %671 = vrot.lane.b32.xlu0 %v312, 64
    %v672 = vpop.permute.xlu0 %671
    %673 = vrot.lane.b32.xlu0 %v313, 64
    %v674 = vpop.permute.xlu0 %673
    %vm675 = vcmp.lt.s32.totalorder %v331, 64
    %v676 = vsel %vm675, %v672, %v674
    %v677 = vsel %vm675, %v670, %v672
    %v678 = vsel %vm675, %v668, %v670
    %v679 = vsel %vm675, %v666, %v668
    %v680 = vsel %vm675, %v664, %v666
    %v681 = vsel %vm675, %v662, %v664
    %v682 = vsel %vm675, %v660, %v662
    %v683 = vsel %vm675, %v674, %v660
    %s684 = scalar_lea.vmem [#allocation3], 4
    %v685 = vld [vmem:[%s684] ss:$8 sm:$0xf]
    %v686 = vld [vmem:[%s684] ss:$8 sm:$0xf0]
    %v687 = vor.u32 %v685, %v686
    %v689 = vlaneseq
    %v690 = vshrl.u32 %v689, 7
    %v691 = vsub.s32 0, %v690
    %v692 = vrot.slane %v687, %v691
    %v693 = vlaneseq
    %v694 = vshrl.u32 %v693, 7
    %v695 = vsub.s32 1, %v694
    %v696 = vrot.slane %v687, %v695
    %v697 = vlaneseq
    %v698 = vshrl.u32 %v697, 7
    %v699 = vsub.s32 2, %v698
    %v700 = vrot.slane %v687, %v699
    %v701 = vlaneseq
    %v702 = vshrl.u32 %v701, 7
    %v703 = vsub.s32 3, %v702
    %v704 = vrot.slane %v687, %v703
    %v705 = vlaneseq
    %v706 = vshrl.u32 %v705, 7
    %v707 = vsub.s32 4, %v706
    %v708 = vrot.slane %v687, %v707
    %v709 = vlaneseq
    %v710 = vshrl.u32 %v709, 7
    %v711 = vsub.s32 5, %v710
    %v712 = vrot.slane %v687, %v711
    %v713 = vlaneseq
    %v714 = vshrl.u32 %v713, 7
    %v715 = vsub.s32 6, %v714
    %v716 = vrot.slane %v687, %v715
    %v717 = vlaneseq
    %v718 = vshrl.u32 %v717, 7
    %v719 = vsub.s32 7, %v718
    %v720 = vrot.slane %v687, %v719
    %v729 = vmul.f32 %v683, %v692
    %v730 = vmul.f32 %v682, %v696
    %v731 = vmul.f32 %v681, %v700
    %v732 = vmul.f32 %v680, %v704
    %v733 = vmul.f32 %v679, %v708
    %v734 = vmul.f32 %v678, %v712
    %v735 = vmul.f32 %v677, %v716
    %v736 = vmul.f32 %v676, %v720
    %737 = vrot.lane.b32.xlu0 %v306, 63
    %v738 = vpop.permute.xlu0 %737
    %739 = vrot.lane.b32.xlu0 %v307, 63
    %v740 = vpop.permute.xlu0 %739
    %741 = vrot.lane.b32.xlu0 %v308, 63
    %v742 = vpop.permute.xlu0 %741
    %743 = vrot.lane.b32.xlu0 %v309, 63
    %v744 = vpop.permute.xlu0 %743
    %745 = vrot.lane.b32.xlu0 %v310, 63
    %v746 = vpop.permute.xlu0 %745
    %747 = vrot.lane.b32.xlu0 %v311, 63
    %v748 = vpop.permute.xlu0 %747
    %749 = vrot.lane.b32.xlu0 %v312, 63
    %v750 = vpop.permute.xlu0 %749
    %751 = vrot.lane.b32.xlu0 %v313, 63
    %v752 = vpop.permute.xlu0 %751
    %vm753 = vcmp.lt.s32.totalorder %v331, 63
    %v754 = vsel %vm753, %v750, %v752
    %v755 = vsel %vm753, %v748, %v750
    %v756 = vsel %vm753, %v746, %v748
    %v757 = vsel %vm753, %v744, %v746
    %v758 = vsel %vm753, %v742, %v744
    %v759 = vsel %vm753, %v740, %v742
    %v760 = vsel %vm753, %v738, %v740
    %v761 = vsel %vm753, %v752, %v738
    %s762 = scalar_lea.vmem [#allocation3], 5
    %v763 = vld [vmem:[%s762] ss:$8 sm:$0xf]
    %v764 = vld [vmem:[%s762] ss:$8 sm:$0xf0]
    %v765 = vor.u32 %v763, %v764
    %v767 = vlaneseq
    %v768 = vshrl.u32 %v767, 7
    %v769 = vsub.s32 0, %v768
    %v770 = vrot.slane %v765, %v769
    %v771 = vlaneseq
    %v772 = vshrl.u32 %v771, 7
    %v773 = vsub.s32 1, %v772
    %v774 = vrot.slane %v765, %v773
    %v775 = vlaneseq
    %v776 = vshrl.u32 %v775, 7
    %v777 = vsub.s32 2, %v776
    %v778 = vrot.slane %v765, %v777
    %v779 = vlaneseq
    %v780 = vshrl.u32 %v779, 7
    %v781 = vsub.s32 3, %v780
    %v782 = vrot.slane %v765, %v781
    %v783 = vlaneseq
    %v784 = vshrl.u32 %v783, 7
    %v785 = vsub.s32 4, %v784
    %v786 = vrot.slane %v765, %v785
    %v787 = vlaneseq
    %v788 = vshrl.u32 %v787, 7
    %v789 = vsub.s32 5, %v788
    %v790 = vrot.slane %v765, %v789
    %v791 = vlaneseq
    %v792 = vshrl.u32 %v791, 7
    %v793 = vsub.s32 6, %v792
    %v794 = vrot.slane %v765, %v793
    %v795 = vlaneseq
    %v796 = vshrl.u32 %v795, 7
    %v797 = vsub.s32 7, %v796
    %v798 = vrot.slane %v765, %v797
    %v807 = vmul.f32 %v761, %v770
    %v808 = vmul.f32 %v760, %v774
    %v809 = vmul.f32 %v759, %v778
    %v810 = vmul.f32 %v758, %v782
    %v811 = vmul.f32 %v757, %v786
    %v812 = vmul.f32 %v756, %v790
    %v813 = vmul.f32 %v755, %v794
    %v814 = vmul.f32 %v754, %v798
    %v815 = vpack.c.bf16 %v807, %v729
    %v816 = vpack.c.bf16 %v808, %v730
    %v817 = vpack.c.bf16 %v809, %v731
    %v818 = vpack.c.bf16 %v810, %v732
    %v819 = vpack.c.bf16 %v811, %v733
    %v820 = vpack.c.bf16 %v812, %v734
    %v821 = vpack.c.bf16 %v813, %v735
    %v822 = vpack.c.bf16 %v814, %v736
    %823 = vst [vmem:[#allocation2 + $0x80] sm:$0xff] %v815
    %824 = vst [vmem:[#allocation2 + $0x88] sm:$0xff] %v816
    %825 = vst [vmem:[#allocation2 + $0x90] sm:$0xff] %v817
    %826 = vst [vmem:[#allocation2 + $0x98] sm:$0xff] %v818
    %827 = vst [vmem:[#allocation2 + $0xa0] sm:$0xff] %v819
    %828 = vst [vmem:[#allocation2 + $0xa8] sm:$0xff] %v820
    %829 = vst [vmem:[#allocation2 + $0xb0] sm:$0xff] %v821
    %830 = vst [vmem:[#allocation2 + $0xb8] sm:$0xff] %v822
    %831 = vrot.lane.b32.xlu0 %v306, 57
    %v832 = vpop.permute.xlu0 %831
    %833 = vrot.lane.b32.xlu0 %v307, 57
    %v834 = vpop.permute.xlu0 %833
    %835 = vrot.lane.b32.xlu0 %v308, 57
    %v836 = vpop.permute.xlu0 %835
    %837 = vrot.lane.b32.xlu0 %v309, 57
    %v838 = vpop.permute.xlu0 %837
    %839 = vrot.lane.b32.xlu0 %v310, 57
    %v840 = vpop.permute.xlu0 %839
    %841 = vrot.lane.b32.xlu0 %v311, 57
    %v842 = vpop.permute.xlu0 %841
    %843 = vrot.lane.b32.xlu0 %v312, 57
    %v844 = vpop.permute.xlu0 %843
    %845 = vrot.lane.b32.xlu0 %v313, 57
    %v846 = vpop.permute.xlu0 %845
    %vm847 = vcmp.lt.s32.totalorder %v331, 57
    %v848 = vsel %vm847, %v844, %v846
    %v849 = vsel %vm847, %v842, %v844
    %v850 = vsel %vm847, %v840, %v842
    %v851 = vsel %vm847, %v838, %v840
    %v852 = vsel %vm847, %v836, %v838
    %v853 = vsel %vm847, %v834, %v836
    %v854 = vsel %vm847, %v832, %v834
    %v855 = vsel %vm847, %v846, %v832
    %s856 = scalar_lea.vmem [#allocation3], 6
    %v857 = vld [vmem:[%s856] ss:$8 sm:$0xf]
    %v858 = vld [vmem:[%s856] ss:$8 sm:$0xf0]
    %v859 = vor.u32 %v857, %v858
    %v861 = vlaneseq
    %v862 = vshrl.u32 %v861, 7
    %v863 = vsub.s32 0, %v862
    %v864 = vrot.slane %v859, %v863
    %v865 = vlaneseq
    %v866 = vshrl.u32 %v865, 7
    %v867 = vsub.s32 1, %v866
    %v868 = vrot.slane %v859, %v867
    %v869 = vlaneseq
    %v870 = vshrl.u32 %v869, 7
    %v871 = vsub.s32 2, %v870
    %v872 = vrot.slane %v859, %v871
    %v873 = vlaneseq
    %v874 = vshrl.u32 %v873, 7
    %v875 = vsub.s32 3, %v874
    %v876 = vrot.slane %v859, %v875
    %v877 = vlaneseq
    %v878 = vshrl.u32 %v877, 7
    %v879 = vsub.s32 4, %v878
    %v880 = vrot.slane %v859, %v879
    %v881 = vlaneseq
    %v882 = vshrl.u32 %v881, 7
    %v883 = vsub.s32 5, %v882
    %v884 = vrot.slane %v859, %v883
    %v885 = vlaneseq
    %v886 = vshrl.u32 %v885, 7
    %v887 = vsub.s32 6, %v886
    %v888 = vrot.slane %v859, %v887
    %v889 = vlaneseq
    %v890 = vshrl.u32 %v889, 7
    %v891 = vsub.s32 7, %v890
    %v892 = vrot.slane %v859, %v891
    %v901 = vmul.f32 %v855, %v864
    %v902 = vmul.f32 %v854, %v868
    %v903 = vmul.f32 %v853, %v872
    %v904 = vmul.f32 %v852, %v876
    %v905 = vmul.f32 %v851, %v880
    %v906 = vmul.f32 %v850, %v884
    %v907 = vmul.f32 %v849, %v888
    %v908 = vmul.f32 %v848, %v892
    %909 = vrot.lane.b32.xlu0 %v306, 56
    %v910 = vpop.permute.xlu0 %909
    %911 = vrot.lane.b32.xlu0 %v307, 56
    %v912 = vpop.permute.xlu0 %911
    %913 = vrot.lane.b32.xlu0 %v308, 56
    %v914 = vpop.permute.xlu0 %913
    %915 = vrot.lane.b32.xlu0 %v309, 56
    %v916 = vpop.permute.xlu0 %915
    %917 = vrot.lane.b32.xlu0 %v310, 56
    %v918 = vpop.permute.xlu0 %917
    %919 = vrot.lane.b32.xlu0 %v311, 56
    %v920 = vpop.permute.xlu0 %919
    %921 = vrot.lane.b32.xlu0 %v312, 56
    %v922 = vpop.permute.xlu0 %921
    %923 = vrot.lane.b32.xlu0 %v313, 56
    %v924 = vpop.permute.xlu0 %923
    %vm925 = vcmp.lt.s32.totalorder %v331, 56
    %v926 = vsel %vm925, %v922, %v924
    %v927 = vsel %vm925, %v920, %v922
    %v928 = vsel %vm925, %v918, %v920
    %v929 = vsel %vm925, %v916, %v918
    %v930 = vsel %vm925, %v914, %v916
    %v931 = vsel %vm925, %v912, %v914
    %v932 = vsel %vm925, %v910, %v912
    %v933 = vsel %vm925, %v924, %v910
    %s934 = scalar_lea.vmem [#allocation3], 7
    %v935 = vld [vmem:[%s934] ss:$8 sm:$0xf]
    %v936 = vld [vmem:[%s934] ss:$8 sm:$0xf0]
    %v937 = vor.u32 %v935, %v936
    %v939 = vlaneseq
    %v940 = vshrl.u32 %v939, 7
    %v941 = vsub.s32 0, %v940
    %v942 = vrot.slane %v937, %v941
    %v943 = vlaneseq
    %v944 = vshrl.u32 %v943, 7
    %v945 = vsub.s32 1, %v944
    %v946 = vrot.slane %v937, %v945
    %v947 = vlaneseq
    %v948 = vshrl.u32 %v947, 7
    %v949 = vsub.s32 2, %v948
    %v950 = vrot.slane %v937, %v949
    %v951 = vlaneseq
    %v952 = vshrl.u32 %v951, 7
    %v953 = vsub.s32 3, %v952
    %v954 = vrot.slane %v937, %v953
    %v955 = vlaneseq
    %v956 = vshrl.u32 %v955, 7
    %v957 = vsub.s32 4, %v956
    %v958 = vrot.slane %v937, %v957
    %v959 = vlaneseq
    %v960 = vshrl.u32 %v959, 7
    %v961 = vsub.s32 5, %v960
    %v962 = vrot.slane %v937, %v961
    %v963 = vlaneseq
    %v964 = vshrl.u32 %v963, 7
    %v965 = vsub.s32 6, %v964
    %v966 = vrot.slane %v937, %v965
    %v967 = vlaneseq
    %v968 = vshrl.u32 %v967, 7
    %v969 = vsub.s32 7, %v968
    %v970 = vrot.slane %v937, %v969
    %v979 = vmul.f32 %v933, %v942
    %v980 = vmul.f32 %v932, %v946
    %v981 = vmul.f32 %v931, %v950
    %v982 = vmul.f32 %v930, %v954
    %v983 = vmul.f32 %v929, %v958
    %v984 = vmul.f32 %v928, %v962
    %v985 = vmul.f32 %v927, %v966
    %v986 = vmul.f32 %v926, %v970
    %v987 = vpack.c.bf16 %v979, %v901
    %v988 = vpack.c.bf16 %v980, %v902
    %v989 = vpack.c.bf16 %v981, %v903
    %v990 = vpack.c.bf16 %v982, %v904
    %v991 = vpack.c.bf16 %v983, %v905
    %v992 = vpack.c.bf16 %v984, %v906
    %v993 = vpack.c.bf16 %v985, %v907
    %v994 = vpack.c.bf16 %v986, %v908
    %995 = vst [vmem:[#allocation2 + $0xc0] sm:$0xff] %v987
    %996 = vst [vmem:[#allocation2 + $0xc8] sm:$0xff] %v988
    %997 = vst [vmem:[#allocation2 + $0xd0] sm:$0xff] %v989
    %998 = vst [vmem:[#allocation2 + $0xd8] sm:$0xff] %v990
    %999 = vst [vmem:[#allocation2 + $0xe0] sm:$0xff] %v991
    %1000 = vst [vmem:[#allocation2 + $0xe8] sm:$0xff] %v992
    %1001 = vst [vmem:[#allocation2 + $0xf0] sm:$0xff] %v993
    %1002 = vst [vmem:[#allocation2 + $0xf8] sm:$0xff] %v994
    %1003 = vrot.lane.b32.xlu0 %v306, 55
    %v1004 = vpop.permute.xlu0 %1003
    %1005 = vrot.lane.b32.xlu0 %v307, 55
    %v1006 = vpop.permute.xlu0 %1005
    %1007 = vrot.lane.b32.xlu0 %v308, 55
    %v1008 = vpop.permute.xlu0 %1007
    %1009 = vrot.lane.b32.xlu0 %v309, 55
    %v1010 = vpop.permute.xlu0 %1009
    %1011 = vrot.lane.b32.xlu0 %v310, 55
    %v1012 = vpop.permute.xlu0 %1011
    %1013 = vrot.lane.b32.xlu0 %v311, 55
    %v1014 = vpop.permute.xlu0 %1013
    %1015 = vrot.lane.b32.xlu0 %v312, 55
    %v1016 = vpop.permute.xlu0 %1015
    %1017 = vrot.lane.b32.xlu0 %v313, 55
    %v1018 = vpop.permute.xlu0 %1017
    %vm1019 = vcmp.lt.s32.totalorder %v331, 55
    %v1020 = vsel %vm1019, %v1016, %v1018
    %v1021 = vsel %vm1019, %v1014, %v1016
    %v1022 = vsel %vm1019, %v1012, %v1014
    %v1023 = vsel %vm1019, %v1010, %v1012
    %v1024 = vsel %vm1019, %v1008, %v1010
    %v1025 = vsel %vm1019, %v1006, %v1008
    %v1026 = vsel %vm1019, %v1004, %v1006
    %v1027 = vsel %vm1019, %v1018, %v1004
    %s1028 = scalar_lea.vmem [#allocation3], 64
    %v1029 = vld [vmem:[%s1028] ss:$8 sm:$0xf]
    %v1030 = vld [vmem:[%s1028] ss:$8 sm:$0xf0]
    %v1031 = vor.u32 %v1029, %v1030
    %v1033 = vlaneseq
    %v1034 = vshrl.u32 %v1033, 7
    %v1035 = vsub.s32 0, %v1034
    %v1036 = vrot.slane %v1031, %v1035
    %v1037 = vlaneseq
    %v1038 = vshrl.u32 %v1037, 7
    %v1039 = vsub.s32 1, %v1038
    %v1040 = vrot.slane %v1031, %v1039
    %v1041 = vlaneseq
    %v1042 = vshrl.u32 %v1041, 7
    %v1043 = vsub.s32 2, %v1042
    %v1044 = vrot.slane %v1031, %v1043
    %v1045 = vlaneseq
    %v1046 = vshrl.u32 %v1045, 7
    %v1047 = vsub.s32 3, %v1046
    %v1048 = vrot.slane %v1031, %v1047
    %v1049 = vlaneseq
    %v1050 = vshrl.u32 %v1049, 7
    %v1051 = vsub.s32 4, %v1050
    %v1052 = vrot.slane %v1031, %v1051
    %v1053 = vlaneseq
    %v1054 = vshrl.u32 %v1053, 7
    %v1055 = vsub.s32 5, %v1054
    %v1056 = vrot.slane %v1031, %v1055
    %v1057 = vlaneseq
    %v1058 = vshrl.u32 %v1057, 7
    %v1059 = vsub.s32 6, %v1058
    %v1060 = vrot.slane %v1031, %v1059
    %v1061 = vlaneseq
    %v1062 = vshrl.u32 %v1061, 7
    %v1063 = vsub.s32 7, %v1062
    %v1064 = vrot.slane %v1031, %v1063
    %v1073 = vmul.f32 %v1027, %v1036
    %v1074 = vmul.f32 %v1026, %v1040
    %v1075 = vmul.f32 %v1025, %v1044
    %v1076 = vmul.f32 %v1024, %v1048
    %v1077 = vmul.f32 %v1023, %v1052
    %v1078 = vmul.f32 %v1022, %v1056
    %v1079 = vmul.f32 %v1021, %v1060
    %v1080 = vmul.f32 %v1020, %v1064
    %1081 = vrot.lane.b32.xlu0 %v306, 9
    %v1082 = vpop.permute.xlu0 %1081
    %1083 = vrot.lane.b32.xlu0 %v307, 9
    %v1084 = vpop.permute.xlu0 %1083
    %1085 = vrot.lane.b32.xlu0 %v308, 9
    %v1086 = vpop.permute.xlu0 %1085
    %1087 = vrot.lane.b32.xlu0 %v309, 9
    %v1088 = vpop.permute.xlu0 %1087
    %1089 = vrot.lane.b32.xlu0 %v310, 9
    %v1090 = vpop.permute.xlu0 %1089
    %1091 = vrot.lane.b32.xlu0 %v311, 9
    %v1092 = vpop.permute.xlu0 %1091
    %1093 = vrot.lane.b32.xlu0 %v312, 9
    %v1094 = vpop.permute.xlu0 %1093
    %1095 = vrot.lane.b32.xlu0 %v313, 9
    %v1096 = vpop.permute.xlu0 %1095
    %vm1097 = vcmp.lt.s32.totalorder %v331, 9
    %v1098 = vsel %vm1097, %v1094, %v1096
    %v1099 = vsel %vm1097, %v1092, %v1094
    %v1100 = vsel %vm1097, %v1090, %v1092
    %v1101 = vsel %vm1097, %v1088, %v1090
    %v1102 = vsel %vm1097, %v1086, %v1088
    %v1103 = vsel %vm1097, %v1084, %v1086
    %v1104 = vsel %vm1097, %v1082, %v1084
    %v1105 = vsel %vm1097, %v1096, %v1082
    %s1106 = scalar_lea.vmem [#allocation3], 65
    %v1107 = vld [vmem:[%s1106] ss:$8 sm:$0xf]
    %v1108 = vld [vmem:[%s1106] ss:$8 sm:$0xf0]
    %v1109 = vor.u32 %v1107, %v1108
    %v1111 = vlaneseq
    %v1112 = vshrl.u32 %v1111, 7
    %v1113 = vsub.s32 0, %v1112
    %v1114 = vrot.slane %v1109, %v1113
    %v1115 = vlaneseq
    %v1116 = vshrl.u32 %v1115, 7
    %v1117 = vsub.s32 1, %v1116
    %v1118 = vrot.slane %v1109, %v1117
    %v1119 = vlaneseq
    %v1120 = vshrl.u32 %v1119, 7
    %v1121 = vsub.s32 2, %v1120
    %v1122 = vrot.slane %v1109, %v1121
    %v1123 = vlaneseq
    %v1124 = vshrl.u32 %v1123, 7
    %v1125 = vsub.s32 3, %v1124
    %v1126 = vrot.slane %v1109, %v1125
    %v1127 = vlaneseq
    %v1128 = vshrl.u32 %v1127, 7
    %v1129 = vsub.s32 4, %v1128
    %v1130 = vrot.slane %v1109, %v1129
    %v1131 = vlaneseq
    %v1132 = vshrl.u32 %v1131, 7
    %v1133 = vsub.s32 5, %v1132
    %v1134 = vrot.slane %v1109, %v1133
    %v1135 = vlaneseq
    %v1136 = vshrl.u32 %v1135, 7
    %v1137 = vsub.s32 6, %v1136
    %v1138 = vrot.slane %v1109, %v1137
    %v1139 = vlaneseq
    %v1140 = vshrl.u32 %v1139, 7
    %v1141 = vsub.s32 7, %v1140
    %v1142 = vrot.slane %v1109, %v1141
    %v1151 = vmul.f32 %v1105, %v1114
    %v1152 = vmul.f32 %v1104, %v1118
    %v1153 = vmul.f32 %v1103, %v1122
    %v1154 = vmul.f32 %v1102, %v1126
    %v1155 = vmul.f32 %v1101, %v1130
    %v1156 = vmul.f32 %v1100, %v1134
    %v1157 = vmul.f32 %v1099, %v1138
    %v1158 = vmul.f32 %v1098, %v1142
    %v1159 = vpack.c.bf16 %v1151, %v1073
    %v1160 = vpack.c.bf16 %v1152, %v1074
    %v1161 = vpack.c.bf16 %v1153, %v1075
    %v1162 = vpack.c.bf16 %v1154, %v1076
    %v1163 = vpack.c.bf16 %v1155, %v1077
    %v1164 = vpack.c.bf16 %v1156, %v1078
    %v1165 = vpack.c.bf16 %v1157, %v1079
    %v1166 = vpack.c.bf16 %v1158, %v1080
    %1167 = vst [vmem:[#allocation2 + $0x100] sm:$0xff] %v1159
    %1168 = vst [vmem:[#allocation2 + $0x108] sm:$0xff] %v1160
    %1169 = vst [vmem:[#allocation2 + $0x110] sm:$0xff] %v1161
    %1170 = vst [vmem:[#allocation2 + $0x118] sm:$0xff] %v1162
    %1171 = vst [vmem:[#allocation2 + $0x120] sm:$0xff] %v1163
    %1172 = vst [vmem:[#allocation2 + $0x128] sm:$0xff] %v1164
    %1173 = vst [vmem:[#allocation2 + $0x130] sm:$0xff] %v1165
    %1174 = vst [vmem:[#allocation2 + $0x138] sm:$0xff] %v1166
    %1175 = vrot.lane.b32.xlu0 %v306, 8
    %v1176 = vpop.permute.xlu0 %1175
    %1177 = vrot.lane.b32.xlu0 %v307, 8
    %v1178 = vpop.permute.xlu0 %1177
    %1179 = vrot.lane.b32.xlu0 %v308, 8
    %v1180 = vpop.permute.xlu0 %1179
    %1181 = vrot.lane.b32.xlu0 %v309, 8
    %v1182 = vpop.permute.xlu0 %1181
    %1183 = vrot.lane.b32.xlu0 %v310, 8
    %v1184 = vpop.permute.xlu0 %1183
    %1185 = vrot.lane.b32.xlu0 %v311, 8
    %v1186 = vpop.permute.xlu0 %1185
    %1187 = vrot.lane.b32.xlu0 %v312, 8
    %v1188 = vpop.permute.xlu0 %1187
    %1189 = vrot.lane.b32.xlu0 %v313, 8
    %v1190 = vpop.permute.xlu0 %1189
    %vm1191 = vcmp.lt.s32.totalorder %v331, 8
    %v1192 = vsel %vm1191, %v1188, %v1190
    %v1193 = vsel %vm1191, %v1186, %v1188
    %v1194 = vsel %vm1191, %v1184, %v1186
    %v1195 = vsel %vm1191, %v1182, %v1184
    %v1196 = vsel %vm1191, %v1180, %v1182
    %v1197 = vsel %vm1191, %v1178, %v1180
    %v1198 = vsel %vm1191, %v1176, %v1178
    %v1199 = vsel %vm1191, %v1190, %v1176
    %s1200 = scalar_lea.vmem [#allocation3], 66
    %v1201 = vld [vmem:[%s1200] ss:$8 sm:$0xf]
    %v1202 = vld [vmem:[%s1200] ss:$8 sm:$0xf0]
    %v1203 = vor.u32 %v1201, %v1202
    %v1205 = vlaneseq
    %v1206 = vshrl.u32 %v1205, 7
    %v1207 = vsub.s32 0, %v1206
    %v1208 = vrot.slane %v1203, %v1207
    %v1209 = vlaneseq
    %v1210 = vshrl.u32 %v1209, 7
    %v1211 = vsub.s32 1, %v1210
    %v1212 = vrot.slane %v1203, %v1211
    %v1213 = vlaneseq
    %v1214 = vshrl.u32 %v1213, 7
    %v1215 = vsub.s32 2, %v1214
    %v1216 = vrot.slane %v1203, %v1215
    %v1217 = vlaneseq
    %v1218 = vshrl.u32 %v1217, 7
    %v1219 = vsub.s32 3, %v1218
    %v1220 = vrot.slane %v1203, %v1219
    %v1221 = vlaneseq
    %v1222 = vshrl.u32 %v1221, 7
    %v1223 = vsub.s32 4, %v1222
    %v1224 = vrot.slane %v1203, %v1223
    %v1225 = vlaneseq
    %v1226 = vshrl.u32 %v1225, 7
    %v1227 = vsub.s32 5, %v1226
    %v1228 = vrot.slane %v1203, %v1227
    %v1229 = vlaneseq
    %v1230 = vshrl.u32 %v1229, 7
    %v1231 = vsub.s32 6, %v1230
    %v1232 = vrot.slane %v1203, %v1231
    %v1233 = vlaneseq
    %v1234 = vshrl.u32 %v1233, 7
    %v1235 = vsub.s32 7, %v1234
    %v1236 = vrot.slane %v1203, %v1235
    %v1245 = vmul.f32 %v1199, %v1208
    %v1246 = vmul.f32 %v1198, %v1212
    %v1247 = vmul.f32 %v1197, %v1216
    %v1248 = vmul.f32 %v1196, %v1220
    %v1249 = vmul.f32 %v1195, %v1224
    %v1250 = vmul.f32 %v1194, %v1228
    %v1251 = vmul.f32 %v1193, %v1232
    %v1252 = vmul.f32 %v1192, %v1236
    %1253 = vrot.lane.b32.xlu0 %v306, 7
    %v1254 = vpop.permute.xlu0 %1253
    %1255 = vrot.lane.b32.xlu0 %v307, 7
    %v1256 = vpop.permute.xlu0 %1255
    %1257 = vrot.lane.b32.xlu0 %v308, 7
    %v1258 = vpop.permute.xlu0 %1257
    %1259 = vrot.lane.b32.xlu0 %v309, 7
    %v1260 = vpop.permute.xlu0 %1259
    %1261 = vrot.lane.b32.xlu0 %v310, 7
    %v1262 = vpop.permute.xlu0 %1261
    %1263 = vrot.lane.b32.xlu0 %v311, 7
    %v1264 = vpop.permute.xlu0 %1263
    %1265 = vrot.lane.b32.xlu0 %v312, 7
    %v1266 = vpop.permute.xlu0 %1265
    %1267 = vrot.lane.b32.xlu0 %v313, 7
    %v1268 = vpop.permute.xlu0 %1267
    %vm1269 = vcmp.lt.s32.totalorder %v331, 7
    %v1270 = vsel %vm1269, %v1266, %v1268
    %v1271 = vsel %vm1269, %v1264, %v1266
    %v1272 = vsel %vm1269, %v1262, %v1264
    %v1273 = vsel %vm1269, %v1260, %v1262
    %v1274 = vsel %vm1269, %v1258, %v1260
    %v1275 = vsel %vm1269, %v1256, %v1258
    %v1276 = vsel %vm1269, %v1254, %v1256
    %v1277 = vsel %vm1269, %v1268, %v1254
    %s1278 = scalar_lea.vmem [#allocation3], 67
    %v1279 = vld [vmem:[%s1278] ss:$8 sm:$0xf]
    %v1280 = vld [vmem:[%s1278] ss:$8 sm:$0xf0]
    %v1281 = vor.u32 %v1279, %v1280
    %v1283 = vlaneseq
    %v1284 = vshrl.u32 %v1283, 7
    %v1285 = vsub.s32 0, %v1284
    %v1286 = vrot.slane %v1281, %v1285
    %v1287 = vlaneseq
    %v1288 = vshrl.u32 %v1287, 7
    %v1289 = vsub.s32 1, %v1288
    %v1290 = vrot.slane %v1281, %v1289
    %v1291 = vlaneseq
    %v1292 = vshrl.u32 %v1291, 7
    %v1293 = vsub.s32 2, %v1292
    %v1294 = vrot.slane %v1281, %v1293
    %v1295 = vlaneseq
    %v1296 = vshrl.u32 %v1295, 7
    %v1297 = vsub.s32 3, %v1296
    %v1298 = vrot.slane %v1281, %v1297
    %v1299 = vlaneseq
    %v1300 = vshrl.u32 %v1299, 7
    %v1301 = vsub.s32 4, %v1300
    %v1302 = vrot.slane %v1281, %v1301
    %v1303 = vlaneseq
    %v1304 = vshrl.u32 %v1303, 7
    %v1305 = vsub.s32 5, %v1304
    %v1306 = vrot.slane %v1281, %v1305
    %v1307 = vlaneseq
    %v1308 = vshrl.u32 %v1307, 7
    %v1309 = vsub.s32 6, %v1308
    %v1310 = vrot.slane %v1281, %v1309
    %v1311 = vlaneseq
    %v1312 = vshrl.u32 %v1311, 7
    %v1313 = vsub.s32 7, %v1312
    %v1314 = vrot.slane %v1281, %v1313
    %v1323 = vmul.f32 %v1277, %v1286
    %v1324 = vmul.f32 %v1276, %v1290
    %v1325 = vmul.f32 %v1275, %v1294
    %v1326 = vmul.f32 %v1274, %v1298
    %v1327 = vmul.f32 %v1273, %v1302
    %v1328 = vmul.f32 %v1272, %v1306
    %v1329 = vmul.f32 %v1271, %v1310
    %v1330 = vmul.f32 %v1270, %v1314
    %v1331 = vpack.c.bf16 %v1323, %v1245
    %v1332 = vpack.c.bf16 %v1324, %v1246
    %v1333 = vpack.c.bf16 %v1325, %v1247
    %v1334 = vpack.c.bf16 %v1326, %v1248
    %v1335 = vpack.c.bf16 %v1327, %v1249
    %v1336 = vpack.c.bf16 %v1328, %v1250
    %v1337 = vpack.c.bf16 %v1329, %v1251
    %v1338 = vpack.c.bf16 %v1330, %v1252
    %1339 = vst [vmem:[#allocation2 + $0x140] sm:$0xff] %v1331
    %1340 = vst [vmem:[#allocation2 + $0x148] sm:$0xff] %v1332
    %1341 = vst [vmem:[#allocation2 + $0x150] sm:$0xff] %v1333
    %1342 = vst [vmem:[#allocation2 + $0x158] sm:$0xff] %v1334
    %1343 = vst [vmem:[#allocation2 + $0x160] sm:$0xff] %v1335
    %1344 = vst [vmem:[#allocation2 + $0x168] sm:$0xff] %v1336
    %1345 = vst [vmem:[#allocation2 + $0x170] sm:$0xff] %v1337
    %1346 = vst [vmem:[#allocation2 + $0x178] sm:$0xff] %v1338
    %1347 = vrot.lane.b32.xlu0 %v306, 1
    %v1348 = vpop.permute.xlu0 %1347
    %1349 = vrot.lane.b32.xlu0 %v307, 1
    %v1350 = vpop.permute.xlu0 %1349
    %1351 = vrot.lane.b32.xlu0 %v308, 1
    %v1352 = vpop.permute.xlu0 %1351
    %1353 = vrot.lane.b32.xlu0 %v309, 1
    %v1354 = vpop.permute.xlu0 %1353
    %1355 = vrot.lane.b32.xlu0 %v310, 1
    %v1356 = vpop.permute.xlu0 %1355
    %1357 = vrot.lane.b32.xlu0 %v311, 1
    %v1358 = vpop.permute.xlu0 %1357
    %1359 = vrot.lane.b32.xlu0 %v312, 1
    %v1360 = vpop.permute.xlu0 %1359
    %1361 = vrot.lane.b32.xlu0 %v313, 1
    %v1362 = vpop.permute.xlu0 %1361
    %vm1363 = vcmp.lt.s32.totalorder %v331, 1
    %v1364 = vsel %vm1363, %v1360, %v1362
    %v1365 = vsel %vm1363, %v1358, %v1360
    %v1366 = vsel %vm1363, %v1356, %v1358
    %v1367 = vsel %vm1363, %v1354, %v1356
    %v1368 = vsel %vm1363, %v1352, %v1354
    %v1369 = vsel %vm1363, %v1350, %v1352
    %v1370 = vsel %vm1363, %v1348, %v1350
    %v1371 = vsel %vm1363, %v1362, %v1348
    %s1372 = scalar_lea.vmem [#allocation3], 68
    %v1373 = vld [vmem:[%s1372] ss:$8 sm:$0xf]
    %v1374 = vld [vmem:[%s1372] ss:$8 sm:$0xf0]
    %v1375 = vor.u32 %v1373, %v1374
    %v1377 = vlaneseq
    %v1378 = vshrl.u32 %v1377, 7
    %v1379 = vsub.s32 0, %v1378
    %v1380 = vrot.slane %v1375, %v1379
    %v1381 = vlaneseq
    %v1382 = vshrl.u32 %v1381, 7
    %v1383 = vsub.s32 1, %v1382
    %v1384 = vrot.slane %v1375, %v1383
    %v1385 = vlaneseq
    %v1386 = vshrl.u32 %v1385, 7
    %v1387 = vsub.s32 2, %v1386
    %v1388 = vrot.slane %v1375, %v1387
    %v1389 = vlaneseq
    %v1390 = vshrl.u32 %v1389, 7
    %v1391 = vsub.s32 3, %v1390
    %v1392 = vrot.slane %v1375, %v1391
    %v1393 = vlaneseq
    %v1394 = vshrl.u32 %v1393, 7
    %v1395 = vsub.s32 4, %v1394
    %v1396 = vrot.slane %v1375, %v1395
    %v1397 = vlaneseq
    %v1398 = vshrl.u32 %v1397, 7
    %v1399 = vsub.s32 5, %v1398
    %v1400 = vrot.slane %v1375, %v1399
    %v1401 = vlaneseq
    %v1402 = vshrl.u32 %v1401, 7
    %v1403 = vsub.s32 6, %v1402
    %v1404 = vrot.slane %v1375, %v1403
    %v1405 = vlaneseq
    %v1406 = vshrl.u32 %v1405, 7
    %v1407 = vsub.s32 7, %v1406
    %v1408 = vrot.slane %v1375, %v1407
    %v1417 = vmul.f32 %v1371, %v1380
    %v1418 = vmul.f32 %v1370, %v1384
    %v1419 = vmul.f32 %v1369, %v1388
    %v1420 = vmul.f32 %v1368, %v1392
    %v1421 = vmul.f32 %v1367, %v1396
    %v1422 = vmul.f32 %v1366, %v1400
    %v1423 = vmul.f32 %v1365, %v1404
    %v1424 = vmul.f32 %v1364, %v1408
    %1425 = vrot.lane.b32.xlu0 %v306, 127
    %v1426 = vpop.permute.xlu0 %1425
    %1427 = vrot.lane.b32.xlu0 %v307, 127
    %v1428 = vpop.permute.xlu0 %1427
    %1429 = vrot.lane.b32.xlu0 %v308, 127
    %v1430 = vpop.permute.xlu0 %1429
    %1431 = vrot.lane.b32.xlu0 %v309, 127
    %v1432 = vpop.permute.xlu0 %1431
    %1433 = vrot.lane.b32.xlu0 %v310, 127
    %v1434 = vpop.permute.xlu0 %1433
    %1435 = vrot.lane.b32.xlu0 %v311, 127
    %v1436 = vpop.permute.xlu0 %1435
    %1437 = vrot.lane.b32.xlu0 %v312, 127
    %v1438 = vpop.permute.xlu0 %1437
    %1439 = vrot.lane.b32.xlu0 %v313, 127
    %v1440 = vpop.permute.xlu0 %1439
    %vm1441 = vcmp.lt.s32.totalorder %v331, 127
    %v1442 = vsel %vm1441, %v1438, %v1440
    %v1443 = vsel %vm1441, %v1436, %v1438
    %v1444 = vsel %vm1441, %v1434, %v1436
    %v1445 = vsel %vm1441, %v1432, %v1434
    %v1446 = vsel %vm1441, %v1430, %v1432
    %v1447 = vsel %vm1441, %v1428, %v1430
    %v1448 = vsel %vm1441, %v1426, %v1428
    %v1449 = vsel %vm1441, %v1440, %v1426
    %s1450 = scalar_lea.vmem [#allocation3], 69
    %v1451 = vld [vmem:[%s1450] ss:$8 sm:$0xf]
    %v1452 = vld [vmem:[%s1450] ss:$8 sm:$0xf0]
    %v1453 = vor.u32 %v1451, %v1452
    %v1455 = vlaneseq
    %v1456 = vshrl.u32 %v1455, 7
    %v1457 = vsub.s32 0, %v1456
    %v1458 = vrot.slane %v1453, %v1457
    %v1459 = vlaneseq
    %v1460 = vshrl.u32 %v1459, 7
    %v1461 = vsub.s32 1, %v1460
    %v1462 = vrot.slane %v1453, %v1461
    %v1463 = vlaneseq
    %v1464 = vshrl.u32 %v1463, 7
    %v1465 = vsub.s32 2, %v1464
    %v1466 = vrot.slane %v1453, %v1465
    %v1467 = vlaneseq
    %v1468 = vshrl.u32 %v1467, 7
    %v1469 = vsub.s32 3, %v1468
    %v1470 = vrot.slane %v1453, %v1469
    %v1471 = vlaneseq
    %v1472 = vshrl.u32 %v1471, 7
    %v1473 = vsub.s32 4, %v1472
    %v1474 = vrot.slane %v1453, %v1473
    %v1475 = vlaneseq
    %v1476 = vshrl.u32 %v1475, 7
    %v1477 = vsub.s32 5, %v1476
    %v1478 = vrot.slane %v1453, %v1477
    %v1479 = vlaneseq
    %v1480 = vshrl.u32 %v1479, 7
    %v1481 = vsub.s32 6, %v1480
    %v1482 = vrot.slane %v1453, %v1481
    %v1483 = vlaneseq
    %v1484 = vshrl.u32 %v1483, 7
    %v1485 = vsub.s32 7, %v1484
    %v1486 = vrot.slane %v1453, %v1485
    %v1495 = vmul.f32 %v1448, %v1458
    %v1496 = vmul.f32 %v1447, %v1462
    %v1497 = vmul.f32 %v1446, %v1466
    %v1498 = vmul.f32 %v1445, %v1470
    %v1499 = vmul.f32 %v1444, %v1474
    %v1500 = vmul.f32 %v1443, %v1478
    %v1501 = vmul.f32 %v1442, %v1482
    %v1502 = vmul.f32 %v1449, %v1486
    %v1503 = vpack.c.bf16 %v1495, %v1417
    %v1504 = vpack.c.bf16 %v1496, %v1418
    %v1505 = vpack.c.bf16 %v1497, %v1419
    %v1506 = vpack.c.bf16 %v1498, %v1420
    %v1507 = vpack.c.bf16 %v1499, %v1421
    %v1508 = vpack.c.bf16 %v1500, %v1422
    %v1509 = vpack.c.bf16 %v1501, %v1423
    %v1510 = vpack.c.bf16 %v1502, %v1424
    %1511 = vst [vmem:[#allocation2 + $0x180] sm:$0xff] %v1503
    %1512 = vst [vmem:[#allocation2 + $0x188] sm:$0xff] %v1504
    %1513 = vst [vmem:[#allocation2 + $0x190] sm:$0xff] %v1505
    %1514 = vst [vmem:[#allocation2 + $0x198] sm:$0xff] %v1506
    %1515 = vst [vmem:[#allocation2 + $0x1a0] sm:$0xff] %v1507
    %1516 = vst [vmem:[#allocation2 + $0x1a8] sm:$0xff] %v1508
    %1517 = vst [vmem:[#allocation2 + $0x1b0] sm:$0xff] %v1509
    %1518 = vst [vmem:[#allocation2 + $0x1b8] sm:$0xff] %v1510
    %1519 = vrot.lane.b32.xlu0 %v306, 121
    %v1520 = vpop.permute.xlu0 %1519
    %1521 = vrot.lane.b32.xlu0 %v307, 121
    %v1522 = vpop.permute.xlu0 %1521
    %1523 = vrot.lane.b32.xlu0 %v308, 121
    %v1524 = vpop.permute.xlu0 %1523
    %1525 = vrot.lane.b32.xlu0 %v309, 121
    %v1526 = vpop.permute.xlu0 %1525
    %1527 = vrot.lane.b32.xlu0 %v310, 121
    %v1528 = vpop.permute.xlu0 %1527
    %1529 = vrot.lane.b32.xlu0 %v311, 121
    %v1530 = vpop.permute.xlu0 %1529
    %1531 = vrot.lane.b32.xlu0 %v312, 121
    %v1532 = vpop.permute.xlu0 %1531
    %1533 = vrot.lane.b32.xlu0 %v313, 121
    %v1534 = vpop.permute.xlu0 %1533
    %vm1535 = vcmp.lt.s32.totalorder %v331, 121
    %v1536 = vsel %vm1535, %v1532, %v1534
    %v1537 = vsel %vm1535, %v1530, %v1532
    %v1538 = vsel %vm1535, %v1528, %v1530
    %v1539 = vsel %vm1535, %v1526, %v1528
    %v1540 = vsel %vm1535, %v1524, %v1526
    %v1541 = vsel %vm1535, %v1522, %v1524
    %v1542 = vsel %vm1535, %v1520, %v1522
    %v1543 = vsel %vm1535, %v1534, %v1520
    %s1544 = scalar_lea.vmem [#allocation3], 70
    %v1545 = vld [vmem:[%s1544] ss:$8 sm:$0xf]
    %v1546 = vld [vmem:[%s1544] ss:$8 sm:$0xf0]
    %v1547 = vor.u32 %v1545, %v1546
    %v1549 = vlaneseq
    %v1550 = vshrl.u32 %v1549, 7
    %v1551 = vsub.s32 0, %v1550
    %v1552 = vrot.slane %v1547, %v1551
    %v1553 = vlaneseq
    %v1554 = vshrl.u32 %v1553, 7
    %v1555 = vsub.s32 1, %v1554
    %v1556 = vrot.slane %v1547, %v1555
    %v1557 = vlaneseq
    %v1558 = vshrl.u32 %v1557, 7
    %v1559 = vsub.s32 2, %v1558
    %v1560 = vrot.slane %v1547, %v1559
    %v1561 = vlaneseq
    %v1562 = vshrl.u32 %v1561, 7
    %v1563 = vsub.s32 3, %v1562
    %v1564 = vrot.slane %v1547, %v1563
    %v1565 = vlaneseq
    %v1566 = vshrl.u32 %v1565, 7
    %v1567 = vsub.s32 4, %v1566
    %v1568 = vrot.slane %v1547, %v1567
    %v1569 = vlaneseq
    %v1570 = vshrl.u32 %v1569, 7
    %v1571 = vsub.s32 5, %v1570
    %v1572 = vrot.slane %v1547, %v1571
    %v1573 = vlaneseq
    %v1574 = vshrl.u32 %v1573, 7
    %v1575 = vsub.s32 6, %v1574
    %v1576 = vrot.slane %v1547, %v1575
    %v1577 = vlaneseq
    %v1578 = vshrl.u32 %v1577, 7
    %v1579 = vsub.s32 7, %v1578
    %v1580 = vrot.slane %v1547, %v1579
    %v1589 = vmul.f32 %v1542, %v1552
    %v1590 = vmul.f32 %v1541, %v1556
    %v1591 = vmul.f32 %v1540, %v1560
    %v1592 = vmul.f32 %v1539, %v1564
    %v1593 = vmul.f32 %v1538, %v1568
    %v1594 = vmul.f32 %v1537, %v1572
    %v1595 = vmul.f32 %v1536, %v1576
    %v1596 = vmul.f32 %v1543, %v1580
    %1597 = vrot.lane.b32.xlu0 %v306, 120
    %v1598 = vpop.permute.xlu0 %1597
    %1599 = vrot.lane.b32.xlu0 %v307, 120
    %v1600 = vpop.permute.xlu0 %1599
    %1601 = vrot.lane.b32.xlu0 %v308, 120
    %v1602 = vpop.permute.xlu0 %1601
    %1603 = vrot.lane.b32.xlu0 %v309, 120
    %v1604 = vpop.permute.xlu0 %1603
    %1605 = vrot.lane.b32.xlu0 %v310, 120
    %v1606 = vpop.permute.xlu0 %1605
    %1607 = vrot.lane.b32.xlu0 %v311, 120
    %v1608 = vpop.permute.xlu0 %1607
    %1609 = vrot.lane.b32.xlu0 %v312, 120
    %v1610 = vpop.permute.xlu0 %1609
    %1611 = vrot.lane.b32.xlu0 %v313, 120
    %v1612 = vpop.permute.xlu0 %1611
    %vm1613 = vcmp.lt.s32.totalorder %v331, 120
    %v1614 = vsel %vm1613, %v1610, %v1612
    %v1615 = vsel %vm1613, %v1608, %v1610
    %v1616 = vsel %vm1613, %v1606, %v1608
    %v1617 = vsel %vm1613, %v1604, %v1606
    %v1618 = vsel %vm1613, %v1602, %v1604
    %v1619 = vsel %vm1613, %v1600, %v1602
    %v1620 = vsel %vm1613, %v1598, %v1600
    %v1621 = vsel %vm1613, %v1612, %v1598
    %s1622 = scalar_lea.vmem [#allocation3], 71
    %v1623 = vld [vmem:[%s1622] ss:$8 sm:$0xf]
    %v1624 = vld [vmem:[%s1622] ss:$8 sm:$0xf0]
    %v1625 = vor.u32 %v1623, %v1624
    %v1627 = vlaneseq
    %v1628 = vshrl.u32 %v1627, 7
    %v1629 = vsub.s32 0, %v1628
    %v1630 = vrot.slane %v1625, %v1629
    %v1631 = vlaneseq
    %v1632 = vshrl.u32 %v1631, 7
    %v1633 = vsub.s32 1, %v1632
    %v1634 = vrot.slane %v1625, %v1633
    %v1635 = vlaneseq
    %v1636 = vshrl.u32 %v1635, 7
    %v1637 = vsub.s32 2, %v1636
    %v1638 = vrot.slane %v1625, %v1637
    %v1639 = vlaneseq
    %v1640 = vshrl.u32 %v1639, 7
    %v1641 = vsub.s32 3, %v1640
    %v1642 = vrot.slane %v1625, %v1641
    %v1643 = vlaneseq
    %v1644 = vshrl.u32 %v1643, 7
    %v1645 = vsub.s32 4, %v1644
    %v1646 = vrot.slane %v1625, %v1645
    %v1647 = vlaneseq
    %v1648 = vshrl.u32 %v1647, 7
    %v1649 = vsub.s32 5, %v1648
    %v1650 = vrot.slane %v1625, %v1649
    %v1651 = vlaneseq
    %v1652 = vshrl.u32 %v1651, 7
    %v1653 = vsub.s32 6, %v1652
    %v1654 = vrot.slane %v1625, %v1653
    %v1655 = vlaneseq
    %v1656 = vshrl.u32 %v1655, 7
    %v1657 = vsub.s32 7, %v1656
    %v1658 = vrot.slane %v1625, %v1657
    %v1667 = vmul.f32 %v1620, %v1630
    %v1668 = vmul.f32 %v1619, %v1634
    %v1669 = vmul.f32 %v1618, %v1638
    %v1670 = vmul.f32 %v1617, %v1642
    %v1671 = vmul.f32 %v1616, %v1646
    %v1672 = vmul.f32 %v1615, %v1650
    %v1673 = vmul.f32 %v1614, %v1654
    %v1674 = vmul.f32 %v1621, %v1658
    %v1675 = vpack.c.bf16 %v1667, %v1589
    %v1676 = vpack.c.bf16 %v1668, %v1590
    %v1677 = vpack.c.bf16 %v1669, %v1591
    %v1678 = vpack.c.bf16 %v1670, %v1592
    %v1679 = vpack.c.bf16 %v1671, %v1593
    %v1680 = vpack.c.bf16 %v1672, %v1594
    %v1681 = vpack.c.bf16 %v1673, %v1595
    %v1682 = vpack.c.bf16 %v1674, %v1596
    %1683 = vst [vmem:[#allocation2 + $0x1c0] sm:$0xff] %v1675
    %1684 = vst [vmem:[#allocation2 + $0x1c8] sm:$0xff] %v1676
    %1685 = vst [vmem:[#allocation2 + $0x1d0] sm:$0xff] %v1677
    %1686 = vst [vmem:[#allocation2 + $0x1d8] sm:$0xff] %v1678
    %1687 = vst [vmem:[#allocation2 + $0x1e0] sm:$0xff] %v1679
    %1688 = vst [vmem:[#allocation2 + $0x1e8] sm:$0xff] %v1680
    %1689 = vst [vmem:[#allocation2 + $0x1f0] sm:$0xff] %v1681
    %1690 = vst [vmem:[#allocation2 + $0x1f8] sm:$0xff] %v1682
    %1691 = vrot.lane.b32.xlu0 %v306, 119
    %v1692 = vpop.permute.xlu0 %1691
    %1693 = vrot.lane.b32.xlu0 %v307, 119
    %v1694 = vpop.permute.xlu0 %1693
    %1695 = vrot.lane.b32.xlu0 %v308, 119
    %v1696 = vpop.permute.xlu0 %1695
    %1697 = vrot.lane.b32.xlu0 %v309, 119
    %v1698 = vpop.permute.xlu0 %1697
    %1699 = vrot.lane.b32.xlu0 %v310, 119
    %v1700 = vpop.permute.xlu0 %1699
    %1701 = vrot.lane.b32.xlu0 %v311, 119
    %v1702 = vpop.permute.xlu0 %1701
    %1703 = vrot.lane.b32.xlu0 %v312, 119
    %v1704 = vpop.permute.xlu0 %1703
    %1705 = vrot.lane.b32.xlu0 %v313, 119
    %v1706 = vpop.permute.xlu0 %1705
    %vm1707 = vcmp.lt.s32.totalorder %v331, 119
    %v1708 = vsel %vm1707, %v1704, %v1706
    %v1709 = vsel %vm1707, %v1702, %v1704
    %v1710 = vsel %vm1707, %v1700, %v1702
    %v1711 = vsel %vm1707, %v1698, %v1700
    %v1712 = vsel %vm1707, %v1696, %v1698
    %v1713 = vsel %vm1707, %v1694, %v1696
    %v1714 = vsel %vm1707, %v1692, %v1694
    %v1715 = vsel %vm1707, %v1706, %v1692
    %s1716 = scalar_lea.vmem [#allocation3], 128
    %v1717 = vld [vmem:[%s1716] ss:$8 sm:$0xf]
    %v1718 = vld [vmem:[%s1716] ss:$8 sm:$0xf0]
    %v1719 = vor.u32 %v1717, %v1718
    %v1721 = vlaneseq
    %v1722 = vshrl.u32 %v1721, 7
    %v1723 = vsub.s32 0, %v1722
    %v1724 = vrot.slane %v1719, %v1723
    %v1725 = vlaneseq
    %v1726 = vshrl.u32 %v1725, 7
    %v1727 = vsub.s32 1, %v1726
    %v1728 = vrot.slane %v1719, %v1727
    %v1729 = vlaneseq
    %v1730 = vshrl.u32 %v1729, 7
    %v1731 = vsub.s32 2, %v1730
    %v1732 = vrot.slane %v1719, %v1731
    %v1733 = vlaneseq
    %v1734 = vshrl.u32 %v1733, 7
    %v1735 = vsub.s32 3, %v1734
    %v1736 = vrot.slane %v1719, %v1735
    %v1737 = vlaneseq
    %v1738 = vshrl.u32 %v1737, 7
    %v1739 = vsub.s32 4, %v1738
    %v1740 = vrot.slane %v1719, %v1739
    %v1741 = vlaneseq
    %v1742 = vshrl.u32 %v1741, 7
    %v1743 = vsub.s32 5, %v1742
    %v1744 = vrot.slane %v1719, %v1743
    %v1745 = vlaneseq
    %v1746 = vshrl.u32 %v1745, 7
    %v1747 = vsub.s32 6, %v1746
    %v1748 = vrot.slane %v1719, %v1747
    %v1749 = vlaneseq
    %v1750 = vshrl.u32 %v1749, 7
    %v1751 = vsub.s32 7, %v1750
    %v1752 = vrot.slane %v1719, %v1751
    %v1761 = vmul.f32 %v1714, %v1724
    %v1762 = vmul.f32 %v1713, %v1728
    %v1763 = vmul.f32 %v1712, %v1732
    %v1764 = vmul.f32 %v1711, %v1736
    %v1765 = vmul.f32 %v1710, %v1740
    %v1766 = vmul.f32 %v1709, %v1744
    %v1767 = vmul.f32 %v1708, %v1748
    %v1768 = vmul.f32 %v1715, %v1752
    %s1769 = scalar_lea.vmem [#allocation3], 129
    %v1770 = vld [vmem:[%s1769] ss:$8 sm:$0xf]
    %v1771 = vld [vmem:[%s1769] ss:$8 sm:$0xf0]
    %v1772 = vor.u32 %v1770, %v1771
    %v1774 = vlaneseq
    %v1775 = vshrl.u32 %v1774, 7
    %v1776 = vsub.s32 0, %v1775
    %v1777 = vrot.slane %v1772, %v1776
    %v1778 = vlaneseq
    %v1779 = vshrl.u32 %v1778, 7
    %v1780 = vsub.s32 1, %v1779
    %v1781 = vrot.slane %v1772, %v1780
    %v1782 = vlaneseq
    %v1783 = vshrl.u32 %v1782, 7
    %v1784 = vsub.s32 2, %v1783
    %v1785 = vrot.slane %v1772, %v1784
    %v1786 = vlaneseq
    %v1787 = vshrl.u32 %v1786, 7
    %v1788 = vsub.s32 3, %v1787
    %v1789 = vrot.slane %v1772, %v1788
    %v1790 = vlaneseq
    %v1791 = vshrl.u32 %v1790, 7
    %v1792 = vsub.s32 4, %v1791
    %v1793 = vrot.slane %v1772, %v1792
    %v1794 = vlaneseq
    %v1795 = vshrl.u32 %v1794, 7
    %v1796 = vsub.s32 5, %v1795
    %v1797 = vrot.slane %v1772, %v1796
    %v1798 = vlaneseq
    %v1799 = vshrl.u32 %v1798, 7
    %v1800 = vsub.s32 6, %v1799
    %v1801 = vrot.slane %v1772, %v1800
    %v1802 = vlaneseq
    %v1803 = vshrl.u32 %v1802, 7
    %v1804 = vsub.s32 7, %v1803
    %v1805 = vrot.slane %v1772, %v1804
    %v1814 = vmul.f32 %v339, %v1777
    %v1815 = vmul.f32 %v338, %v1781
    %v1816 = vmul.f32 %v337, %v1785
    %v1817 = vmul.f32 %v336, %v1789
    %v1818 = vmul.f32 %v335, %v1793
    %v1819 = vmul.f32 %v334, %v1797
    %v1820 = vmul.f32 %v333, %v1801
    %v1821 = vmul.f32 %v340, %v1805
    %v1822 = vpack.c.bf16 %v1814, %v1761
    %v1823 = vpack.c.bf16 %v1815, %v1762
    %v1824 = vpack.c.bf16 %v1816, %v1763
    %v1825 = vpack.c.bf16 %v1817, %v1764
    %v1826 = vpack.c.bf16 %v1818, %v1765
    %v1827 = vpack.c.bf16 %v1819, %v1766
    %v1828 = vpack.c.bf16 %v1820, %v1767
    %v1829 = vpack.c.bf16 %v1821, %v1768
    %1830 = vst [vmem:[#allocation2 + $0x200] sm:$0xff] %v1822
    %1831 = vst [vmem:[#allocation2 + $0x208] sm:$0xff] %v1823
    %1832 = vst [vmem:[#allocation2 + $0x210] sm:$0xff] %v1824
    %1833 = vst [vmem:[#allocation2 + $0x218] sm:$0xff] %v1825
    %1834 = vst [vmem:[#allocation2 + $0x220] sm:$0xff] %v1826
    %1835 = vst [vmem:[#allocation2 + $0x228] sm:$0xff] %v1827
    %1836 = vst [vmem:[#allocation2 + $0x230] sm:$0xff] %v1828
    %1837 = vst [vmem:[#allocation2 + $0x238] sm:$0xff] %v1829
    %s1838 = scalar_lea.vmem [#allocation3], 130
    %v1839 = vld [vmem:[%s1838] ss:$8 sm:$0xf]
    %v1840 = vld [vmem:[%s1838] ss:$8 sm:$0xf0]
    %v1841 = vor.u32 %v1839, %v1840
    %v1843 = vlaneseq
    %v1844 = vshrl.u32 %v1843, 7
    %v1845 = vsub.s32 0, %v1844
    %v1846 = vrot.slane %v1841, %v1845
    %v1847 = vlaneseq
    %v1848 = vshrl.u32 %v1847, 7
    %v1849 = vsub.s32 1, %v1848
    %v1850 = vrot.slane %v1841, %v1849
    %v1851 = vlaneseq
    %v1852 = vshrl.u32 %v1851, 7
    %v1853 = vsub.s32 2, %v1852
    %v1854 = vrot.slane %v1841, %v1853
    %v1855 = vlaneseq
    %v1856 = vshrl.u32 %v1855, 7
    %v1857 = vsub.s32 3, %v1856
    %v1858 = vrot.slane %v1841, %v1857
    %v1859 = vlaneseq
    %v1860 = vshrl.u32 %v1859, 7
    %v1861 = vsub.s32 4, %v1860
    %v1862 = vrot.slane %v1841, %v1861
    %v1863 = vlaneseq
    %v1864 = vshrl.u32 %v1863, 7
    %v1865 = vsub.s32 5, %v1864
    %v1866 = vrot.slane %v1841, %v1865
    %v1867 = vlaneseq
    %v1868 = vshrl.u32 %v1867, 7
    %v1869 = vsub.s32 6, %v1868
    %v1870 = vrot.slane %v1841, %v1869
    %v1871 = vlaneseq
    %v1872 = vshrl.u32 %v1871, 7
    %v1873 = vsub.s32 7, %v1872
    %v1874 = vrot.slane %v1841, %v1873
    %v1883 = vmul.f32 %v416, %v1846
    %v1884 = vmul.f32 %v415, %v1850
    %v1885 = vmul.f32 %v414, %v1854
    %v1886 = vmul.f32 %v413, %v1858
    %v1887 = vmul.f32 %v412, %v1862
    %v1888 = vmul.f32 %v411, %v1866
    %v1889 = vmul.f32 %v410, %v1870
    %v1890 = vmul.f32 %v417, %v1874
    %s1891 = scalar_lea.vmem [#allocation3], 131
    %v1892 = vld [vmem:[%s1891] ss:$8 sm:$0xf]
    %v1893 = vld [vmem:[%s1891] ss:$8 sm:$0xf0]
    %v1894 = vor.u32 %v1892, %v1893
    %v1896 = vlaneseq
    %v1897 = vshrl.u32 %v1896, 7
    %v1898 = vsub.s32 0, %v1897
    %v1899 = vrot.slane %v1894, %v1898
    %v1900 = vlaneseq
    %v1901 = vshrl.u32 %v1900, 7
    %v1902 = vsub.s32 1, %v1901
    %v1903 = vrot.slane %v1894, %v1902
    %v1904 = vlaneseq
    %v1905 = vshrl.u32 %v1904, 7
    %v1906 = vsub.s32 2, %v1905
    %v1907 = vrot.slane %v1894, %v1906
    %v1908 = vlaneseq
    %v1909 = vshrl.u32 %v1908, 7
    %v1910 = vsub.s32 3, %v1909
    %v1911 = vrot.slane %v1894, %v1910
    %v1912 = vlaneseq
    %v1913 = vshrl.u32 %v1912, 7
    %v1914 = vsub.s32 4, %v1913
    %v1915 = vrot.slane %v1894, %v1914
    %v1916 = vlaneseq
    %v1917 = vshrl.u32 %v1916, 7
    %v1918 = vsub.s32 5, %v1917
    %v1919 = vrot.slane %v1894, %v1918
    %v1920 = vlaneseq
    %v1921 = vshrl.u32 %v1920, 7
    %v1922 = vsub.s32 6, %v1921
    %v1923 = vrot.slane %v1894, %v1922
    %v1924 = vlaneseq
    %v1925 = vshrl.u32 %v1924, 7
    %v1926 = vsub.s32 7, %v1925
    %v1927 = vrot.slane %v1894, %v1926
    %v1936 = vmul.f32 %v510, %v1899
    %v1937 = vmul.f32 %v509, %v1903
    %v1938 = vmul.f32 %v508, %v1907
    %v1939 = vmul.f32 %v507, %v1911
    %v1940 = vmul.f32 %v506, %v1915
    %v1941 = vmul.f32 %v505, %v1919
    %v1942 = vmul.f32 %v504, %v1923
    %v1943 = vmul.f32 %v511, %v1927
    %v1944 = vpack.c.bf16 %v1936, %v1883
    %v1945 = vpack.c.bf16 %v1937, %v1884
    %v1946 = vpack.c.bf16 %v1938, %v1885
    %v1947 = vpack.c.bf16 %v1939, %v1886
    %v1948 = vpack.c.bf16 %v1940, %v1887
    %v1949 = vpack.c.bf16 %v1941, %v1888
    %v1950 = vpack.c.bf16 %v1942, %v1889
    %v1951 = vpack.c.bf16 %v1943, %v1890
    %1952 = vst [vmem:[#allocation2 + $0x240] sm:$0xff] %v1944
    %1953 = vst [vmem:[#allocation2 + $0x248] sm:$0xff] %v1945
    %1954 = vst [vmem:[#allocation2 + $0x250] sm:$0xff] %v1946
    %1955 = vst [vmem:[#allocation2 + $0x258] sm:$0xff] %v1947
    %1956 = vst [vmem:[#allocation2 + $0x260] sm:$0xff] %v1948
    %1957 = vst [vmem:[#allocation2 + $0x268] sm:$0xff] %v1949
    %1958 = vst [vmem:[#allocation2 + $0x270] sm:$0xff] %v1950
    %1959 = vst [vmem:[#allocation2 + $0x278] sm:$0xff] %v1951
    %s1960 = scalar_lea.vmem [#allocation3], 132
    %v1961 = vld [vmem:[%s1960] ss:$8 sm:$0xf]
    %v1962 = vld [vmem:[%s1960] ss:$8 sm:$0xf0]
    %v1963 = vor.u32 %v1961, %v1962
    %v1965 = vlaneseq
    %v1966 = vshrl.u32 %v1965, 7
    %v1967 = vsub.s32 0, %v1966
    %v1968 = vrot.slane %v1963, %v1967
    %v1969 = vlaneseq
    %v1970 = vshrl.u32 %v1969, 7
    %v1971 = vsub.s32 1, %v1970
    %v1972 = vrot.slane %v1963, %v1971
    %v1973 = vlaneseq
    %v1974 = vshrl.u32 %v1973, 7
    %v1975 = vsub.s32 2, %v1974
    %v1976 = vrot.slane %v1963, %v1975
    %v1977 = vlaneseq
    %v1978 = vshrl.u32 %v1977, 7
    %v1979 = vsub.s32 3, %v1978
    %v1980 = vrot.slane %v1963, %v1979
    %v1981 = vlaneseq
    %v1982 = vshrl.u32 %v1981, 7
    %v1983 = vsub.s32 4, %v1982
    %v1984 = vrot.slane %v1963, %v1983
    %v1985 = vlaneseq
    %v1986 = vshrl.u32 %v1985, 7
    %v1987 = vsub.s32 5, %v1986
    %v1988 = vrot.slane %v1963, %v1987
    %v1989 = vlaneseq
    %v1990 = vshrl.u32 %v1989, 7
    %v1991 = vsub.s32 6, %v1990
    %v1992 = vrot.slane %v1963, %v1991
    %v1993 = vlaneseq
    %v1994 = vshrl.u32 %v1993, 7
    %v1995 = vsub.s32 7, %v1994
    %v1996 = vrot.slane %v1963, %v1995
    %v2005 = vmul.f32 %v588, %v1968
    %v2006 = vmul.f32 %v587, %v1972
    %v2007 = vmul.f32 %v586, %v1976
    %v2008 = vmul.f32 %v585, %v1980
    %v2009 = vmul.f32 %v584, %v1984
    %v2010 = vmul.f32 %v583, %v1988
    %v2011 = vmul.f32 %v582, %v1992
    %v2012 = vmul.f32 %v589, %v1996
    %s2013 = scalar_lea.vmem [#allocation3], 133
    %v2014 = vld [vmem:[%s2013] ss:$8 sm:$0xf]
    %v2015 = vld [vmem:[%s2013] ss:$8 sm:$0xf0]
    %v2016 = vor.u32 %v2014, %v2015
    %v2018 = vlaneseq
    %v2019 = vshrl.u32 %v2018, 7
    %v2020 = vsub.s32 0, %v2019
    %v2021 = vrot.slane %v2016, %v2020
    %v2022 = vlaneseq
    %v2023 = vshrl.u32 %v2022, 7
    %v2024 = vsub.s32 1, %v2023
    %v2025 = vrot.slane %v2016, %v2024
    %v2026 = vlaneseq
    %v2027 = vshrl.u32 %v2026, 7
    %v2028 = vsub.s32 2, %v2027
    %v2029 = vrot.slane %v2016, %v2028
    %v2030 = vlaneseq
    %v2031 = vshrl.u32 %v2030, 7
    %v2032 = vsub.s32 3, %v2031
    %v2033 = vrot.slane %v2016, %v2032
    %v2034 = vlaneseq
    %v2035 = vshrl.u32 %v2034, 7
    %v2036 = vsub.s32 4, %v2035
    %v2037 = vrot.slane %v2016, %v2036
    %v2038 = vlaneseq
    %v2039 = vshrl.u32 %v2038, 7
    %v2040 = vsub.s32 5, %v2039
    %v2041 = vrot.slane %v2016, %v2040
    %v2042 = vlaneseq
    %v2043 = vshrl.u32 %v2042, 7
    %v2044 = vsub.s32 6, %v2043
    %v2045 = vrot.slane %v2016, %v2044
    %v2046 = vlaneseq
    %v2047 = vshrl.u32 %v2046, 7
    %v2048 = vsub.s32 7, %v2047
    %v2049 = vrot.slane %v2016, %v2048
    %v2058 = vmul.f32 %v682, %v2021
    %v2059 = vmul.f32 %v681, %v2025
    %v2060 = vmul.f32 %v680, %v2029
    %v2061 = vmul.f32 %v679, %v2033
    %v2062 = vmul.f32 %v678, %v2037
    %v2063 = vmul.f32 %v677, %v2041
    %v2064 = vmul.f32 %v676, %v2045
    %v2065 = vmul.f32 %v683, %v2049
    %v2066 = vpack.c.bf16 %v2058, %v2005
    %v2067 = vpack.c.bf16 %v2059, %v2006
    %v2068 = vpack.c.bf16 %v2060, %v2007
    %v2069 = vpack.c.bf16 %v2061, %v2008
    %v2070 = vpack.c.bf16 %v2062, %v2009
    %v2071 = vpack.c.bf16 %v2063, %v2010
    %v2072 = vpack.c.bf16 %v2064, %v2011
    %v2073 = vpack.c.bf16 %v2065, %v2012
    %2074 = vst [vmem:[#allocation2 + $0x280] sm:$0xff] %v2066
    %2075 = vst [vmem:[#allocation2 + $0x288] sm:$0xff] %v2067
    %2076 = vst [vmem:[#allocation2 + $0x290] sm:$0xff] %v2068
    %2077 = vst [vmem:[#allocation2 + $0x298] sm:$0xff] %v2069
    %2078 = vst [vmem:[#allocation2 + $0x2a0] sm:$0xff] %v2070
    %2079 = vst [vmem:[#allocation2 + $0x2a8] sm:$0xff] %v2071
    %2080 = vst [vmem:[#allocation2 + $0x2b0] sm:$0xff] %v2072
    %2081 = vst [vmem:[#allocation2 + $0x2b8] sm:$0xff] %v2073
    %s2082 = scalar_lea.vmem [#allocation3], 134
    %v2083 = vld [vmem:[%s2082] ss:$8 sm:$0xf]
    %v2084 = vld [vmem:[%s2082] ss:$8 sm:$0xf0]
    %v2085 = vor.u32 %v2083, %v2084
    %v2087 = vlaneseq
    %v2088 = vshrl.u32 %v2087, 7
    %v2089 = vsub.s32 0, %v2088
    %v2090 = vrot.slane %v2085, %v2089
    %v2091 = vlaneseq
    %v2092 = vshrl.u32 %v2091, 7
    %v2093 = vsub.s32 1, %v2092
    %v2094 = vrot.slane %v2085, %v2093
    %v2095 = vlaneseq
    %v2096 = vshrl.u32 %v2095, 7
    %v2097 = vsub.s32 2, %v2096
    %v2098 = vrot.slane %v2085, %v2097
    %v2099 = vlaneseq
    %v2100 = vshrl.u32 %v2099, 7
    %v2101 = vsub.s32 3, %v2100
    %v2102 = vrot.slane %v2085, %v2101
    %v2103 = vlaneseq
    %v2104 = vshrl.u32 %v2103, 7
    %v2105 = vsub.s32 4, %v2104
    %v2106 = vrot.slane %v2085, %v2105
    %v2107 = vlaneseq
    %v2108 = vshrl.u32 %v2107, 7
    %v2109 = vsub.s32 5, %v2108
    %v2110 = vrot.slane %v2085, %v2109
    %v2111 = vlaneseq
    %v2112 = vshrl.u32 %v2111, 7
    %v2113 = vsub.s32 6, %v2112
    %v2114 = vrot.slane %v2085, %v2113
    %v2115 = vlaneseq
    %v2116 = vshrl.u32 %v2115, 7
    %v2117 = vsub.s32 7, %v2116
    %v2118 = vrot.slane %v2085, %v2117
    %v2127 = vmul.f32 %v760, %v2090
    %v2128 = vmul.f32 %v759, %v2094
    %v2129 = vmul.f32 %v758, %v2098
    %v2130 = vmul.f32 %v757, %v2102
    %v2131 = vmul.f32 %v756, %v2106
    %v2132 = vmul.f32 %v755, %v2110
    %v2133 = vmul.f32 %v754, %v2114
    %v2134 = vmul.f32 %v761, %v2118
    %s2135 = scalar_lea.vmem [#allocation3], 135
    %v2136 = vld [vmem:[%s2135] ss:$8 sm:$0xf]
    %v2137 = vld [vmem:[%s2135] ss:$8 sm:$0xf0]
    %v2138 = vor.u32 %v2136, %v2137
    %v2140 = vlaneseq
    %v2141 = vshrl.u32 %v2140, 7
    %v2142 = vsub.s32 0, %v2141
    %v2143 = vrot.slane %v2138, %v2142
    %v2144 = vlaneseq
    %v2145 = vshrl.u32 %v2144, 7
    %v2146 = vsub.s32 1, %v2145
    %v2147 = vrot.slane %v2138, %v2146
    %v2148 = vlaneseq
    %v2149 = vshrl.u32 %v2148, 7
    %v2150 = vsub.s32 2, %v2149
    %v2151 = vrot.slane %v2138, %v2150
    %v2152 = vlaneseq
    %v2153 = vshrl.u32 %v2152, 7
    %v2154 = vsub.s32 3, %v2153
    %v2155 = vrot.slane %v2138, %v2154
    %v2156 = vlaneseq
    %v2157 = vshrl.u32 %v2156, 7
    %v2158 = vsub.s32 4, %v2157
    %v2159 = vrot.slane %v2138, %v2158
    %v2160 = vlaneseq
    %v2161 = vshrl.u32 %v2160, 7
    %v2162 = vsub.s32 5, %v2161
    %v2163 = vrot.slane %v2138, %v2162
    %v2164 = vlaneseq
    %v2165 = vshrl.u32 %v2164, 7
    %v2166 = vsub.s32 6, %v2165
    %v2167 = vrot.slane %v2138, %v2166
    %v2168 = vlaneseq
    %v2169 = vshrl.u32 %v2168, 7
    %v2170 = vsub.s32 7, %v2169
    %v2171 = vrot.slane %v2138, %v2170
    %v2180 = vmul.f32 %v854, %v2143
    %v2181 = vmul.f32 %v853, %v2147
    %v2182 = vmul.f32 %v852, %v2151
    %v2183 = vmul.f32 %v851, %v2155
    %v2184 = vmul.f32 %v850, %v2159
    %v2185 = vmul.f32 %v849, %v2163
    %v2186 = vmul.f32 %v848, %v2167
    %v2187 = vmul.f32 %v855, %v2171
    %v2188 = vpack.c.bf16 %v2180, %v2127
    %v2189 = vpack.c.bf16 %v2181, %v2128
    %v2190 = vpack.c.bf16 %v2182, %v2129
    %v2191 = vpack.c.bf16 %v2183, %v2130
    %v2192 = vpack.c.bf16 %v2184, %v2131
    %v2193 = vpack.c.bf16 %v2185, %v2132
    %v2194 = vpack.c.bf16 %v2186, %v2133
    %v2195 = vpack.c.bf16 %v2187, %v2134
    %2196 = vst [vmem:[#allocation2 + $0x2c0] sm:$0xff] %v2188
    %2197 = vst [vmem:[#allocation2 + $0x2c8] sm:$0xff] %v2189
    %2198 = vst [vmem:[#allocation2 + $0x2d0] sm:$0xff] %v2190
    %2199 = vst [vmem:[#allocation2 + $0x2d8] sm:$0xff] %v2191
    %2200 = vst [vmem:[#allocation2 + $0x2e0] sm:$0xff] %v2192
    %2201 = vst [vmem:[#allocation2 + $0x2e8] sm:$0xff] %v2193
    %2202 = vst [vmem:[#allocation2 + $0x2f0] sm:$0xff] %v2194
    %2203 = vst [vmem:[#allocation2 + $0x2f8] sm:$0xff] %v2195
    %s2204 = scalar_lea.vmem [#allocation3], 192
    %v2205 = vld [vmem:[%s2204] ss:$8 sm:$0xf]
    %v2206 = vld [vmem:[%s2204] ss:$8 sm:$0xf0]
    %v2207 = vor.u32 %v2205, %v2206
    %v2209 = vlaneseq
    %v2210 = vshrl.u32 %v2209, 7
    %v2211 = vsub.s32 0, %v2210
    %v2212 = vrot.slane %v2207, %v2211
    %v2213 = vlaneseq
    %v2214 = vshrl.u32 %v2213, 7
    %v2215 = vsub.s32 1, %v2214
    %v2216 = vrot.slane %v2207, %v2215
    %v2217 = vlaneseq
    %v2218 = vshrl.u32 %v2217, 7
    %v2219 = vsub.s32 2, %v2218
    %v2220 = vrot.slane %v2207, %v2219
    %v2221 = vlaneseq
    %v2222 = vshrl.u32 %v2221, 7
    %v2223 = vsub.s32 3, %v2222
    %v2224 = vrot.slane %v2207, %v2223
    %v2225 = vlaneseq
    %v2226 = vshrl.u32 %v2225, 7
    %v2227 = vsub.s32 4, %v2226
    %v2228 = vrot.slane %v2207, %v2227
    %v2229 = vlaneseq
    %v2230 = vshrl.u32 %v2229, 7
    %v2231 = vsub.s32 5, %v2230
    %v2232 = vrot.slane %v2207, %v2231
    %v2233 = vlaneseq
    %v2234 = vshrl.u32 %v2233, 7
    %v2235 = vsub.s32 6, %v2234
    %v2236 = vrot.slane %v2207, %v2235
    %v2237 = vlaneseq
    %v2238 = vshrl.u32 %v2237, 7
    %v2239 = vsub.s32 7, %v2238
    %v2240 = vrot.slane %v2207, %v2239
    %v2249 = vmul.f32 %v932, %v2212
    %v2250 = vmul.f32 %v931, %v2216
    %v2251 = vmul.f32 %v930, %v2220
    %v2252 = vmul.f32 %v929, %v2224
    %v2253 = vmul.f32 %v928, %v2228
    %v2254 = vmul.f32 %v927, %v2232
    %v2255 = vmul.f32 %v926, %v2236
    %v2256 = vmul.f32 %v933, %v2240
    %s2257 = scalar_lea.vmem [#allocation3], 193
    %v2258 = vld [vmem:[%s2257] ss:$8 sm:$0xf]
    %v2259 = vld [vmem:[%s2257] ss:$8 sm:$0xf0]
    %v2260 = vor.u32 %v2258, %v2259
    %v2262 = vlaneseq
    %v2263 = vshrl.u32 %v2262, 7
    %v2264 = vsub.s32 0, %v2263
    %v2265 = vrot.slane %v2260, %v2264
    %v2266 = vlaneseq
    %v2267 = vshrl.u32 %v2266, 7
    %v2268 = vsub.s32 1, %v2267
    %v2269 = vrot.slane %v2260, %v2268
    %v2270 = vlaneseq
    %v2271 = vshrl.u32 %v2270, 7
    %v2272 = vsub.s32 2, %v2271
    %v2273 = vrot.slane %v2260, %v2272
    %v2274 = vlaneseq
    %v2275 = vshrl.u32 %v2274, 7
    %v2276 = vsub.s32 3, %v2275
    %v2277 = vrot.slane %v2260, %v2276
    %v2278 = vlaneseq
    %v2279 = vshrl.u32 %v2278, 7
    %v2280 = vsub.s32 4, %v2279
    %v2281 = vrot.slane %v2260, %v2280
    %v2282 = vlaneseq
    %v2283 = vshrl.u32 %v2282, 7
    %v2284 = vsub.s32 5, %v2283
    %v2285 = vrot.slane %v2260, %v2284
    %v2286 = vlaneseq
    %v2287 = vshrl.u32 %v2286, 7
    %v2288 = vsub.s32 6, %v2287
    %v2289 = vrot.slane %v2260, %v2288
    %v2290 = vlaneseq
    %v2291 = vshrl.u32 %v2290, 7
    %v2292 = vsub.s32 7, %v2291
    %v2293 = vrot.slane %v2260, %v2292
    %v2302 = vmul.f32 %v1026, %v2265
    %v2303 = vmul.f32 %v1025, %v2269
    %v2304 = vmul.f32 %v1024, %v2273
    %v2305 = vmul.f32 %v1023, %v2277
    %v2306 = vmul.f32 %v1022, %v2281
    %v2307 = vmul.f32 %v1021, %v2285
    %v2308 = vmul.f32 %v1020, %v2289
    %v2309 = vmul.f32 %v1027, %v2293
    %v2310 = vpack.c.bf16 %v2302, %v2249
    %v2311 = vpack.c.bf16 %v2303, %v2250
    %v2312 = vpack.c.bf16 %v2304, %v2251
    %v2313 = vpack.c.bf16 %v2305, %v2252
    %v2314 = vpack.c.bf16 %v2306, %v2253
    %v2315 = vpack.c.bf16 %v2307, %v2254
    %v2316 = vpack.c.bf16 %v2308, %v2255
    %v2317 = vpack.c.bf16 %v2309, %v2256
    %2318 = vst [vmem:[#allocation2 + $0x300] sm:$0xff] %v2310
    %2319 = vst [vmem:[#allocation2 + $0x308] sm:$0xff] %v2311
    %2320 = vst [vmem:[#allocation2 + $0x310] sm:$0xff] %v2312
    %2321 = vst [vmem:[#allocation2 + $0x318] sm:$0xff] %v2313
    %2322 = vst [vmem:[#allocation2 + $0x320] sm:$0xff] %v2314
    %2323 = vst [vmem:[#allocation2 + $0x328] sm:$0xff] %v2315
    %2324 = vst [vmem:[#allocation2 + $0x330] sm:$0xff] %v2316
    %2325 = vst [vmem:[#allocation2 + $0x338] sm:$0xff] %v2317
    %v2326 = vpack.c.bf16 %v306, %v306
    %v2327 = vpack.c.bf16 %v307, %v307
    %v2328 = vpack.c.bf16 %v308, %v308
    %v2329 = vpack.c.bf16 %v309, %v309
    %v2330 = vpack.c.bf16 %v310, %v310
    %v2331 = vpack.c.bf16 %v311, %v311
    %v2332 = vpack.c.bf16 %v312, %v312
    %v2333 = vpack.c.bf16 %v313, %v313
    %v2334 = vld [vmem:[%s4] sm:$0xff]
    %v2335 = vld [vmem:[#allocation2] sm:$0xff]
    %v2336 = vld [vmem:[#allocation2 + $0x8] sm:$0xff]
    %v2337 = vld [vmem:[#allocation2 + $0x10] sm:$0xff]
    %v2338 = vld [vmem:[#allocation2 + $0x18] sm:$0xff]
    %v2339 = vld [vmem:[#allocation2 + $0x20] sm:$0xff]
    %v2340 = vld [vmem:[#allocation2 + $0x28] sm:$0xff]
    %v2341 = vld [vmem:[#allocation2 + $0x30] sm:$0xff]
    %v2342 = vld [vmem:[#allocation2 + $0x38] sm:$0xff]
    %v2343 = vld [vmem:[#allocation2 + $0x40] sm:$0xff]
    %v2344 = vld [vmem:[#allocation2 + $0x48] sm:$0xff]
    %v2345 = vld [vmem:[#allocation2 + $0x50] sm:$0xff]
    %v2346 = vld [vmem:[#allocation2 + $0x58] sm:$0xff]
    %v2347 = vld [vmem:[#allocation2 + $0x60] sm:$0xff]
    %v2348 = vld [vmem:[#allocation2 + $0x68] sm:$0xff]
    %v2349 = vld [vmem:[#allocation2 + $0x70] sm:$0xff]
    %v2350 = vld [vmem:[#allocation2 + $0x78] sm:$0xff]
    %v2351 = vld [vmem:[#allocation2 + $0x80] sm:$0xff]
    %v2352 = vld [vmem:[#allocation2 + $0x88] sm:$0xff]
    %v2353 = vld [vmem:[#allocation2 + $0x90] sm:$0xff]
    %v2354 = vld [vmem:[#allocation2 + $0x98] sm:$0xff]
    %v2355 = vld [vmem:[#allocation2 + $0xa0] sm:$0xff]
    %v2356 = vld [vmem:[#allocation2 + $0xa8] sm:$0xff]
    %v2357 = vld [vmem:[#allocation2 + $0xb0] sm:$0xff]
    %v2358 = vld [vmem:[#allocation2 + $0xb8] sm:$0xff]
    %v2359 = vld [vmem:[#allocation2 + $0xc0] sm:$0xff]
    %v2360 = vld [vmem:[#allocation2 + $0xc8] sm:$0xff]
    %v2361 = vld [vmem:[#allocation2 + $0xd0] sm:$0xff]
    %v2362 = vld [vmem:[#allocation2 + $0xd8] sm:$0xff]
    %v2363 = vld [vmem:[#allocation2 + $0xe0] sm:$0xff]
    %v2364 = vld [vmem:[#allocation2 + $0xe8] sm:$0xff]
    %v2365 = vld [vmem:[#allocation2 + $0xf0] sm:$0xff]
    %v2366 = vld [vmem:[#allocation2 + $0xf8] sm:$0xff]
    %v2367 = vld [vmem:[#allocation2 + $0x100] sm:$0xff]
    %v2368 = vld [vmem:[#allocation2 + $0x108] sm:$0xff]
    %v2369 = vld [vmem:[#allocation2 + $0x110] sm:$0xff]
    %v2370 = vld [vmem:[#allocation2 + $0x118] sm:$0xff]
    %v2371 = vld [vmem:[#allocation2 + $0x120] sm:$0xff]
    %v2372 = vld [vmem:[#allocation2 + $0x128] sm:$0xff]
    %v2373 = vld [vmem:[#allocation2 + $0x130] sm:$0xff]
    %v2374 = vld [vmem:[#allocation2 + $0x138] sm:$0xff]
    %v2375 = vld [vmem:[#allocation2 + $0x140] sm:$0xff]
    %v2376 = vld [vmem:[#allocation2 + $0x148] sm:$0xff]
    %v2377 = vld [vmem:[#allocation2 + $0x150] sm:$0xff]
    %v2378 = vld [vmem:[#allocation2 + $0x158] sm:$0xff]
    %v2379 = vld [vmem:[#allocation2 + $0x160] sm:$0xff]
    %v2380 = vld [vmem:[#allocation2 + $0x168] sm:$0xff]
    %v2381 = vld [vmem:[#allocation2 + $0x170] sm:$0xff]
    %v2382 = vld [vmem:[#allocation2 + $0x178] sm:$0xff]
    %v2383 = vld [vmem:[#allocation2 + $0x180] sm:$0xff]
    %v2384 = vld [vmem:[#allocation2 + $0x188] sm:$0xff]
    %v2385 = vld [vmem:[#allocation2 + $0x190] sm:$0xff]
    %v2386 = vld [vmem:[#allocation2 + $0x198] sm:$0xff]
    %v2387 = vld [vmem:[#allocation2 + $0x1a0] sm:$0xff]
    %v2388 = vld [vmem:[#allocation2 + $0x1a8] sm:$0xff]
    %v2389 = vld [vmem:[#allocation2 + $0x1b0] sm:$0xff]
    %v2390 = vld [vmem:[#allocation2 + $0x1b8] sm:$0xff]
    %v2391 = vld [vmem:[#allocation2 + $0x1c0] sm:$0xff]
    %v2392 = vld [vmem:[#allocation2 + $0x1c8] sm:$0xff]
    %v2393 = vld [vmem:[#allocation2 + $0x1d0] sm:$0xff]
    %v2394 = vld [vmem:[#allocation2 + $0x1d8] sm:$0xff]
    %v2395 = vld [vmem:[#allocation2 + $0x1e0] sm:$0xff]
    %v2396 = vld [vmem:[#allocation2 + $0x1e8] sm:$0xff]
    %v2397 = vld [vmem:[#allocation2 + $0x1f0] sm:$0xff]
    %v2398 = vld [vmem:[#allocation2 + $0x1f8] sm:$0xff]
    %v2399 = vld [vmem:[#allocation2 + $0x200] sm:$0xff]
    %v2400 = vld [vmem:[#allocation2 + $0x208] sm:$0xff]
    %v2401 = vld [vmem:[#allocation2 + $0x210] sm:$0xff]
    %v2402 = vld [vmem:[#allocation2 + $0x218] sm:$0xff]
    %v2403 = vld [vmem:[#allocation2 + $0x220] sm:$0xff]
    %v2404 = vld [vmem:[#allocation2 + $0x228] sm:$0xff]
    %v2405 = vld [vmem:[#allocation2 + $0x230] sm:$0xff]
    %v2406 = vld [vmem:[#allocation2 + $0x238] sm:$0xff]
    %v2407 = vld [vmem:[#allocation2 + $0x240] sm:$0xff]
    %v2408 = vld [vmem:[#allocation2 + $0x248] sm:$0xff]
    %v2409 = vld [vmem:[#allocation2 + $0x250] sm:$0xff]
    %v2410 = vld [vmem:[#allocation2 + $0x258] sm:$0xff]
    %v2411 = vld [vmem:[#allocation2 + $0x260] sm:$0xff]
    %v2412 = vld [vmem:[#allocation2 + $0x268] sm:$0xff]
    %v2413 = vld [vmem:[#allocation2 + $0x270] sm:$0xff]
    %v2414 = vld [vmem:[#allocation2 + $0x278] sm:$0xff]
    %v2415 = vld [vmem:[#allocation2 + $0x280] sm:$0xff]
    %v2416 = vld [vmem:[#allocation2 + $0x288] sm:$0xff]
    %v2417 = vld [vmem:[#allocation2 + $0x290] sm:$0xff]
    %v2418 = vld [vmem:[#allocation2 + $0x298] sm:$0xff]
    %v2419 = vld [vmem:[#allocation2 + $0x2a0] sm:$0xff]
    %v2420 = vld [vmem:[#allocation2 + $0x2a8] sm:$0xff]
    %v2421 = vld [vmem:[#allocation2 + $0x2b0] sm:$0xff]
    %v2422 = vld [vmem:[#allocation2 + $0x2b8] sm:$0xff]
    %v2423 = vld [vmem:[#allocation2 + $0x2c0] sm:$0xff]
    %v2424 = vld [vmem:[#allocation2 + $0x2c8] sm:$0xff]
    %v2425 = vld [vmem:[#allocation2 + $0x2d0] sm:$0xff]
    %v2426 = vld [vmem:[#allocation2 + $0x2d8] sm:$0xff]
    %v2427 = vld [vmem:[#allocation2 + $0x2e0] sm:$0xff]
    %v2428 = vld [vmem:[#allocation2 + $0x2e8] sm:$0xff]
    %v2429 = vld [vmem:[#allocation2 + $0x2f0] sm:$0xff]
    %v2430 = vld [vmem:[#allocation2 + $0x2f8] sm:$0xff]
    %v2431 = vld [vmem:[#allocation2 + $0x300] sm:$0xff]
    %v2432 = vld [vmem:[#allocation2 + $0x308] sm:$0xff]
    %v2433 = vld [vmem:[#allocation2 + $0x310] sm:$0xff]
    %v2434 = vld [vmem:[#allocation2 + $0x318] sm:$0xff]
    %v2435 = vld [vmem:[#allocation2 + $0x320] sm:$0xff]
    %v2436 = vld [vmem:[#allocation2 + $0x328] sm:$0xff]
    %v2437 = vld [vmem:[#allocation2 + $0x330] sm:$0xff]
    %v2438 = vld [vmem:[#allocation2 + $0x338] sm:$0xff]
    %v2439 = vld [vmem:[%s5] sm:$0xf]
    %vm2440 = vcmask 64512
    %v2442 = vsel %vm2440, %v2439, 0
    %vm2444 = vcmask 1043456
    %v2446 = vsel %vm2444, %v2326, 0
    %v2449 = vsel %vm2444, %v2327, 0
    %v2452 = vsel %vm2444, %v2328, 0
    %v2455 = vsel %vm2444, %v2329, 0
    %v2458 = vsel %vm2444, %v2330, 0
    %v2461 = vsel %vm2444, %v2331, 0
    %v2464 = vsel %vm2444, %v2332, 0
    %v2467 = vsel %vm2444, %v2333, 0
    %2469 = vmatprep.subr.bf16.mxu0 %v2449
    %2470 = vmatpush1.bf16.msra.mxu0 %v2446
    %2471 = vmatprep.subr.bf16.mxu0 0
    %2472 = vmatpush1.bf16.msra.mxu0 0
    %2473 = vmatprep.subr.bf16.mxu0 0
    %2474 = vmatpush1.bf16.msra.mxu0 0
    %2475 = vmatprep.subr.bf16.mxu0 0
    %2476 = vmatpush1.bf16.msra.mxu0 0
    %2477 = vmatprep.subr.bf16.mxu0 0
    %2478 = vmatpush1.bf16.msra.mxu0 0
    %2479 = vmatprep.subr.bf16.mxu0 0
    %2480 = vmatpush1.bf16.msra.mxu0 0
    %2481 = vmatprep.subr.bf16.mxu0 0
    %2482 = vmatpush1.bf16.msra.mxu0 0
    %2483 = vmatprep.subr.bf16.mxu0 0
    %2484 = vmatpush1.bf16.msra.mxu0 0
    %2485 = vmatprep.subr.bf16.mxu0 0
    %2486 = vmatpush1.bf16.msra.mxu0 0
    %2487 = vmatprep.subr.bf16.mxu0 0
    %2488 = vmatpush1.bf16.msra.mxu0 0
    %2489 = vmatprep.subr.bf16.mxu0 0
    %2490 = vmatpush1.bf16.msra.mxu0 0
    %2491 = vmatprep.subr.bf16.mxu0 0
    %2492 = vmatpush1.bf16.msra.mxu0 0
    %2493 = vmatprep.subr.bf16.mxu0 0
    %2494 = vmatpush1.bf16.msra.mxu0 0
    %2495 = vmatprep.subr.bf16.mxu0 0
    %2496 = vmatpush1.bf16.msra.mxu0 0
    %2497 = vmatprep.subr.bf16.mxu0 0
    %2498 = vmatpush1.bf16.msra.mxu0 0
    %2499 = vmatprep.subr.bf16.mxu0 0
    %2500 = vmatpush1.bf16.msra.mxu0 0
    %2501 = vmatprep.mubr.bf16.mxu0 0
    %2502 = vmatmul.mubr.bf16.gmra.mrb[0].mxu0 %v2442
    %v2503 = vpop.f32.mrb[0].mxu0
    %v2504 = vadd.f32 0.0, %v2503
    %v2505 = vpop.f32.mrb[0].mxu0
    %v2506 = vadd.f32 0.0, %v2505
    %v2507 = vpop.f32.mrb[0].mxu0
    %v2508 = vpop.f32.mrb[0].mxu0
    %2509 = vdwg.mxu0
    %2510 = vmatprep.subr.bf16.mxu0 %v2455
    %2511 = vmatpush1.bf16.msra.mxu0 %v2452
    %2512 = vmatprep.subr.bf16.mxu0 0
    %2513 = vmatpush1.bf16.msra.mxu0 0
    %2514 = vmatprep.subr.bf16.mxu0 0
    %2515 = vmatpush1.bf16.msra.mxu0 0
    %2516 = vmatprep.subr.bf16.mxu0 0
    %2517 = vmatpush1.bf16.msra.mxu0 0
    %2518 = vmatprep.subr.bf16.mxu0 0
    %2519 = vmatpush1.bf16.msra.mxu0 0
    %2520 = vmatprep.subr.bf16.mxu0 0
    %2521 = vmatpush1.bf16.msra.mxu0 0
    %2522 = vmatprep.subr.bf16.mxu0 0
    %2523 = vmatpush1.bf16.msra.mxu0 0
    %2524 = vmatprep.subr.bf16.mxu0 0
    %2525 = vmatpush1.bf16.msra.mxu0 0
    %2526 = vmatprep.subr.bf16.mxu0 0
    %2527 = vmatpush1.bf16.msra.mxu0 0
    %2528 = vmatprep.subr.bf16.mxu0 0
    %2529 = vmatpush1.bf16.msra.mxu0 0
    %2530 = vmatprep.subr.bf16.mxu0 0
    %2531 = vmatpush1.bf16.msra.mxu0 0
    %2532 = vmatprep.subr.bf16.mxu0 0
    %2533 = vmatpush1.bf16.msra.mxu0 0
    %2534 = vmatprep.subr.bf16.mxu0 0
    %2535 = vmatpush1.bf16.msra.mxu0 0
    %2536 = vmatprep.subr.bf16.mxu0 0
    %2537 = vmatpush1.bf16.msra.mxu0 0
    %2538 = vmatprep.subr.bf16.mxu0 0
    %2539 = vmatpush1.bf16.msra.mxu0 0
    %2540 = vmatprep.subr.bf16.mxu0 0
    %2541 = vmatpush1.bf16.msra.mxu0 0
    %2542 = vmatprep.mubr.bf16.mxu0 0
    %2543 = vmatmul.mubr.bf16.gmra.mrb[0].mxu0 %v2442
    %v2544 = vpop.f32.mrb[0].mxu0
    %v2545 = vadd.f32 0.0, %v2544
    %v2546 = vpop.f32.mrb[0].mxu0
    %v2547 = vadd.f32 0.0, %v2546
    %v2548 = vpop.f32.mrb[0].mxu0
    %v2549 = vpop.f32.mrb[0].mxu0
    %2550 = vdwg.mxu0
    %2551 = vmatprep.subr.bf16.mxu0 %v2461
    %2552 = vmatpush1.bf16.msra.mxu0 %v2458
    %2553 = vmatprep.subr.bf16.mxu0 0
    %2554 = vmatpush1.bf16.msra.mxu0 0
    %2555 = vmatprep.subr.bf16.mxu0 0
    %2556 = vmatpush1.bf16.msra.mxu0 0
    %2557 = vmatprep.subr.bf16.mxu0 0
    %2558 = vmatpush1.bf16.msra.mxu0 0
    %2559 = vmatprep.subr.bf16.mxu0 0
    %2560 = vmatpush1.bf16.msra.mxu0 0
    %2561 = vmatprep.subr.bf16.mxu0 0
    %2562 = vmatpush1.bf16.msra.mxu0 0
    %2563 = vmatprep.subr.bf16.mxu0 0
    %2564 = vmatpush1.bf16.msra.mxu0 0
    %2565 = vmatprep.subr.bf16.mxu0 0
    %2566 = vmatpush1.bf16.msra.mxu0 0
    %2567 = vmatprep.subr.bf16.mxu0 0
    %2568 = vmatpush1.bf16.msra.mxu0 0
    %2569 = vmatprep.subr.bf16.mxu0 0
    %2570 = vmatpush1.bf16.msra.mxu0 0
    %2571 = vmatprep.subr.bf16.mxu0 0
    %2572 = vmatpush1.bf16.msra.mxu0 0
    %2573 = vmatprep.subr.bf16.mxu0 0
    %2574 = vmatpush1.bf16.msra.mxu0 0
    %2575 = vmatprep.subr.bf16.mxu0 0
    %2576 = vmatpush1.bf16.msra.mxu0 0
    %2577 = vmatprep.subr.bf16.mxu0 0
    %2578 = vmatpush1.bf16.msra.mxu0 0
    %2579 = vmatprep.subr.bf16.mxu0 0
    %2580 = vmatpush1.bf16.msra.mxu0 0
    %2581 = vmatprep.subr.bf16.mxu0 0
    %2582 = vmatpush1.bf16.msra.mxu0 0
    %2583 = vmatprep.mubr.bf16.mxu0 0
    %2584 = vmatmul.mubr.bf16.gmra.mrb[0].mxu0 %v2442
    %v2585 = vpop.f32.mrb[0].mxu0
    %v2586 = vadd.f32 0.0, %v2585
    %v2587 = vpop.f32.mrb[0].mxu0
    %v2588 = vadd.f32 0.0, %v2587
    %v2589 = vpop.f32.mrb[0].mxu0
    %v2590 = vpop.f32.mrb[0].mxu0
    %2591 = vdwg.mxu0
    %2592 = vmatprep.subr.bf16.mxu0 %v2467
    %2593 = vmatpush1.bf16.msra.mxu0 %v2464
    %2594 = vmatprep.subr.bf16.mxu0 0
    %2595 = vmatpush1.bf16.msra.mxu0 0
    %2596 = vmatprep.subr.bf16.mxu0 0
    %2597 = vmatpush1.bf16.msra.mxu0 0
    %2598 = vmatprep.subr.bf16.mxu0 0
    %2599 = vmatpush1.bf16.msra.mxu0 0
    %2600 = vmatprep.subr.bf16.mxu0 0
    %2601 = vmatpush1.bf16.msra.mxu0 0
    %2602 = vmatprep.subr.bf16.mxu0 0
    %2603 = vmatpush1.bf16.msra.mxu0 0
    %2604 = vmatprep.subr.bf16.mxu0 0
    %2605 = vmatpush1.bf16.msra.mxu0 0
    %2606 = vmatprep.subr.bf16.mxu0 0
    %2607 = vmatpush1.bf16.msra.mxu0 0
    %2608 = vmatprep.subr.bf16.mxu0 0
    %2609 = vmatpush1.bf16.msra.mxu0 0
    %2610 = vmatprep.subr.bf16.mxu0 0
    %2611 = vmatpush1.bf16.msra.mxu0 0
    %2612 = vmatprep.subr.bf16.mxu0 0
    %2613 = vmatpush1.bf16.msra.mxu0 0
    %2614 = vmatprep.subr.bf16.mxu0 0
    %2615 = vmatpush1.bf16.msra.mxu0 0
    %2616 = vmatprep.subr.bf16.mxu0 0
    %2617 = vmatpush1.bf16.msra.mxu0 0
    %2618 = vmatprep.subr.bf16.mxu0 0
    %2619 = vmatpush1.bf16.msra.mxu0 0
    %2620 = vmatprep.subr.bf16.mxu0 0
    %2621 = vmatpush1.bf16.msra.mxu0 0
    %2622 = vmatprep.subr.bf16.mxu0 0
    %2623 = vmatpush1.bf16.msra.mxu0 0
    %2624 = vmatprep.mubr.bf16.mxu0 0
    %2625 = vmatmul.mubr.bf16.gmra.mrb[0].mxu0 %v2442
    %v2626 = vpop.f32.mrb[0].mxu0
    %v2627 = vadd.f32 0.0, %v2626
    %v2628 = vpop.f32.mrb[0].mxu0
    %v2629 = vadd.f32 0.0, %v2628
    %v2630 = vpop.f32.mrb[0].mxu0
    %v2631 = vpop.f32.mrb[0].mxu0
    %2632 = vdwg.mxu0
    %v2634 = vunpack.c.l.b16 %v2334
    %v2635 = vunpack.c.h.b16 %v2334
    %v2636 = vpack.c.b16 %v2634, %v2634
    %v2637 = vpack.c.b16 %v2635, %v2635
    %vm2639 = vcmask 654336
    %v2641 = vsel %vm2639, %v2637, 0
    %2643 = vmatprep.subr.bf16.mxu0 %v2336
    %2644 = vmatpush1.bf16.msra.mxu0 %v2335
    %2645 = vmatprep.subr.bf16.mxu0 %v2344
    %2646 = vmatpush1.bf16.msra.mxu0 %v2343
    %2647 = vmatprep.subr.bf16.mxu0 %v2352
    %2648 = vmatpush1.bf16.msra.mxu0 %v2351
    %2649 = vmatprep.subr.bf16.mxu0 %v2360
    %2650 = vmatpush1.bf16.msra.mxu0 %v2359
    %2651 = vmatprep.subr.bf16.mxu0 %v2368
    %2652 = vmatpush1.bf16.msra.mxu0 %v2367
    %2653 = vmatprep.subr.bf16.mxu0 %v2376
    %2654 = vmatpush1.bf16.msra.mxu0 %v2375
    %2655 = vmatprep.subr.bf16.mxu0 %v2384
    %2656 = vmatpush1.bf16.msra.mxu0 %v2383
    %2657 = vmatprep.subr.bf16.mxu0 %v2392
    %2658 = vmatpush1.bf16.msra.mxu0 %v2391
    %2659 = vmatprep.subr.bf16.mxu0 %v2400
    %2660 = vmatpush1.bf16.msra.mxu0 %v2399
    %2661 = vmatprep.subr.bf16.mxu0 %v2408
    %2662 = vmatpush1.bf16.msra.mxu0 %v2407
    %2663 = vmatprep.subr.bf16.mxu0 %v2416
    %2664 = vmatpush1.bf16.msra.mxu0 %v2415
    %2665 = vmatprep.subr.bf16.mxu0 %v2424
    %2666 = vmatpush1.bf16.msra.mxu0 %v2423
    %2667 = vmatprep.subr.bf16.mxu0 %v2432
    %2668 = vmatpush1.bf16.msra.mxu0 %v2431
    %2669 = vmatprep.subr.bf16.mxu0 0
    %2670 = vmatpush1.bf16.msra.mxu0 0
    %2671 = vmatprep.subr.bf16.mxu0 0
    %2672 = vmatpush1.bf16.msra.mxu0 0
    %2673 = vmatprep.subr.bf16.mxu0 0
    %2674 = vmatpush1.bf16.msra.mxu0 0
    %2675 = vmatprep.mubr.bf16.mxu0 %v2641
    %2676 = vmatmul.mubr.bf16.gmra.mrb[0].mxu0 %v2636
    %v2677 = vpop.f32.mrb[0].mxu0
    %v2678 = vadd.f32 %v2504, %v2677
    %v2679 = vpop.f32.mrb[0].mxu0
    %v2680 = vadd.f32 %v2506, %v2679
    %v2681 = vpop.f32.mrb[0].mxu0
    %v2682 = vpop.f32.mrb[0].mxu0
    %2683 = vdwg.mxu0
    %2684 = vmatprep.subr.bf16.mxu0 %v2338
    %2685 = vmatpush1.bf16.msra.mxu0 %v2337
    %2686 = vmatprep.subr.bf16.mxu0 %v2346
    %2687 = vmatpush1.bf16.msra.mxu0 %v2345
    %2688 = vmatprep.subr.bf16.mxu0 %v2354
    %2689 = vmatpush1.bf16.msra.mxu0 %v2353
    %2690 = vmatprep.subr.bf16.mxu0 %v2362
    %2691 = vmatpush1.bf16.msra.mxu0 %v2361
    %2692 = vmatprep.subr.bf16.mxu0 %v2370
    %2693 = vmatpush1.bf16.msra.mxu0 %v2369
    %2694 = vmatprep.subr.bf16.mxu0 %v2378
    %2695 = vmatpush1.bf16.msra.mxu0 %v2377
    %2696 = vmatprep.subr.bf16.mxu0 %v2386
    %2697 = vmatpush1.bf16.msra.mxu0 %v2385
    %2698 = vmatprep.subr.bf16.mxu0 %v2394
    %2699 = vmatpush1.bf16.msra.mxu0 %v2393
    %2700 = vmatprep.subr.bf16.mxu0 %v2402
    %2701 = vmatpush1.bf16.msra.mxu0 %v2401
    %2702 = vmatprep.subr.bf16.mxu0 %v2410
    %2703 = vmatpush1.bf16.msra.mxu0 %v2409
    %2704 = vmatprep.subr.bf16.mxu0 %v2418
    %2705 = vmatpush1.bf16.msra.mxu0 %v2417
    %2706 = vmatprep.subr.bf16.mxu0 %v2426
    %2707 = vmatpush1.bf16.msra.mxu0 %v2425
    %2708 = vmatprep.subr.bf16.mxu0 %v2434
    %2709 = vmatpush1.bf16.msra.mxu0 %v2433
    %2710 = vmatprep.subr.bf16.mxu0 0
    %2711 = vmatpush1.bf16.msra.mxu0 0
    %2712 = vmatprep.subr.bf16.mxu0 0
    %2713 = vmatpush1.bf16.msra.mxu0 0
    %2714 = vmatprep.subr.bf16.mxu0 0
    %2715 = vmatpush1.bf16.msra.mxu0 0
    %2716 = vmatprep.mubr.bf16.mxu0 %v2641
    %2717 = vmatmul.mubr.bf16.gmra.mrb[0].mxu0 %v2636
    %v2718 = vpop.f32.mrb[0].mxu0
    %v2719 = vadd.f32 %v2545, %v2718
    %v2720 = vpop.f32.mrb[0].mxu0
    %v2721 = vadd.f32 %v2547, %v2720
    %v2722 = vpop.f32.mrb[0].mxu0
    %v2723 = vpop.f32.mrb[0].mxu0
    %2724 = vdwg.mxu0
    %2725 = vmatprep.subr.bf16.mxu0 %v2340
    %2726 = vmatpush1.bf16.msra.mxu0 %v2339
    %2727 = vmatprep.subr.bf16.mxu0 %v2348
    %2728 = vmatpush1.bf16.msra.mxu0 %v2347
    %2729 = vmatprep.subr.bf16.mxu0 %v2356
    %2730 = vmatpush1.bf16.msra.mxu0 %v2355
    %2731 = vmatprep.subr.bf16.mxu0 %v2364
    %2732 = vmatpush1.bf16.msra.mxu0 %v2363
    %2733 = vmatprep.subr.bf16.mxu0 %v2372
    %2734 = vmatpush1.bf16.msra.mxu0 %v2371
    %2735 = vmatprep.subr.bf16.mxu0 %v2380
    %2736 = vmatpush1.bf16.msra.mxu0 %v2379
    %2737 = vmatprep.subr.bf16.mxu0 %v2388
    %2738 = vmatpush1.bf16.msra.mxu0 %v2387
    %2739 = vmatprep.subr.bf16.mxu0 %v2396
    %2740 = vmatpush1.bf16.msra.mxu0 %v2395
    %2741 = vmatprep.subr.bf16.mxu0 %v2404
    %2742 = vmatpush1.bf16.msra.mxu0 %v2403
    %2743 = vmatprep.subr.bf16.mxu0 %v2412
    %2744 = vmatpush1.bf16.msra.mxu0 %v2411
    %2745 = vmatprep.subr.bf16.mxu0 %v2420
    %2746 = vmatpush1.bf16.msra.mxu0 %v2419
    %2747 = vmatprep.subr.bf16.mxu0 %v2428
    %2748 = vmatpush1.bf16.msra.mxu0 %v2427
    %2749 = vmatprep.subr.bf16.mxu0 %v2436
    %2750 = vmatpush1.bf16.msra.mxu0 %v2435
    %2751 = vmatprep.subr.bf16.mxu0 0
    %2752 = vmatpush1.bf16.msra.mxu0 0
    %2753 = vmatprep.subr.bf16.mxu0 0
    %2754 = vmatpush1.bf16.msra.mxu0 0
    %2755 = vmatprep.subr.bf16.mxu0 0
    %2756 = vmatpush1.bf16.msra.mxu0 0
    %2757 = vmatprep.mubr.bf16.mxu0 %v2641
    %2758 = vmatmul.mubr.bf16.gmra.mrb[0].mxu0 %v2636
    %v2759 = vpop.f32.mrb[0].mxu0
    %v2760 = vadd.f32 %v2586, %v2759
    %v2761 = vpop.f32.mrb[0].mxu0
    %v2762 = vadd.f32 %v2588, %v2761
    %v2763 = vpop.f32.mrb[0].mxu0
    %v2764 = vpop.f32.mrb[0].mxu0
    %2765 = vdwg.mxu0
    %2766 = vmatprep.subr.bf16.mxu0 %v2342
    %2767 = vmatpush1.bf16.msra.mxu0 %v2341
    %2768 = vmatprep.subr.bf16.mxu0 %v2350
    %2769 = vmatpush1.bf16.msra.mxu0 %v2349
    %2770 = vmatprep.subr.bf16.mxu0 %v2358
    %2771 = vmatpush1.bf16.msra.mxu0 %v2357
    %2772 = vmatprep.subr.bf16.mxu0 %v2366
    %2773 = vmatpush1.bf16.msra.mxu0 %v2365
    %2774 = vmatprep.subr.bf16.mxu0 %v2374
    %2775 = vmatpush1.bf16.msra.mxu0 %v2373
    %2776 = vmatprep.subr.bf16.mxu0 %v2382
    %2777 = vmatpush1.bf16.msra.mxu0 %v2381
    %2778 = vmatprep.subr.bf16.mxu0 %v2390
    %2779 = vmatpush1.bf16.msra.mxu0 %v2389
    %2780 = vmatprep.subr.bf16.mxu0 %v2398
    %2781 = vmatpush1.bf16.msra.mxu0 %v2397
    %2782 = vmatprep.subr.bf16.mxu0 %v2406
    %2783 = vmatpush1.bf16.msra.mxu0 %v2405
    %2784 = vmatprep.subr.bf16.mxu0 %v2414
    %2785 = vmatpush1.bf16.msra.mxu0 %v2413
    %2786 = vmatprep.subr.bf16.mxu0 %v2422
    %2787 = vmatpush1.bf16.msra.mxu0 %v2421
    %2788 = vmatprep.subr.bf16.mxu0 %v2430
    %2789 = vmatpush1.bf16.msra.mxu0 %v2429
    %2790 = vmatprep.subr.bf16.mxu0 %v2438
    %2791 = vmatpush1.bf16.msra.mxu0 %v2437
    %2792 = vmatprep.subr.bf16.mxu0 0
    %2793 = vmatpush1.bf16.msra.mxu0 0
    %2794 = vmatprep.subr.bf16.mxu0 0
    %2795 = vmatpush1.bf16.msra.mxu0 0
    %2796 = vmatprep.subr.bf16.mxu0 0
    %2797 = vmatpush1.bf16.msra.mxu0 0
    %2798 = vmatprep.mubr.bf16.mxu0 %v2641
    %2799 = vmatmul.mubr.bf16.gmra.mrb[0].mxu0 %v2636
    %v2800 = vpop.f32.mrb[0].mxu0
    %v2801 = vadd.f32 %v2627, %v2800
    %v2802 = vpop.f32.mrb[0].mxu0
    %v2803 = vadd.f32 %v2629, %v2802
    %v2804 = vpop.f32.mrb[0].mxu0
    %v2805 = vpop.f32.mrb[0].mxu0
    %2806 = vdwg.mxu0
    %v2807 = vld [vmem:[%s6] sm:$0xff]
    %2809 = vset.pattern.permute.xlu0 0
    %2810 = vperm.xlu0 %2809, %v2807
    %v2811 = vpop.permute.xlu0 %2810
    %v2813 = vadd.f32 %v2678, %v2811
    %v2814 = vadd.f32 %v2680, %v2811
    %v2815 = vadd.f32 %v2719, %v2811
    %v2816 = vadd.f32 %v2721, %v2811
    %v2817 = vadd.f32 %v2760, %v2811
    %v2818 = vadd.f32 %v2762, %v2811
    %v2819 = vadd.f32 %v2801, %v2811
    %v2820 = vadd.f32 %v2803, %v2811
    %v2821 = vld [vmem:[%s7] sm:$0xf]
    %v2822 = vpack.c.bf16 %v2813, %v2813
    %v2823 = vpack.c.bf16 %v2814, %v2814
    %v2824 = vpack.c.bf16 %v2815, %v2815
    %v2825 = vpack.c.bf16 %v2816, %v2816
    %v2826 = vpack.c.bf16 %v2817, %v2817
    %v2827 = vpack.c.bf16 %v2818, %v2818
    %v2828 = vpack.c.bf16 %v2819, %v2819
    %v2829 = vpack.c.bf16 %v2820, %v2820
    %v2830 = vld [vmem:[%s8] sm:$0xff]
    %2832 = vset.pattern.permute.xlu0 0
    %2833 = vperm.xlu0 %2832, %v2830
    %v2834 = vpop.permute.xlu0 %2833
    %v2837 = vsel %vm2440, %v2821, 0
    %v2840 = vsel %vm2444, %v2822, 0
    %v2843 = vsel %vm2444, %v2823, 0
    %v2846 = vsel %vm2444, %v2824, 0
    %v2849 = vsel %vm2444, %v2825, 0
    %v2852 = vsel %vm2444, %v2826, 0
    %v2855 = vsel %vm2444, %v2827, 0
    %v2858 = vsel %vm2444, %v2828, 0
    %v2861 = vsel %vm2444, %v2829, 0
    %2863 = vmatprep.subr.bf16.mxu0 %v2843
    %2864 = vmatpush1.bf16.msra.mxu0 %v2840
    %2865 = vmatprep.subr.bf16.mxu0 0
    %2866 = vmatpush1.bf16.msra.mxu0 0
    %2867 = vmatprep.subr.bf16.mxu0 0
    %2868 = vmatpush1.bf16.msra.mxu0 0
    %2869 = vmatprep.subr.bf16.mxu0 0
    %2870 = vmatpush1.bf16.msra.mxu0 0
    %2871 = vmatprep.subr.bf16.mxu0 0
    %2872 = vmatpush1.bf16.msra.mxu0 0
    %2873 = vmatprep.subr.bf16.mxu0 0
    %2874 = vmatpush1.bf16.msra.mxu0 0
    %2875 = vmatprep.subr.bf16.mxu0 0
    %2876 = vmatpush1.bf16.msra.mxu0 0
    %2877 = vmatprep.subr.bf16.mxu0 0
    %2878 = vmatpush1.bf16.msra.mxu0 0
    %2879 = vmatprep.subr.bf16.mxu0 0
    %2880 = vmatpush1.bf16.msra.mxu0 0
    %2881 = vmatprep.subr.bf16.mxu0 0
    %2882 = vmatpush1.bf16.msra.mxu0 0
    %2883 = vmatprep.subr.bf16.mxu0 0
    %2884 = vmatpush1.bf16.msra.mxu0 0
    %2885 = vmatprep.subr.bf16.mxu0 0
    %2886 = vmatpush1.bf16.msra.mxu0 0
    %2887 = vmatprep.subr.bf16.mxu0 0
    %2888 = vmatpush1.bf16.msra.mxu0 0
    %2889 = vmatprep.subr.bf16.mxu0 0
    %2890 = vmatpush1.bf16.msra.mxu0 0
    %2891 = vmatprep.subr.bf16.mxu0 0
    %2892 = vmatpush1.bf16.msra.mxu0 0
    %2893 = vmatprep.subr.bf16.mxu0 0
    %2894 = vmatpush1.bf16.msra.mxu0 0
    %2895 = vmatprep.mubr.bf16.mxu0 0
    %2896 = vmatmul.mubr.bf16.gmra.mrb[0].mxu0 %v2837
    %v2897 = vpop.f32.mrb[0].mxu0
    %v2898 = vadd.f32 %v2834, %v2897
    %v2899 = vpop.f32.mrb[0].mxu0
    %v2900 = vadd.f32 %v2834, %v2899
    %v2901 = vpop.f32.mrb[0].mxu0
    %v2902 = vpop.f32.mrb[0].mxu0
    %2903 = vdwg.mxu0
    %2904 = vmatprep.subr.bf16.mxu0 %v2849
    %2905 = vmatpush1.bf16.msra.mxu0 %v2846
    %2906 = vmatprep.subr.bf16.mxu0 0
    %2907 = vmatpush1.bf16.msra.mxu0 0
    %2908 = vmatprep.subr.bf16.mxu0 0
    %2909 = vmatpush1.bf16.msra.mxu0 0
    %2910 = vmatprep.subr.bf16.mxu0 0
    %2911 = vmatpush1.bf16.msra.mxu0 0
    %2912 = vmatprep.subr.bf16.mxu0 0
    %2913 = vmatpush1.bf16.msra.mxu0 0
    %2914 = vmatprep.subr.bf16.mxu0 0
    %2915 = vmatpush1.bf16.msra.mxu0 0
    %2916 = vmatprep.subr.bf16.mxu0 0
    %2917 = vmatpush1.bf16.msra.mxu0 0
    %2918 = vmatprep.subr.bf16.mxu0 0
    %2919 = vmatpush1.bf16.msra.mxu0 0
    %2920 = vmatprep.subr.bf16.mxu0 0
    %2921 = vmatpush1.bf16.msra.mxu0 0
    %2922 = vmatprep.subr.bf16.mxu0 0
    %2923 = vmatpush1.bf16.msra.mxu0 0
    %2924 = vmatprep.subr.bf16.mxu0 0
    %2925 = vmatpush1.bf16.msra.mxu0 0
    %2926 = vmatprep.subr.bf16.mxu0 0
    %2927 = vmatpush1.bf16.msra.mxu0 0
    %2928 = vmatprep.subr.bf16.mxu0 0
    %2929 = vmatpush1.bf16.msra.mxu0 0
    %2930 = vmatprep.subr.bf16.mxu0 0
    %2931 = vmatpush1.bf16.msra.mxu0 0
    %2932 = vmatprep.subr.bf16.mxu0 0
    %2933 = vmatpush1.bf16.msra.mxu0 0
    %2934 = vmatprep.subr.bf16.mxu0 0
    %2935 = vmatpush1.bf16.msra.mxu0 0
    %2936 = vmatprep.mubr.bf16.mxu0 0
    %2937 = vmatmul.mubr.bf16.gmra.mrb[0].mxu0 %v2837
    %v2938 = vpop.f32.mrb[0].mxu0
    %v2939 = vadd.f32 %v2834, %v2938
    %v2940 = vpop.f32.mrb[0].mxu0
    %v2941 = vadd.f32 %v2834, %v2940
    %v2942 = vpop.f32.mrb[0].mxu0
    %v2943 = vpop.f32.mrb[0].mxu0
    %2944 = vdwg.mxu0
    %2945 = vmatprep.subr.bf16.mxu0 %v2855
    %2946 = vmatpush1.bf16.msra.mxu0 %v2852
    %2947 = vmatprep.subr.bf16.mxu0 0
    %2948 = vmatpush1.bf16.msra.mxu0 0
    %2949 = vmatprep.subr.bf16.mxu0 0
    %2950 = vmatpush1.bf16.msra.mxu0 0
    %2951 = vmatprep.subr.bf16.mxu0 0
    %2952 = vmatpush1.bf16.msra.mxu0 0
    %2953 = vmatprep.subr.bf16.mxu0 0
    %2954 = vmatpush1.bf16.msra.mxu0 0
    %2955 = vmatprep.subr.bf16.mxu0 0
    %2956 = vmatpush1.bf16.msra.mxu0 0
    %2957 = vmatprep.subr.bf16.mxu0 0
    %2958 = vmatpush1.bf16.msra.mxu0 0
    %2959 = vmatprep.subr.bf16.mxu0 0
    %2960 = vmatpush1.bf16.msra.mxu0 0
    %2961 = vmatprep.subr.bf16.mxu0 0
    %2962 = vmatpush1.bf16.msra.mxu0 0
    %2963 = vmatprep.subr.bf16.mxu0 0
    %2964 = vmatpush1.bf16.msra.mxu0 0
    %2965 = vmatprep.subr.bf16.mxu0 0
    %2966 = vmatpush1.bf16.msra.mxu0 0
    %2967 = vmatprep.subr.bf16.mxu0 0
    %2968 = vmatpush1.bf16.msra.mxu0 0
    %2969 = vmatprep.subr.bf16.mxu0 0
    %2970 = vmatpush1.bf16.msra.mxu0 0
    %2971 = vmatprep.subr.bf16.mxu0 0
    %2972 = vmatpush1.bf16.msra.mxu0 0
    %2973 = vmatprep.subr.bf16.mxu0 0
    %2974 = vmatpush1.bf16.msra.mxu0 0
    %2975 = vmatprep.subr.bf16.mxu0 0
    %2976 = vmatpush1.bf16.msra.mxu0 0
    %2977 = vmatprep.mubr.bf16.mxu0 0
    %2978 = vmatmul.mubr.bf16.gmra.mrb[0].mxu0 %v2837
    %v2979 = vpop.f32.mrb[0].mxu0
    %v2980 = vadd.f32 %v2834, %v2979
    %v2981 = vpop.f32.mrb[0].mxu0
    %v2982 = vadd.f32 %v2834, %v2981
    %v2983 = vpop.f32.mrb[0].mxu0
    %v2984 = vpop.f32.mrb[0].mxu0
    %2985 = vdwg.mxu0
    %2986 = vmatprep.subr.bf16.mxu0 %v2861
    %2987 = vmatpush1.bf16.msra.mxu0 %v2858
    %2988 = vmatprep.subr.bf16.mxu0 0
    %2989 = vmatpush1.bf16.msra.mxu0 0
    %2990 = vmatprep.subr.bf16.mxu0 0
    %2991 = vmatpush1.bf16.msra.mxu0 0
    %2992 = vmatprep.subr.bf16.mxu0 0
    %2993 = vmatpush1.bf16.msra.mxu0 0
    %2994 = vmatprep.subr.bf16.mxu0 0
    %2995 = vmatpush1.bf16.msra.mxu0 0
    %2996 = vmatprep.subr.bf16.mxu0 0
    %2997 = vmatpush1.bf16.msra.mxu0 0
    %2998 = vmatprep.subr.bf16.mxu0 0
    %2999 = vmatpush1.bf16.msra.mxu0 0
    %3000 = vmatprep.subr.bf16.mxu0 0
    %3001 = vmatpush1.bf16.msra.mxu0 0
    %3002 = vmatprep.subr.bf16.mxu0 0
    %3003 = vmatpush1.bf16.msra.mxu0 0
    %3004 = vmatprep.subr.bf16.mxu0 0
    %3005 = vmatpush1.bf16.msra.mxu0 0
    %3006 = vmatprep.subr.bf16.mxu0 0
    %3007 = vmatpush1.bf16.msra.mxu0 0
    %3008 = vmatprep.subr.bf16.mxu0 0
    %3009 = vmatpush1.bf16.msra.mxu0 0
    %3010 = vmatprep.subr.bf16.mxu0 0
    %3011 = vmatpush1.bf16.msra.mxu0 0
    %3012 = vmatprep.subr.bf16.mxu0 0
    %3013 = vmatpush1.bf16.msra.mxu0 0
    %3014 = vmatprep.subr.bf16.mxu0 0
    %3015 = vmatpush1.bf16.msra.mxu0 0
    %3016 = vmatprep.subr.bf16.mxu0 0
    %3017 = vmatpush1.bf16.msra.mxu0 0
    %3018 = vmatprep.mubr.bf16.mxu0 0
    %3019 = vmatmul.mubr.bf16.gmra.mrb[0].mxu0 %v2837
    %v3020 = vpop.f32.mrb[0].mxu0
    %v3021 = vadd.f32 %v2834, %v3020
    %v3022 = vpop.f32.mrb[0].mxu0
    %v3023 = vadd.f32 %v2834, %v3022
    %v3024 = vpop.f32.mrb[0].mxu0
    %v3025 = vpop.f32.mrb[0].mxu0
    %3026 = vdwg.mxu0
    %v3027 = vadd.f32 %v2898, %v173
    %v3028 = vadd.f32 %v2900, %v175
    %v3029 = vadd.f32 %v2939, %v216
    %v3030 = vadd.f32 %v2941, %v218
    %v3031 = vadd.f32 %v2980, %v259
    %v3032 = vadd.f32 %v2982, %v261
    %v3033 = vadd.f32 %v3021, %v302
    %v3034 = vadd.f32 %v3023, %v304
    %v3035 = vmax.f32 %v3027, 0.0
    %v3036 = vmax.f32 %v3028, 0.0
    %v3037 = vmax.f32 %v3029, 0.0
    %v3038 = vmax.f32 %v3030, 0.0
    %v3039 = vmax.f32 %v3031, 0.0
    %v3040 = vmax.f32 %v3032, 0.0
    %v3041 = vmax.f32 %v3033, 0.0
    %v3042 = vmax.f32 %v3034, 0.0
    %3043 = vst [vmem:[#allocation6] sm:$0xff] %v3035
    %3044 = vst [vmem:[#allocation6 + $0x8] sm:$0xff] %v3036
    %3045 = vst [vmem:[#allocation6 + $0x10] sm:$0xff] %v3037
    %3046 = vst [vmem:[#allocation6 + $0x18] sm:$0xff] %v3038
    %s3047 = scalar_lea.vmem [#allocation6], 32
    %3048 = vst [vmem:[%s3047] sm:$0xff] %v3039
    %3049 = vst [vmem:[%s3047 + $0x8] sm:$0xff] %v3040
    %3050 = vst [vmem:[%s3047 + $0x10] sm:$0xff] %v3041
    %3051 = vst [vmem:[%s3047 + $0x18] sm:$0xff] %v3042
    // Predicated region
    $region42: #{tpu_custom_call.1} parent=1 // pred_check
      _
    $region43: #{tpu_custom_call.1} parent=1 // pred_check_branch
      %3053 = sbr.rel (0) target = $region45
    $region44: #{tpu_custom_call.1} parent=1 // pred_region
      %s3055 = ssub.s32 1024, 1024
      %3056 = vsyncadd [#allocation5], %s3055
      %s3057 = sshll.u32 [#allocation6], 4
      %s3058 = int_to_ptr.vmem [resolvable:$true] %s3057
      %3063 = dma.vmem_to_hbm [thread:$0]  %s3058, 1024, %s9, [#allocation5], 512, 512, 32
    $region45: #{tpu_custom_call.1} parent=1 // pred_fallthru
      _
    // Predicated region
    $region46: #{tpu_custom_call.1} parent=1 // pred_check
      _
    $region47: #{tpu_custom_call.1} parent=1 // pred_check_branch
      %3065 = sbr.rel (0) target = $region49
    $region48: #{tpu_custom_call.1} parent=1 // pred_region
      %3066 = dma.done [#allocation5], 1024
    $region49: #{tpu_custom_call.1} parent=1 // pred_fallthru
      _
    %3067 = vsyncpa [#allocation4], 1
    %3068 = vsyncpa [#allocation5], 1

</llo_original>
